<compile_context>
chip_gen: v6e
topology: v6e:2x2x1
jax: 0.10.0
libtpu: 0.0.40
codegen_flags: <defaults>
</compile_context>

<pallas_src>
import jax
import jax.numpy as jnp
from jax.experimental import pallas as pl
from jax.experimental.pallas import tpu as pltpu

EPS = 1e-5          # InstanceNorm2d default eps
NEG_SLOPE = 0.01    # LeakyReLU default negative_slope
LANES = 128


def _vmem_capacity_bytes():
    try:
        info = pltpu.get_tpu_info()
        for attr in ("vmem_capacity_bytes", "vmem_bytes", "vmem_capacity"):
            v = getattr(info, attr, None)
            if v:
                return int(v)
    except Exception:
        pass
    return 64 * 2 ** 20          # conservative fallback (v7x per-core VMEM)


def _pick_row_tile(H, Wp, max_rows):
    """Rows-per-tile TH.  Prefer one full-sample tile; when splitting, prefer
    TQ = TH*Wp a multiple of 16 so dynamic bf16 sublane offsets stay aligned."""
    if H * Wp <= max_rows:
        return H
    for align in (16, 8, 1):
        best = 0
        for d in range(1, H):
            if H % d == 0 and d * Wp <= max_rows and (d * Wp) % align == 0:
                best = max(best, d)
        if best:
            return best
    return 1


def _make_kernel(H, W, Wp, TH, Cin, Cp, T):
    TQ = TH * Wp          # rows of the row-major, W-padded flat spatial grid
    K = 9 * Cin
    inv_hw = 1.0 / float(H * W)

    def _aligned(q):
        if TQ % 16 == 0:
            return pl.multiple_of(q, 16)
        if TQ % 8 == 0:
            return pl.multiple_of(q, 8)
        return q

    def kernel(x_ref, w_ref, out_ref, dist_ref, col_ref, stat_ref):
        # x_ref:    (1, (H+3)*Wp, Cin) bf16  resident per sample
        # w_ref:    (9*Cin, Cp)        bf16  resident (tiny)
        # out_ref:  (1, H*Wp, Cp)      bf16  resident per sample
        # dist_ref: (1, 1, Cp)         f32
        # col_ref:  (TQ, 9*Cin)        bf16  tile-local im2col scratch
        # stat_ref: (2, Cp)            f32   [sum, sumsq] accumulators
        t = pl.program_id(1)

        @pl.when(t == 0)
        def _init():
            stat_ref[...] = jnp.zeros_like(stat_ref)

        q0 = 0 if T == 1 else _aligned(t * TQ)

        # Tile-local im2col: 9 shifted bf16 slices of the resident input into
        # the (TQ, 9*Cin) column scratch.  Flat padded-spatial layout: output
        # (h, w) lives at q = h*Wp + w, tap (dh, dw) reads q + dh*Wp + dw
        # (cross-correlation, like PyTorch Conv2d).
        for dh in range(3):
            for dw in range(3):
                k = dh * 3 + dw
                col_ref[:, k * Cin:(k + 1) * Cin] = (
                    x_ref[0, pl.ds(q0 + dh * Wp + dw, TQ), :])

        # One fused MXU matmul: bf16 x bf16 -> f32 accumulate over K = 9*Cin.
        acc = jnp.dot(col_ref[...], w_ref[...],
                      preferred_element_type=jnp.float32)           # (TQ, Cp)

        # Park raw conv values (bf16) in the per-sample resident out block.
        out_ref[0, pl.ds(q0, TQ), :] = acc.astype(out_ref.dtype)

        # Fused single-sweep InstanceNorm statistics in f32.  Columns
        # w in {W, W+1} of each row are width-padding junk -> masked out.
        vmask = ((jax.lax.broadcasted_iota(jnp.int32, (TQ, 1), 0) % Wp)
                 < W).astype(jnp.float32)
        yv = acc * vmask
        stat_ref[0:1, :] = stat_ref[0:1, :] + jnp.sum(yv, axis=0, keepdims=True)
        stat_ref[1:2, :] = stat_ref[1:2, :] + jnp.sum(yv * acc, axis=0,
                                                      keepdims=True)

        @pl.when(t == pl.num_programs(1) - 1)
        def _finalize():
            mean = stat_ref[0:1, :] * inv_hw                        # (1, Cp)
            var = stat_ref[1:2, :] * inv_hw - mean * mean           # biased
            inv_std = jax.lax.rsqrt(var + EPS)

            # Tiled normalize + activation + channel-distance accumulation:
            # O(TQ*Cp) temporaries per chunk instead of full (H*Wp, Cp) slabs.
            def norm_chunk(q, dsq):
                y = out_ref[0, pl.ds(q, TQ), :].astype(jnp.float32)
                yn = (y - mean) * inv_std                           # InstanceNorm
                act = jnp.where(yn >= 0, yn, NEG_SLOPE * yn)        # LeakyReLU
                out_ref[0, pl.ds(q, TQ), :] = act.astype(out_ref.dtype)
                diff = (act - act[:, 0:1]) * vmask
                return dsq + jnp.sum(diff * diff, axis=0, keepdims=True)

            dsq = jnp.zeros((1, Cp), jnp.float32)
            if T <= 8:                               # static, fully unrolled
                for c in range(T):
                    dsq = norm_chunk(c * TQ, dsq)
            else:
                dsq = jax.lax.fori_loop(
                    0, T, lambda c, d: norm_chunk(_aligned(c * TQ), d), dsq)

            # Channel-to-reference Euclidean distances (reference channel 0),
            # feeding dist_fun / imp_fun; junk columns already masked.
            dist_ref[0] = jnp.sqrt(dsq)

    return kernel


def drop_channels_forward(x, weight, bias=None, compress=1.0):
    """x: (N, Cin, H, W) NCHW.  weight: (Cout, Cin, 3, 3).  bias: (Cout,).

    `bias` is accepted for interface parity but intentionally unused:
    InstanceNorm2d(affine=False) removes any per-channel constant bias.
    """
    del bias
    N, Cin, H, W = x.shape
    Cout, Cin_w, KH, KW = weight.shape
    assert Cin_w == Cin and (KH, KW) == (3, 3)
    assert Cout >= 2

    Wp = W + 2
    Cp = -(-Cout // LANES) * LANES                 # lane-dense channel dim
    K = KH * KW * Cin
    # Per-tile f32 temporaries scale as ~8 * TQ * Cp * 4 bytes; keep them well
    # inside the scoped-VMEM budget on every generation.
    max_rows = max(256, (16 * 2 ** 20) // (Cp * 32))
    TH = _pick_row_tile(H, Wp, max_rows)
    assert H % TH == 0
    T = H // TH
    TQ = TH * Wp
    L = (H + 3) * Wp                               # padded rows + spare row
    HWp = H * Wp

    # --- host glue: one spatially-padded, channel-last bf16 copy of x ---
    xp = jnp.pad(jnp.transpose(x, (0, 2, 3, 1)),
                 ((0, 0), (1, 2), (1, 1), (0, 0)))            # (N, H+3, Wp, Cin)
    xflat = xp.reshape(N, L, Cin).astype(jnp.bfloat16)
    # (9*Cin, Cp) bf16 column weights; channel dim zero-padded to lanes.
    w_col = jnp.transpose(weight, (2, 3, 1, 0)).reshape(K, Cout)
    w_col = jnp.pad(w_col, ((0, 0), (0, Cp - Cout))).astype(jnp.bfloat16)

    # VMEM budget: double-buffered x / w / out / dist blocks + col & stat
    # scratch + f32 matmul / finalize temporaries, with 2x headroom.
    est = (2 * L * Cin * 2 + 2 * K * Cp * 2
           + 2 * HWp * Cp * 2 + 2 * Cp * 4
           + TQ * K * 2 + 8 * Cp * 4
           + 10 * TQ * Cp * 4)
    cap = _vmem_capacity_bytes()
    vmem_limit = int(min(int(0.85 * cap), max(32 * 2 ** 20, 2 * est)))

    kernel = _make_kernel(H, W, Wp, TH, Cin, Cp, T)
    out_flat, dists = pl.pallas_call(
        kernel,
        out_shape=(
            jax.ShapeDtypeStruct((N, HWp, Cp), jnp.bfloat16),
            jax.ShapeDtypeStruct((N, 1, Cp), jnp.float32),
        ),
        grid_spec=pltpu.PrefetchScalarGridSpec(
            num_scalar_prefetch=0,
            grid=(N, T),
            in_specs=[
                pl.BlockSpec((1, L, Cin), lambda n, t: (n, 0, 0)),
                pl.BlockSpec((K, Cp), lambda n, t: (0, 0)),
            ],
            out_specs=[
                pl.BlockSpec((1, HWp, Cp), lambda n, t: (n, 0, 0)),
                pl.BlockSpec((1, 1, Cp), lambda n, t: (n, 0, 0)),
            ],
            scratch_shapes=[
                pltpu.VMEM((TQ, K), jnp.bfloat16),
                pltpu.VMEM((2, Cp), jnp.float32),
            ],
        ),
        compiler_params=pltpu.CompilerParams(
            dimension_semantics=("parallel", "arbitrary"),
            vmem_limit_bytes=vmem_limit),
    )(xflat, w_col)

    # Strip width/channel padding; upcast once for PyTorch-parity NCHW output.
    out_nhwc = out_flat.reshape(N, H, Wp, Cp)[:, :, :W, :Cout]
    # TODO(synk): downstream consumers should take this channel-last bf16
    # tensor directly; the f32 NCHW transpose exists only for interface parity.
    out = jnp.transpose(out_nhwc.astype(jnp.float32), (0, 3, 1, 2))

    # Side attributes of DropChannels.forward.
    # TODO(synk): dist_fun / imp_fun are injected callables at construction
    # time; defaults here mirror Sauron's channel-distance usage (distance of
    # each channel's feature map to a reference channel, ref_idx = 0).
    d = dists[:, 0, :Cout]                                      # (N, Cout)
    delta_opt = jnp.mean(d[:, 1:], axis=1, keepdims=True) * compress
    per_ch = jnp.mean(d[:, 1:], axis=0)                        # (Cout-1,)
    delta_prune = jnp.min(per_ch, keepdims=True)               # (1,)
    ref_idx = 0
    return out, delta_opt, delta_prune, ref_idx


if __name__ == "__main__":
    key = jax.random.PRNGKey(0)
    kx, kw, kb = jax.random.split(key, 3)

    N, Cin, H, W = 2, 4, 16, 16
    Cout = 8

    x = jax.random.normal(kx, (N, Cin, H, W), dtype=jnp.float32)
    weight = 0.1 * jax.random.normal(kw, (Cout, Cin, 3, 3), dtype=jnp.float32)
    bias = 0.1 * jax.random.normal(kb, (Cout,), dtype=jnp.float32)

    out, delta_opt, delta_prune, ref_idx = drop_channels_forward(x, weight, bias)
    jax.block_until_ready((out, delta_opt, delta_prune))

    # Pure-JAX reference (conv + bias + instance norm + leaky relu).  The bias
    # is included here on purpose: InstanceNorm cancels it, validating that
    # dropping the bias-add in the kernel is exact.
    ref_conv = jax.lax.conv_general_dilated(
        x, weight, window_strides=(1, 1), padding="SAME",
        dimension_numbers=("NCHW", "OIHW", "NCHW")) + bias[None, :, None, None]
    mean = jnp.mean(ref_conv, axis=(2, 3), keepdims=True)
    var = jnp.mean((ref_conv - mean) ** 2, axis=(2, 3), keepdims=True)
    refn = (ref_conv - mean) * jax.lax.rsqrt(var + EPS)
    ref_out = jnp.where(refn >= 0, refn, NEG_SLOPE * refn)

    d_ref = jnp.sqrt(jnp.sum((ref_out - ref_out[:, 0:1]) ** 2, axis=(2, 3)))
    delta_opt_ref = jnp.mean(d_ref[:, 1:], axis=1, keepdims=True)
    delta_prune_ref = jnp.min(jnp.mean(d_ref[:, 1:], axis=0), keepdims=True)

    assert out.shape == (N, Cout, H, W)
    assert delta_opt.shape == (N, 1)
    assert delta_prune.shape == (1,)
    err = float(jnp.max(jnp.abs(out - ref_out)))
    assert err < 6e-2, f"activation mismatch vs reference: {err}"
    rel_opt = float(jnp.max(jnp.abs(delta_opt - delta_opt_ref)
                            / (jnp.abs(delta_opt_ref) + 1e-6)))
    rel_prune = float(jnp.max(jnp.abs(delta_prune - delta_prune_ref)
                              / (jnp.abs(delta_prune_ref) + 1e-6)))
    assert rel_opt < 5e-2, f"delta_opt mismatch (rel err {rel_opt})"
    assert rel_prune < 5e-2, f"delta_prune mismatch (rel err {rel_prune})"
    print("KERNEL_OK")
</pallas_src>

<mosaic_0001>
module attributes {stable_mosaic.version = 11 : i64} {
  func.func @kernel(%arg0: i32, %arg1: i32, %arg2: memref<1x342x4xbf16, #tpu.memory_space<vmem>>, %arg3: memref<36x128xbf16, #tpu.memory_space<vmem>>, %arg4: memref<1x288x128xbf16, #tpu.memory_space<vmem>>, %arg5: memref<1x1x128xf32, #tpu.memory_space<vmem>>, %arg6: memref<288x36xbf16, #tpu.memory_space<vmem>>, %arg7: memref<2x128xf32, #tpu.memory_space<vmem>>) attributes {dimension_semantics = [#tpu.dimension_semantics<parallel>, #tpu.dimension_semantics<arbitrary>], iteration_bounds = array<i64: 2, 1>, scalar_prefetch = 0 : i64, scratch_operands = 2 : i64, tpu.core_type = #tpu.core_type<tc>, window_params = [{transform_indices = @transform_0, window_bounds = array<i64: 1, 342, 4>}, {pipeline_mode = #tpu.pipeline_mode<synchronous>, transform_indices = @transform_1, window_bounds = array<i64: 36, 128>}, {transform_indices = @transform_2, window_bounds = array<i64: 1, 288, 128>}, {transform_indices = @transform_3, window_bounds = array<i64: 1, 1, 128>}]} {
    %c0_i32 = arith.constant 0 : i32
    %0 = arith.cmpi eq, %arg1, %c0_i32 : i32
    %1 = arith.extui %0 : i1 to i32
    %c0_i32_0 = arith.constant 0 : i32
    %2 = arith.cmpi ne, %1, %c0_i32_0 : i32
    scf.if %2 {
      %cst_53 = arith.constant 0.000000e+00 : f32
      %74 = vector.broadcast %cst_53 : f32 to vector<2x128xf32>
      %c0_54 = arith.constant 0 : index
      %c0_55 = arith.constant 0 : index
      %75 = vector.load %arg7[%c0_54, %c0_55] : memref<2x128xf32, #tpu.memory_space<vmem>>, vector<2x128xf32>
      tpu.vector_store %arg7[%c0_54, %c0_55], %74 {strides = array<i32>} : memref<2x128xf32, #tpu.memory_space<vmem>>, vector<2x128xf32>,
    } else {
    }
    %c0 = arith.constant 0 : index
    %c0_1 = arith.constant 0 : index
    %c0_2 = arith.constant 0 : index
    %3 = vector.load %arg2[%c0, %c0_1, %c0_2] : memref<1x342x4xbf16, #tpu.memory_space<vmem>>, vector<1x288x4xbf16>
    %4 = vector.shape_cast %3 : vector<1x288x4xbf16> to vector<288x4xbf16>
    %c0_3 = arith.constant 0 : index
    %c0_4 = arith.constant 0 : index
    %5 = vector.load %arg6[%c0_3, %c0_4] : memref<288x36xbf16, #tpu.memory_space<vmem>>, vector<288x4xbf16>
    tpu.vector_store %arg6[%c0_3, %c0_4], %4 {strides = array<i32>} : memref<288x36xbf16, #tpu.memory_space<vmem>>, vector<288x4xbf16>,
    %c0_5 = arith.constant 0 : index
    %c1 = arith.constant 1 : index
    %c0_6 = arith.constant 0 : index
    %6 = vector.load %arg2[%c0_5, %c1, %c0_6] : memref<1x342x4xbf16, #tpu.memory_space<vmem>>, vector<1x288x4xbf16>
    %7 = vector.shape_cast %6 : vector<1x288x4xbf16> to vector<288x4xbf16>
    %c0_7 = arith.constant 0 : index
    %c4 = arith.constant 4 : index
    %8 = vector.load %arg6[%c0_7, %c4] : memref<288x36xbf16, #tpu.memory_space<vmem>>, vector<288x4xbf16>
    tpu.vector_store %arg6[%c0_7, %c4], %7 {strides = array<i32>} : memref<288x36xbf16, #tpu.memory_space<vmem>>, vector<288x4xbf16>,
    %c0_8 = arith.constant 0 : index
    %c2 = arith.constant 2 : index
    %c0_9 = arith.constant 0 : index
    %9 = vector.load %arg2[%c0_8, %c2, %c0_9] : memref<1x342x4xbf16, #tpu.memory_space<vmem>>, vector<1x288x4xbf16>
    %10 = vector.shape_cast %9 : vector<1x288x4xbf16> to vector<288x4xbf16>
    %c0_10 = arith.constant 0 : index
    %c8 = arith.constant 8 : index
    %11 = vector.load %arg6[%c0_10, %c8] : memref<288x36xbf16, #tpu.memory_space<vmem>>, vector<288x4xbf16>
    tpu.vector_store %arg6[%c0_10, %c8], %10 {strides = array<i32>} : memref<288x36xbf16, #tpu.memory_space<vmem>>, vector<288x4xbf16>,
    %c0_11 = arith.constant 0 : index
    %c18 = arith.constant 18 : index
    %c0_12 = arith.constant 0 : index
    %12 = vector.load %arg2[%c0_11, %c18, %c0_12] : memref<1x342x4xbf16, #tpu.memory_space<vmem>>, vector<1x288x4xbf16>
    %13 = vector.shape_cast %12 : vector<1x288x4xbf16> to vector<288x4xbf16>
    %c0_13 = arith.constant 0 : index
    %c12 = arith.constant 12 : index
    %14 = vector.load %arg6[%c0_13, %c12] : memref<288x36xbf16, #tpu.memory_space<vmem>>, vector<288x4xbf16>
    tpu.vector_store %arg6[%c0_13, %c12], %13 {strides = array<i32>} : memref<288x36xbf16, #tpu.memory_space<vmem>>, vector<288x4xbf16>,
    %c0_14 = arith.constant 0 : index
    %c19 = arith.constant 19 : index
    %c0_15 = arith.constant 0 : index
    %15 = vector.load %arg2[%c0_14, %c19, %c0_15] : memref<1x342x4xbf16, #tpu.memory_space<vmem>>, vector<1x288x4xbf16>
    %16 = vector.shape_cast %15 : vector<1x288x4xbf16> to vector<288x4xbf16>
    %c0_16 = arith.constant 0 : index
    %c16 = arith.constant 16 : index
    %17 = vector.load %arg6[%c0_16, %c16] : memref<288x36xbf16, #tpu.memory_space<vmem>>, vector<288x4xbf16>
    tpu.vector_store %arg6[%c0_16, %c16], %16 {strides = array<i32>} : memref<288x36xbf16, #tpu.memory_space<vmem>>, vector<288x4xbf16>,
    %c0_17 = arith.constant 0 : index
    %c20 = arith.constant 20 : index
    %c0_18 = arith.constant 0 : index
    %18 = vector.load %arg2[%c0_17, %c20, %c0_18] : memref<1x342x4xbf16, #tpu.memory_space<vmem>>, vector<1x288x4xbf16>
    %19 = vector.shape_cast %18 : vector<1x288x4xbf16> to vector<288x4xbf16>
    %c0_19 = arith.constant 0 : index
    %c20_20 = arith.constant 20 : index
    %20 = vector.load %arg6[%c0_19, %c20_20] : memref<288x36xbf16, #tpu.memory_space<vmem>>, vector<288x4xbf16>
    tpu.vector_store %arg6[%c0_19, %c20_20], %19 {strides = array<i32>} : memref<288x36xbf16, #tpu.memory_space<vmem>>, vector<288x4xbf16>,
    %c0_21 = arith.constant 0 : index
    %c36 = arith.constant 36 : index
    %c0_22 = arith.constant 0 : index
    %21 = vector.load %arg2[%c0_21, %c36, %c0_22] : memref<1x342x4xbf16, #tpu.memory_space<vmem>>, vector<1x288x4xbf16>
    %22 = vector.shape_cast %21 : vector<1x288x4xbf16> to vector<288x4xbf16>
    %c0_23 = arith.constant 0 : index
    %c24 = arith.constant 24 : index
    %23 = vector.load %arg6[%c0_23, %c24] : memref<288x36xbf16, #tpu.memory_space<vmem>>, vector<288x4xbf16>
    tpu.vector_store %arg6[%c0_23, %c24], %22 {strides = array<i32>} : memref<288x36xbf16, #tpu.memory_space<vmem>>, vector<288x4xbf16>,
    %c0_24 = arith.constant 0 : index
    %c37 = arith.constant 37 : index
    %c0_25 = arith.constant 0 : index
    %24 = vector.load %arg2[%c0_24, %c37, %c0_25] : memref<1x342x4xbf16, #tpu.memory_space<vmem>>, vector<1x288x4xbf16>
    %25 = vector.shape_cast %24 : vector<1x288x4xbf16> to vector<288x4xbf16>
    %c0_26 = arith.constant 0 : index
    %c28 = arith.constant 28 : index
    %26 = vector.load %arg6[%c0_26, %c28] : memref<288x36xbf16, #tpu.memory_space<vmem>>, vector<288x4xbf16>
    tpu.vector_store %arg6[%c0_26, %c28], %25 {strides = array<i32>} : memref<288x36xbf16, #tpu.memory_space<vmem>>, vector<288x4xbf16>,
    %c0_27 = arith.constant 0 : index
    %c38 = arith.constant 38 : index
    %c0_28 = arith.constant 0 : index
    %27 = vector.load %arg2[%c0_27, %c38, %c0_28] : memref<1x342x4xbf16, #tpu.memory_space<vmem>>, vector<1x288x4xbf16>
    %28 = vector.shape_cast %27 : vector<1x288x4xbf16> to vector<288x4xbf16>
    %c0_29 = arith.constant 0 : index
    %c32 = arith.constant 32 : index
    %29 = vector.load %arg6[%c0_29, %c32] : memref<288x36xbf16, #tpu.memory_space<vmem>>, vector<288x4xbf16>
    tpu.vector_store %arg6[%c0_29, %c32], %28 {strides = array<i32>} : memref<288x36xbf16, #tpu.memory_space<vmem>>, vector<288x4xbf16>,
    %c0_30 = arith.constant 0 : index
    %c0_31 = arith.constant 0 : index
    %30 = vector.load %arg6[%c0_30, %c0_31] : memref<288x36xbf16, #tpu.memory_space<vmem>>, vector<288x36xbf16>
    %c0_32 = arith.constant 0 : index
    %c0_33 = arith.constant 0 : index
    %31 = vector.load %arg3[%c0_32, %c0_33] : memref<36x128xbf16, #tpu.memory_space<vmem>>, vector<36x128xbf16>
    %cst = arith.constant dense<0.000000e+00> : vector<288x128xf32>
    %32 = tpu.matmul %30, %31, %cst {dimension_numbers = #tpu.dot_dimension_numbers<[1], [0], [0], [1], [0, 0, 1, 1], [], []>} : vector<288x36xbf16>, vector<36x128xbf16>, vector<288x128xf32> -> vector<288x128xf32>
    %33 = arith.truncf %32 : vector<288x128xf32> to vector<288x128xbf16>
    %c0_34 = arith.constant 0 : index
    %c0_35 = arith.constant 0 : index
    %c0_36 = arith.constant 0 : index
    %34 = vector.load %arg4[%c0_34, %c0_35, %c0_36] : memref<1x288x128xbf16, #tpu.memory_space<vmem>>, vector<1x288x128xbf16>
    %35 = vector.shape_cast %34 : vector<1x288x128xbf16> to vector<288x128xbf16>
    %36 = vector.shape_cast %33 : vector<288x128xbf16> to vector<1x288x128xbf16>
    tpu.vector_store %arg4[%c0_34, %c0_35, %c0_36], %36 {strides = array<i32>} : memref<1x288x128xbf16, #tpu.memory_space<vmem>>, vector<1x288x128xbf16>,
    %37 = tpu.iota {dimensions = array<i32: 0>} : vector<288x1xi32>
    %c18_i32 = arith.constant 18 : i32
    %c0_i32_37 = arith.constant 0 : i32
    %38 = arith.cmpi eq, %c18_i32, %c0_i32_37 : i32
    %c1_i32 = arith.constant 1 : i32
    %39 = arith.select %38, %c1_i32, %c18_i32 : i32
    %40 = vector.broadcast %39 : i32 to vector<288x1xi32>
    %41 = arith.remsi %37, %40 : vector<288x1xi32>
    %c0_i32_38 = arith.constant 0 : i32
    %42 = vector.broadcast %c0_i32_38 : i32 to vector<288x1xi32>
    %43 = arith.cmpi ne, %41, %42 : vector<288x1xi32>
    %c0_i32_39 = arith.constant 0 : i32
    %44 = vector.broadcast %c0_i32_39 : i32 to vector<288x1xi32>
    %45 = arith.cmpi slt, %41, %44 : vector<288x1xi32>
    %c0_i32_40 = arith.constant 0 : i32
    %46 = arith.cmpi slt, %39, %c0_i32_40 : i32
    %47 = vector.broadcast %46 : i1 to vector<288x1xi1>
    %48 = vector.broadcast %47 : vector<288x1xi1> to vector<288x1xi1>
    %49 = arith.xori %45, %48 : vector<288x1xi1>
    %50 = arith.andi %49, %43 : vector<288x1xi1>
    %51 = vector.broadcast %39 : i32 to vector<288x1xi32>
    %52 = arith.addi %41, %51 : vector<288x1xi32>
    %53 = arith.select %50, %52, %41 : vector<288x1xi1>, vector<288x1xi32>
    %c16_i32 = arith.constant 16 : i32
    %54 = vector.broadcast %c16_i32 : i32 to vector<288x1xi32>
    %55 = arith.cmpi slt, %53, %54 : vector<288x1xi32>
    %56 = arith.extui %55 : vector<288x1xi1> to vector<288x1xi32>
    %57 = arith.sitofp %56 : vector<288x1xi32> to vector<288x1xf32>
    %58 = vector.broadcast %57 : vector<288x1xf32> to vector<288x128xf32>
    %59 = arith.mulf %32, %58 : vector<288x128xf32>
    %c0_41 = arith.constant 0 : index
    %c0_42 = arith.constant 0 : index
    %60 = vector.load %arg7[%c0_41, %c0_42] : memref<2x128xf32, #tpu.memory_space<vmem>>, vector<1x128xf32>
    %cst_43 = arith.constant dense<0.000000e+00> : vector<128xf32>
    %61 = vector.multi_reduction <add>, %59, %cst_43 [0] : vector<288x128xf32> to vector<128xf32>
    %62 = vector.shape_cast %61 : vector<128xf32> to vector<1x128xf32>
    %63 = arith.addf %60, %62 : vector<1x128xf32>
    %c0_44 = arith.constant 0 : index
    %c0_45 = arith.constant 0 : index
    %64 = vector.load %arg7[%c0_44, %c0_45] : memref<2x128xf32, #tpu.memory_space<vmem>>, vector<1x128xf32>
    tpu.vector_store %arg7[%c0_44, %c0_45], %63 {strides = array<i32>} : memref<2x128xf32, #tpu.memory_space<vmem>>, vector<1x128xf32>,
    %c1_46 = arith.constant 1 : index
    %c0_47 = arith.constant 0 : index
    %65 = vector.load %arg7[%c1_46, %c0_47] : memref<2x128xf32, #tpu.memory_space<vmem>>, vector<1x128xf32>
    %66 = arith.mulf %59, %32 : vector<288x128xf32>
    %cst_48 = arith.constant dense<0.000000e+00> : vector<128xf32>
    %67 = vector.multi_reduction <add>, %66, %cst_48 [0] : vector<288x128xf32> to vector<128xf32>
    %68 = vector.shape_cast %67 : vector<128xf32> to vector<1x128xf32>
    %69 = arith.addf %65, %68 : vector<1x128xf32>
    %c1_49 = arith.constant 1 : index
    %c0_50 = arith.constant 0 : index
    %70 = vector.load %arg7[%c1_49, %c0_50] : memref<2x128xf32, #tpu.memory_space<vmem>>, vector<1x128xf32>
    tpu.vector_store %arg7[%c1_49, %c0_50], %69 {strides = array<i32>} : memref<2x128xf32, #tpu.memory_space<vmem>>, vector<1x128xf32>,
    %c0_i32_51 = arith.constant 0 : i32
    %71 = arith.cmpi eq, %arg1, %c0_i32_51 : i32
    %72 = arith.extui %71 : i1 to i32
    %c0_i32_52 = arith.constant 0 : i32
    %73 = arith.cmpi ne, %72, %c0_i32_52 : i32
    scf.if %73 {
      %c0_53 = arith.constant 0 : index
      %c0_54 = arith.constant 0 : index
      %74 = vector.load %arg7[%c0_53, %c0_54] : memref<2x128xf32, #tpu.memory_space<vmem>>, vector<1x128xf32>
      %cst_55 = arith.constant 3.906250e-03 : f32
      %75 = vector.broadcast %cst_55 : f32 to vector<1x128xf32>
      %76 = arith.mulf %74, %75 : vector<1x128xf32>
      %c1_56 = arith.constant 1 : index
      %c0_57 = arith.constant 0 : index
      %77 = vector.load %arg7[%c1_56, %c0_57] : memref<2x128xf32, #tpu.memory_space<vmem>>, vector<1x128xf32>
      %cst_58 = arith.constant 3.906250e-03 : f32
      %78 = vector.broadcast %cst_58 : f32 to vector<1x128xf32>
      %79 = arith.mulf %77, %78 : vector<1x128xf32>
      %80 = arith.mulf %76, %76 : vector<1x128xf32>
      %81 = arith.subf %79, %80 : vector<1x128xf32>
      %cst_59 = arith.constant 9.99999974E-6 : f32
      %82 = vector.broadcast %cst_59 : f32 to vector<1x128xf32>
      %83 = arith.addf %81, %82 : vector<1x128xf32>
      %84 = math.rsqrt %83 : vector<1x128xf32>
      %cst_60 = arith.constant 0.000000e+00 : f32
      %85 = vector.broadcast %cst_60 : f32 to vector<1x128xf32>
      %c0_61 = arith.constant 0 : index
      %c0_62 = arith.constant 0 : index
      %c0_63 = arith.constant 0 : index
      %86 = vector.load %arg4[%c0_61, %c0_62, %c0_63] : memref<1x288x128xbf16, #tpu.memory_space<vmem>>, vector<1x288x128xbf16>
      %87 = vector.shape_cast %86 : vector<1x288x128xbf16> to vector<288x128xbf16>
      %88 = arith.extf %87 : vector<288x128xbf16> to vector<288x128xf32>
      %89 = vector.broadcast %76 : vector<1x128xf32> to vector<288x128xf32>
      %90 = arith.subf %88, %89 : vector<288x128xf32>
      %91 = vector.broadcast %84 : vector<1x128xf32> to vector<288x128xf32>
      %92 = arith.mulf %90, %91 : vector<288x128xf32>
      %cst_64 = arith.constant 0.000000e+00 : f32
      %93 = vector.broadcast %cst_64 : f32 to vector<288x128xf32>
      %94 = arith.cmpf oge, %92, %93 : vector<288x128xf32>
      %cst_65 = arith.constant 0.00999999977 : f32
      %95 = vector.broadcast %cst_65 : f32 to vector<288x128xf32>
      %96 = arith.mulf %95, %92 : vector<288x128xf32>
      %97 = arith.select %94, %92, %96 : vector<288x128xi1>, vector<288x128xf32>
      %98 = arith.truncf %97 : vector<288x128xf32> to vector<288x128xbf16>
      %c0_66 = arith.constant 0 : index
      %c0_67 = arith.constant 0 : index
      %c0_68 = arith.constant 0 : index
      %99 = vector.load %arg4[%c0_66, %c0_67, %c0_68] : memref<1x288x128xbf16, #tpu.memory_space<vmem>>, vector<1x288x128xbf16>
      %100 = vector.shape_cast %99 : vector<1x288x128xbf16> to vector<288x128xbf16>
      %101 = vector.shape_cast %98 : vector<288x128xbf16> to vector<1x288x128xbf16>
      tpu.vector_store %arg4[%c0_66, %c0_67, %c0_68], %101 {strides = array<i32>} : memref<1x288x128xbf16, #tpu.memory_space<vmem>>, vector<1x288x128xbf16>,
      %102 = vector.extract_strided_slice %97 {offsets = [0, 0], sizes = [288, 1], strides = [1, 1]} : vector<288x128xf32> to vector<288x1xf32>
      %103 = vector.broadcast %102 : vector<288x1xf32> to vector<288x128xf32>
      %104 = arith.subf %97, %103 : vector<288x128xf32>
      %105 = vector.broadcast %57 : vector<288x1xf32> to vector<288x128xf32>
      %106 = arith.mulf %104, %105 : vector<288x128xf32>
      %107 = arith.mulf %106, %106 : vector<288x128xf32>
      %cst_69 = arith.constant dense<0.000000e+00> : vector<128xf32>
      %108 = vector.multi_reduction <add>, %107, %cst_69 [0] : vector<288x128xf32> to vector<128xf32>
      %109 = vector.shape_cast %108 : vector<128xf32> to vector<1x128xf32>
      %110 = arith.addf %85, %109 : vector<1x128xf32>
      %111 = math.sqrt %110 : vector<1x128xf32>
      %c0_70 = arith.constant 0 : index
      %c0_71 = arith.constant 0 : index
      %c0_72 = arith.constant 0 : index
      %112 = vector.load %arg5[%c0_70, %c0_71, %c0_72] : memref<1x1x128xf32, #tpu.memory_space<vmem>>, vector<1x1x128xf32>
      %113 = vector.shape_cast %112 : vector<1x1x128xf32> to vector<1x128xf32>
      %114 = vector.shape_cast %111 : vector<1x128xf32> to vector<1x1x128xf32>
      tpu.vector_store %arg5[%c0_70, %c0_71, %c0_72], %114 {strides = array<i32>} : memref<1x1x128xf32, #tpu.memory_space<vmem>>, vector<1x1x128xf32>,
    } else {
    }
    return
  }
  func.func @transform_0(%arg0: i32, %arg1: i32) -> (i32, i32, i32) {
    %c0_i32 = arith.constant 0 : i32
    %c0_i32_0 = arith.constant 0 : i32
    %c0_i32_1 = arith.constant 0 : i32
    return %arg0, %c0_i32, %c0_i32_0 : i32, i32, i32
  }
  func.func @transform_1(%arg0: i32, %arg1: i32) -> (i32, i32) {
    %c0_i32 = arith.constant 0 : i32
    %c0_i32_0 = arith.constant 0 : i32
    %c0_i32_1 = arith.constant 0 : i32
    return %c0_i32, %c0_i32_0 : i32, i32
  }
  func.func @transform_2(%arg0: i32, %arg1: i32) -> (i32, i32, i32) {
    %c0_i32 = arith.constant 0 : i32
    %c0_i32_0 = arith.constant 0 : i32
    %c0_i32_1 = arith.constant 0 : i32
    return %arg0, %c0_i32, %c0_i32_0 : i32, i32, i32
  }
  func.func @transform_3(%arg0: i32, %arg1: i32) -> (i32, i32, i32) {
    %c0_i32 = arith.constant 0 : i32
    %c0_i32_0 = arith.constant 0 : i32
    %c0_i32_1 = arith.constant 0 : i32
    return %arg0, %c0_i32, %c0_i32_0 : i32, i32, i32
  }
}

</mosaic_0001>

<llo_original>
// kernel: tpu_custom_call.1
$region0: #{tpu_custom_call.1}
  #allocation0 [shape = 'u32[]', space=smem, size = 0x4, offset = 0x4, fixed_abs, tag = 'smem constant byte address 0x4 - core index']
  #allocation1 [shape = 'u32[144,128]{1,0:T(1,128)}', space=vmem, size = 0x12000, scoped, tag = 'internal scratch']
  #allocation2 [shape = 'bf16[288,36]{1,0:T(8,128)(2,1)}', space=vmem, size = 0x12000, scoped, tag = 'scratch operand']
  #allocation3 [shape = 'f32[2,128]{1,0:T(2,128)}', space=vmem, size = 0x400, scoped, tag = 'scratch operand']
  %s0 = inlined_call_operand.vmem [shape: bf16[2,342,4], index: 0, kind: input, shape index: {}]
  %s1 = inlined_call_operand.vmem [shape: bf16[36,128], index: 1, kind: input, shape index: {}]
  %s2 = inlined_call_operand.hbm [shape: bf16[2,288,128], index: 2, kind: output, shape index: {0}]
  %s3 = inlined_call_operand.hbm [shape: f32[2,1,128], index: 3, kind: output, shape index: {1}]
  %4 = xla_tuple %s2, %s3
  %s5 = sld [smem:[#allocation0]]
  $region57: #{tpu_custom_call.1} parent=0
    _
  %s7 = ssub.s32 1, %s5
  %s8 = scalar_select 0, %s7, %s5
  $region1: #{tpu_custom_call.1} parent=0
    #allocation4 [shape = 'u8[147456]{0}', space=vmem, size = 0x24000, scoped, tag = 'output window, operand 0']
    #allocation5 [shape = 's32[2]{0}', space=sflag, size = 0x8, scoped, tag = 'scoped memory for tpu_custom_call.1']
    #allocation6 [shape = 'u8[1024]{0}', space=vmem, size = 0x400, scoped, tag = 'output window, operand 1']
    #allocation7 [shape = 's32[2]{0}', space=sflag, size = 0x8, scoped, tag = 'scoped memory for tpu_custom_call.1']
    %9 = vsyncpa [#allocation5], 0
    %s10 = scalar_lea.sflag [#allocation5], 1
    %11 = vsyncpa %s10, 0
    %12 = vsyncpa [#allocation7], 0
    %s13 = scalar_lea.sflag [#allocation7], 1
    %14 = vsyncpa %s13, 0
    loop: start=0, step=1, limit=4
    $region2: #{tpu_custom_call.1} parent=1 // loop_pre_header
      _
    $region3: #{tpu_custom_call.1} parent=1 // loop_header
      %s16 = sphi 0, %s20
      %p17 = scmp.ge.s32.totalorder %s16, 4
      %s23 = sphi 0, %s35
      %s24 = sphi 0, %s31
      %s25 = sphi 0, %s23
      %s26 = sphi 0, %s24
      %s27 = sphi 0, %s25
      %s28 = sphi 0, %s26
      %s38 = sphi 0, %s40
      %s41 = sphi 0, %s38
      %s42 = sphi 0, %s41
      %s58 = sphi 0, %s42
      %s62 = sphi 0, %s62
      %s64 = sphi 0, %s62
      %s65 = sphi 0, %s64
      %s79 = sphi 0, %s65
      %s85 = sphi 0, %s87
      %s88 = sphi 0, %s85
      %s89 = sphi 0, %s88
      %s105 = sphi 0, %s89
      %s111 = sphi 0, %s113
      %s114 = sphi 0, %s111
      %s115 = sphi 0, %s114
      %s131 = sphi 0, %s115
    $region4: #{tpu_custom_call.1} parent=1 // loop_header_branch
      %19 = sbr.rel (%p17) target = $region8
    $region5: #{tpu_custom_call.1} parent=1 // loop_body
      %s21 = ssub.s32 %s16, 1
      %s22 = ssub.s32 %s16, 2
      %s29 = sadd.s32 1, %s24
      %p30 = scmp.ge.s32.totalorder %s29, 1
      %s31 = scalar_select %p30, 0, %s29
      %s32 = sadd.s32 1, %s23
      %s33 = scalar_select %p30, %s32, %s23
      %p34 = scmp.ge.s32.totalorder %s33, 2
      %s35 = scalar_select %p34, 0, %s33
      %s36 = ssub.s32 %s23, %s35
      %p37 = scmp.eq.s32.totalorder %s36, 0
      %s39 = sadd.s32 %s38, 1
      %s40 = scalar_select %p37, %s38, %s39
      %p43 = pneg %p37
      %p44 = scmp.eq.s32.totalorder %s16, 1
      %p45 = por %p43, %p44
      %p46 = scmp.ne.s32.totalorder %s38, %s41
      %p47 = scmp.eq.s32.totalorder %s16, 0
      %p48 = por %p46, %p47
      %p49 = scmp.ne.s32.totalorder %s38, %s41
      %p50 = scmp.eq.s32.totalorder %s21, 1
      %p51 = por %p49, %p50
      %p52 = scmp.ne.s32.totalorder %s41, %s42
      %p53 = scmp.eq.s32.totalorder %s21, 0
      %p54 = por %p52, %p53
      %p55 = scmp.ne.s32.totalorder %s41, %s42
      %p56 = scmp.eq.s32.totalorder %s22, 1
      %p57 = por %p55, %p56
      %p59 = scmp.ne.s32.totalorder %s42, %s58
      %p60 = scmp.eq.s32.totalorder %s22, 0
      %p61 = por %p59, %p60
      %s63 = sadd.s32 %s62, 1
      %p66 = scmp.eq.s32.totalorder %s16, 1
      %p67 = scmp.ne.s32.totalorder %s62, %s64
      %p68 = scmp.eq.s32.totalorder %s16, 0
      %p69 = por %p67, %p68
      %p70 = scmp.ne.s32.totalorder %s62, %s64
      %p71 = scmp.eq.s32.totalorder %s21, 1
      %p72 = por %p70, %p71
      %p73 = scmp.ne.s32.totalorder %s64, %s65
      %p74 = scmp.eq.s32.totalorder %s21, 0
      %p75 = por %p73, %p74
      %p76 = scmp.ne.s32.totalorder %s64, %s65
      %p77 = scmp.eq.s32.totalorder %s22, 1
      %p78 = por %p76, %p77
      %p80 = scmp.ne.s32.totalorder %s65, %s79
      %p81 = scmp.eq.s32.totalorder %s22, 0
      %p82 = por %p80, %p81
      %s83 = ssub.s32 %s23, %s35
      %p84 = scmp.eq.s32.totalorder %s83, 0
      %s86 = sadd.s32 %s85, 1
      %s87 = scalar_select %p84, %s85, %s86
      %p90 = pneg %p84
      %p91 = scmp.eq.s32.totalorder %s16, 1
      %p92 = por %p90, %p91
      %p93 = scmp.ne.s32.totalorder %s85, %s88
      %p94 = scmp.eq.s32.totalorder %s16, 0
      %p95 = por %p93, %p94
      %p96 = scmp.ne.s32.totalorder %s85, %s88
      %p97 = scmp.eq.s32.totalorder %s21, 1
      %p98 = por %p96, %p97
      %p99 = scmp.ne.s32.totalorder %s88, %s89
      %p100 = scmp.eq.s32.totalorder %s21, 0
      %p101 = por %p99, %p100
      %p102 = scmp.ne.s32.totalorder %s88, %s89
      %p103 = scmp.eq.s32.totalorder %s22, 1
      %p104 = por %p102, %p103
      %p106 = scmp.ne.s32.totalorder %s89, %s105
      %p107 = scmp.eq.s32.totalorder %s22, 0
      %p108 = por %p106, %p107
      %s109 = ssub.s32 %s23, %s35
      %p110 = scmp.eq.s32.totalorder %s109, 0
      %s112 = sadd.s32 %s111, 1
      %s113 = scalar_select %p110, %s111, %s112
      %p116 = pneg %p110
      %p117 = scmp.eq.s32.totalorder %s16, 1
      %p118 = por %p116, %p117
      %p119 = scmp.ne.s32.totalorder %s111, %s114
      %p120 = scmp.eq.s32.totalorder %s16, 0
      %p121 = por %p119, %p120
      %p122 = scmp.ne.s32.totalorder %s111, %s114
      %p123 = scmp.eq.s32.totalorder %s21, 1
      %p124 = por %p122, %p123
      %p125 = scmp.ne.s32.totalorder %s114, %s115
      %p126 = scmp.eq.s32.totalorder %s21, 0
      %p127 = por %p125, %p126
      %p128 = scmp.ne.s32.totalorder %s114, %s115
      %p129 = scmp.eq.s32.totalorder %s22, 1
      %p130 = por %p128, %p129
      %p132 = scmp.ne.s32.totalorder %s115, %s131
      %p133 = scmp.eq.s32.totalorder %s22, 0
      %p134 = por %p132, %p133
      %p135 = scmp.le.s32.totalorder 1, %s16
      %p136 = scmp.lt.s32.totalorder %s16, 3
      %p137 = pnand %p135, %p136
      %p138 = pneg %p137
      // Predicated region
      $region9: #{tpu_custom_call.1} parent=5 // pred_check
        _
      $region10: #{tpu_custom_call.1} parent=5 // pred_check_branch
        %140 = sbr.rel (%p137) target = $region12
      $region11: #{tpu_custom_call.1} parent=5 // pred_region
        %s141 = ssub.s32 %s16, 1
        // Predicated region
        $region13: #{tpu_custom_call.1} parent=11 // pred_check
          %p142 = pneg %p75
        $region14: #{tpu_custom_call.1} parent=11 // pred_check_branch
          %144 = sbr.rel (%p142) target = $region16
        $region15: #{tpu_custom_call.1} parent=11 // pred_region
          _
        $region16: #{tpu_custom_call.1} parent=11 // pred_fallthru
          _
      $region12: #{tpu_custom_call.1} parent=5 // pred_fallthru
        _
      %p145 = scmp.lt.s32.totalorder %s16, 2
      // Predicated region
      $region17: #{tpu_custom_call.1} parent=5 // pred_check
        %p146 = pneg %p145
      $region18: #{tpu_custom_call.1} parent=5 // pred_check_branch
        %148 = sbr.rel (%p146) target = $region20
      $region19: #{tpu_custom_call.1} parent=5 // pred_region
        // Predicated region
        $region21: #{tpu_custom_call.1} parent=19 // pred_check
          %p149 = pneg %p48
        $region22: #{tpu_custom_call.1} parent=19 // pred_check_branch
          %151 = sbr.rel (%p149) target = $region24
        $region23: #{tpu_custom_call.1} parent=19 // pred_region
          %p152 = scmp.lt.s32.totalorder %s23, 1
          %s153 = scalar_select %p152, %s23, 1
          %s154 = smul.addr %s153, 43
          %s155 = smul.addr %s154, 4
          %s156 = scalar_lea.vmem %s0, %s155
        $region24: #{tpu_custom_call.1} parent=19 // pred_fallthru
          _
      $region20: #{tpu_custom_call.1} parent=5 // pred_fallthru
        _
      %p157 = scmp.le.s32.totalorder 1, %s16
      %p158 = scmp.lt.s32.totalorder %s16, 3
      %p159 = pnand %p157, %p158
      %p160 = pneg %p159
      // Predicated region
      $region25: #{tpu_custom_call.1} parent=5 // pred_check
        _
      $region26: #{tpu_custom_call.1} parent=5 // pred_check_branch
        %162 = sbr.rel (%p159) target = $region28
      $region27: #{tpu_custom_call.1} parent=5 // pred_region
        %s163 = ssub.s32 %s16, 1
        %p164 = scmp.lt.s32.totalorder %s25, 1
        %s165 = scalar_select %p164, %s25, 1
        %s166 = smul.addr %s165, 43
        %s167 = smul.addr %s166, 4
        %s168 = scalar_lea.vmem %s0, %s167
        %p169 = pneg %p54
        %p170 = pneg %p51
        %p171 = pneg %p75
        %p172 = pneg %p72
        %p173 = pneg %p101
        %p174 = pneg %p98
        %s175 = sand.u32 %s88, 1
        %s176 = scalar_lea.sflag [#allocation5], %s175
        %s177 = sand.u32 %s88, 1
        %s178 = smul.addr %s177, 144
        %s179 = scalar_lea.vmem [#allocation4], %s178
        %p180 = pneg %p127
        %p181 = pneg %p124
        %s182 = sand.u32 %s114, 1
        %s183 = scalar_lea.sflag [#allocation7], %s182
        %s184 = sand.u32 %s114, 1
        %s185 = scalar_lea.vmem [#allocation6], %s184
        %p186 = scmp.lt.s32.totalorder %s25, 1
        %s187 = scalar_select %p186, %s25, 1
        %s188 = smul.addr %s187, 43
        %s189 = smul.addr %s188, 4
        %s190 = scalar_lea.vmem %s0, %s189
        %p192 = scmp.eq.s32.totalorder %s26, 0
        // Predicated region
        $region29: #{tpu_custom_call.1} parent=27 // pred_check
          %p193 = pneg %p192
        $region30: #{tpu_custom_call.1} parent=27 // pred_check_branch
          %195 = sbr.rel (%p193) target = $region32
        $region31: #{tpu_custom_call.1} parent=27 // pred_region
          %196 = vst [vmem:[#allocation3] sm:$0x3] 0.0
        $region32: #{tpu_custom_call.1} parent=27 // pred_fallthru
          _
        %v197 = vld [vmem:[%s190] sm:$0xf]
        %v198 = vld [vmem:[%s190 + $0x4] sm:$0xf]
        %v199 = vld [vmem:[%s190 + $0x8] sm:$0xf]
        %v200 = vld [vmem:[%s190 + $0xc] sm:$0xf]
        %v201 = vld [vmem:[%s190 + $0x10] sm:$0xf]
        %v202 = vld [vmem:[%s190 + $0x14] sm:$0xf]
        %v203 = vld [vmem:[%s190 + $0x18] sm:$0xf]
        %v204 = vld [vmem:[%s190 + $0x1c] sm:$0xf]
        %v205 = vld [vmem:[%s190 + $0x20] sm:$0xf]
        %v206 = vld [vmem:[%s190 + $0x24] sm:$0xf]
        %v207 = vld [vmem:[%s190 + $0x28] sm:$0xf]
        %v208 = vld [vmem:[%s190 + $0x2c] sm:$0xf]
        %v209 = vld [vmem:[%s190 + $0x30] sm:$0xf]
        %v210 = vld [vmem:[%s190 + $0x34] sm:$0xf]
        %v211 = vld [vmem:[%s190 + $0x38] sm:$0xf]
        %v212 = vld [vmem:[%s190 + $0x3c] sm:$0xf]
        %v213 = vld [vmem:[%s190 + $0x40] sm:$0xf]
        %v214 = vld [vmem:[%s190 + $0x44] sm:$0xf]
        %v215 = vld [vmem:[%s190 + $0x48] sm:$0xf]
        %v216 = vld [vmem:[%s190 + $0x4c] sm:$0xf]
        %v217 = vld [vmem:[%s190 + $0x50] sm:$0xf]
        %v218 = vld [vmem:[%s190 + $0x54] sm:$0xf]
        %v219 = vld [vmem:[%s190 + $0x58] sm:$0xf]
        %v220 = vld [vmem:[%s190 + $0x5c] sm:$0xf]
        %v221 = vld [vmem:[%s190 + $0x60] sm:$0xf]
        %v222 = vld [vmem:[%s190 + $0x64] sm:$0xf]
        %v223 = vld [vmem:[%s190 + $0x68] sm:$0xf]
        %v224 = vld [vmem:[%s190 + $0x6c] sm:$0xf]
        %v225 = vld [vmem:[%s190 + $0x70] sm:$0xf]
        %v226 = vld [vmem:[%s190 + $0x74] sm:$0xf]
        %v227 = vld [vmem:[%s190 + $0x78] sm:$0xf]
        %v228 = vld [vmem:[%s190 + $0x7c] sm:$0xf]
        %v229 = vld [vmem:[%s190 + $0x80] sm:$0xf]
        %v230 = vld [vmem:[%s190 + $0x84] sm:$0xf]
        %v231 = vld [vmem:[%s190 + $0x88] sm:$0xf]
        %v232 = vld [vmem:[%s190 + $0x8c] sm:$0xf]
        %vm233 = vcmask 27648
        %234 = vst.msk [vmem:[#allocation2] sm:$0xf] %vm233, %v197
        %235 = vst.msk [vmem:[#allocation2 + $0x4] sm:$0xf] %vm233, %v198
        %236 = vst.msk [vmem:[#allocation2 + $0x8] sm:$0xf] %vm233, %v199
        %237 = vst.msk [vmem:[#allocation2 + $0xc] sm:$0xf] %vm233, %v200
        %238 = vst.msk [vmem:[#allocation2 + $0x10] sm:$0xf] %vm233, %v201
        %239 = vst.msk [vmem:[#allocation2 + $0x14] sm:$0xf] %vm233, %v202
        %240 = vst.msk [vmem:[#allocation2 + $0x18] sm:$0xf] %vm233, %v203
        %241 = vst.msk [vmem:[#allocation2 + $0x1c] sm:$0xf] %vm233, %v204
        %242 = vst.msk [vmem:[#allocation2 + $0x20] sm:$0xf] %vm233, %v205
        %243 = vst.msk [vmem:[#allocation2 + $0x24] sm:$0xf] %vm233, %v206
        %244 = vst.msk [vmem:[#allocation2 + $0x28] sm:$0xf] %vm233, %v207
        %245 = vst.msk [vmem:[#allocation2 + $0x2c] sm:$0xf] %vm233, %v208
        %246 = vst.msk [vmem:[#allocation2 + $0x30] sm:$0xf] %vm233, %v209
        %247 = vst.msk [vmem:[#allocation2 + $0x34] sm:$0xf] %vm233, %v210
        %248 = vst.msk [vmem:[#allocation2 + $0x38] sm:$0xf] %vm233, %v211
        %249 = vst.msk [vmem:[#allocation2 + $0x3c] sm:$0xf] %vm233, %v212
        %250 = vst.msk [vmem:[#allocation2 + $0x40] sm:$0xf] %vm233, %v213
        %251 = vst.msk [vmem:[#allocation2 + $0x44] sm:$0xf] %vm233, %v214
        %252 = vst.msk [vmem:[#allocation2 + $0x48] sm:$0xf] %vm233, %v215
        %253 = vst.msk [vmem:[#allocation2 + $0x4c] sm:$0xf] %vm233, %v216
        %254 = vst.msk [vmem:[#allocation2 + $0x50] sm:$0xf] %vm233, %v217
        %255 = vst.msk [vmem:[#allocation2 + $0x54] sm:$0xf] %vm233, %v218
        %256 = vst.msk [vmem:[#allocation2 + $0x58] sm:$0xf] %vm233, %v219
        %257 = vst.msk [vmem:[#allocation2 + $0x5c] sm:$0xf] %vm233, %v220
        %258 = vst.msk [vmem:[#allocation2 + $0x60] sm:$0xf] %vm233, %v221
        %259 = vst.msk [vmem:[#allocation2 + $0x64] sm:$0xf] %vm233, %v222
        %260 = vst.msk [vmem:[#allocation2 + $0x68] sm:$0xf] %vm233, %v223
        %261 = vst.msk [vmem:[#allocation2 + $0x6c] sm:$0xf] %vm233, %v224
        %262 = vst.msk [vmem:[#allocation2 + $0x70] sm:$0xf] %vm233, %v225
        %263 = vst.msk [vmem:[#allocation2 + $0x74] sm:$0xf] %vm233, %v226
        %264 = vst.msk [vmem:[#allocation2 + $0x78] sm:$0xf] %vm233, %v227
        %265 = vst.msk [vmem:[#allocation2 + $0x7c] sm:$0xf] %vm233, %v228
        %266 = vst.msk [vmem:[#allocation2 + $0x80] sm:$0xf] %vm233, %v229
        %267 = vst.msk [vmem:[#allocation2 + $0x84] sm:$0xf] %vm233, %v230
        %268 = vst.msk [vmem:[#allocation2 + $0x88] sm:$0xf] %vm233, %v231
        %269 = vst.msk [vmem:[#allocation2 + $0x8c] sm:$0xf] %vm233, %v232
        %v270 = vld [vmem:[%s190] sm:$0xf]
        %v271 = vld [vmem:[%s190 + $0x4] sm:$0xf]
        %v272 = vld [vmem:[%s190 + $0x8] sm:$0xf]
        %v273 = vld [vmem:[%s190 + $0xc] sm:$0xf]
        %v274 = vld [vmem:[%s190 + $0x10] sm:$0xf]
        %v275 = vld [vmem:[%s190 + $0x14] sm:$0xf]
        %v276 = vld [vmem:[%s190 + $0x18] sm:$0xf]
        %v277 = vld [vmem:[%s190 + $0x1c] sm:$0xf]
        %v278 = vld [vmem:[%s190 + $0x20] sm:$0xf]
        %v279 = vld [vmem:[%s190 + $0x24] sm:$0xf]
        %v280 = vld [vmem:[%s190 + $0x28] sm:$0xf]
        %v281 = vld [vmem:[%s190 + $0x2c] sm:$0xf]
        %v282 = vld [vmem:[%s190 + $0x30] sm:$0xf]
        %v283 = vld [vmem:[%s190 + $0x34] sm:$0xf]
        %v284 = vld [vmem:[%s190 + $0x38] sm:$0xf]
        %v285 = vld [vmem:[%s190 + $0x3c] sm:$0xf]
        %v286 = vld [vmem:[%s190 + $0x40] sm:$0xf]
        %v287 = vld [vmem:[%s190 + $0x44] sm:$0xf]
        %v288 = vld [vmem:[%s190 + $0x48] sm:$0xf]
        %v289 = vld [vmem:[%s190 + $0x4c] sm:$0xf]
        %v290 = vld [vmem:[%s190 + $0x50] sm:$0xf]
        %v291 = vld [vmem:[%s190 + $0x54] sm:$0xf]
        %v292 = vld [vmem:[%s190 + $0x58] sm:$0xf]
        %v293 = vld [vmem:[%s190 + $0x5c] sm:$0xf]
        %v294 = vld [vmem:[%s190 + $0x60] sm:$0xf]
        %v295 = vld [vmem:[%s190 + $0x64] sm:$0xf]
        %v296 = vld [vmem:[%s190 + $0x68] sm:$0xf]
        %v297 = vld [vmem:[%s190 + $0x6c] sm:$0xf]
        %v298 = vld [vmem:[%s190 + $0x70] sm:$0xf]
        %v299 = vld [vmem:[%s190 + $0x74] sm:$0xf]
        %v300 = vld [vmem:[%s190 + $0x78] sm:$0xf]
        %v301 = vld [vmem:[%s190 + $0x7c] sm:$0xf]
        %v302 = vld [vmem:[%s190 + $0x80] sm:$0xf]
        %v303 = vld [vmem:[%s190 + $0x84] sm:$0xf]
        %v304 = vld [vmem:[%s190 + $0x88] sm:$0xf]
        %v305 = vld [vmem:[%s190 + $0x8c] sm:$0xf]
        %v306 = vld [vmem:[%s190 + $0x90] sm:$0x1]
        %vm307 = vsmask.f32 3328
        %vm308 = vsmask.f32 7440
        %vm309 = vmor %vm307, %vm308
        %v311 = vshrl.u32 %v270, 16
        %v313 = vrot.slane %v311, 4
        %v314 = vshll.u32 %v270, 16
        %v316 = vrot.slane %v314, 5
        %v317 = vor.u32 %v313, %v316
        %v318 = vrot.slane %v317, 4
        %v320 = vshll.u32 %v271, 16
        %v322 = vrot.slane %v320, 5
        %v323 = vsel %vm309, %v318, %v322
        %v324 = vshrl.u32 %v271, 16
        %v326 = vrot.slane %v324, 4
        %v327 = vor.u32 %v326, %v322
        %v328 = vrot.slane %v327, 4
        %v330 = vshll.u32 %v272, 16
        %v332 = vrot.slane %v330, 5
        %v333 = vsel %vm309, %v328, %v332
        %v334 = vshrl.u32 %v272, 16
        %v336 = vrot.slane %v334, 4
        %v337 = vor.u32 %v336, %v332
        %v338 = vrot.slane %v337, 4
        %v340 = vshll.u32 %v273, 16
        %v342 = vrot.slane %v340, 5
        %v343 = vsel %vm309, %v338, %v342
        %v344 = vshrl.u32 %v273, 16
        %v346 = vrot.slane %v344, 4
        %v347 = vor.u32 %v346, %v342
        %v348 = vrot.slane %v347, 4
        %v350 = vshll.u32 %v274, 16
        %v352 = vrot.slane %v350, 5
        %v353 = vsel %vm309, %v348, %v352
        %v354 = vshrl.u32 %v274, 16
        %v356 = vrot.slane %v354, 4
        %v357 = vor.u32 %v356, %v352
        %v358 = vrot.slane %v357, 4
        %v360 = vshll.u32 %v275, 16
        %v362 = vrot.slane %v360, 5
        %v363 = vsel %vm309, %v358, %v362
        %v364 = vshrl.u32 %v275, 16
        %v366 = vrot.slane %v364, 4
        %v367 = vor.u32 %v366, %v362
        %v368 = vrot.slane %v367, 4
        %v370 = vshll.u32 %v276, 16
        %v372 = vrot.slane %v370, 5
        %v373 = vsel %vm309, %v368, %v372
        %v374 = vshrl.u32 %v276, 16
        %v376 = vrot.slane %v374, 4
        %v377 = vor.u32 %v376, %v372
        %v378 = vrot.slane %v377, 4
        %v380 = vshll.u32 %v277, 16
        %v382 = vrot.slane %v380, 5
        %v383 = vsel %vm309, %v378, %v382
        %v384 = vshrl.u32 %v277, 16
        %v386 = vrot.slane %v384, 4
        %v387 = vor.u32 %v386, %v382
        %v388 = vrot.slane %v387, 4
        %v390 = vshll.u32 %v278, 16
        %v392 = vrot.slane %v390, 5
        %v393 = vsel %vm309, %v388, %v392
        %v394 = vshrl.u32 %v278, 16
        %v396 = vrot.slane %v394, 4
        %v397 = vor.u32 %v396, %v392
        %v398 = vrot.slane %v397, 4
        %v400 = vshll.u32 %v279, 16
        %v402 = vrot.slane %v400, 5
        %v403 = vsel %vm309, %v398, %v402
        %v404 = vshrl.u32 %v279, 16
        %v406 = vrot.slane %v404, 4
        %v407 = vor.u32 %v406, %v402
        %v408 = vrot.slane %v407, 4
        %v410 = vshll.u32 %v280, 16
        %v412 = vrot.slane %v410, 5
        %v413 = vsel %vm309, %v408, %v412
        %v414 = vshrl.u32 %v280, 16
        %v416 = vrot.slane %v414, 4
        %v417 = vor.u32 %v416, %v412
        %v418 = vrot.slane %v417, 4
        %v420 = vshll.u32 %v281, 16
        %v422 = vrot.slane %v420, 5
        %v423 = vsel %vm309, %v418, %v422
        %v424 = vshrl.u32 %v281, 16
        %v426 = vrot.slane %v424, 4
        %v427 = vor.u32 %v426, %v422
        %v428 = vrot.slane %v427, 4
        %v430 = vshll.u32 %v282, 16
        %v432 = vrot.slane %v430, 5
        %v433 = vsel %vm309, %v428, %v432
        %v434 = vshrl.u32 %v282, 16
        %v436 = vrot.slane %v434, 4
        %v437 = vor.u32 %v436, %v432
        %v438 = vrot.slane %v437, 4
        %v440 = vshll.u32 %v283, 16
        %v442 = vrot.slane %v440, 5
        %v443 = vsel %vm309, %v438, %v442
        %v444 = vshrl.u32 %v283, 16
        %v446 = vrot.slane %v444, 4
        %v447 = vor.u32 %v446, %v442
        %v448 = vrot.slane %v447, 4
        %v450 = vshll.u32 %v284, 16
        %v452 = vrot.slane %v450, 5
        %v453 = vsel %vm309, %v448, %v452
        %v454 = vshrl.u32 %v284, 16
        %v456 = vrot.slane %v454, 4
        %v457 = vor.u32 %v456, %v452
        %v458 = vrot.slane %v457, 4
        %v460 = vshll.u32 %v285, 16
        %v462 = vrot.slane %v460, 5
        %v463 = vsel %vm309, %v458, %v462
        %v464 = vshrl.u32 %v285, 16
        %v466 = vrot.slane %v464, 4
        %v467 = vor.u32 %v466, %v462
        %v468 = vrot.slane %v467, 4
        %v470 = vshll.u32 %v286, 16
        %v472 = vrot.slane %v470, 5
        %v473 = vsel %vm309, %v468, %v472
        %v474 = vshrl.u32 %v286, 16
        %v476 = vrot.slane %v474, 4
        %v477 = vor.u32 %v476, %v472
        %v478 = vrot.slane %v477, 4
        %v480 = vshll.u32 %v287, 16
        %v482 = vrot.slane %v480, 5
        %v483 = vsel %vm309, %v478, %v482
        %v484 = vshrl.u32 %v287, 16
        %v486 = vrot.slane %v484, 4
        %v487 = vor.u32 %v486, %v482
        %v488 = vrot.slane %v487, 4
        %v490 = vshll.u32 %v288, 16
        %v492 = vrot.slane %v490, 5
        %v493 = vsel %vm309, %v488, %v492
        %v494 = vshrl.u32 %v288, 16
        %v496 = vrot.slane %v494, 4
        %v497 = vor.u32 %v496, %v492
        %v498 = vrot.slane %v497, 4
        %v500 = vshll.u32 %v289, 16
        %v502 = vrot.slane %v500, 5
        %v503 = vsel %vm309, %v498, %v502
        %v504 = vshrl.u32 %v289, 16
        %v506 = vrot.slane %v504, 4
        %v507 = vor.u32 %v506, %v502
        %v508 = vrot.slane %v507, 4
        %v510 = vshll.u32 %v290, 16
        %v512 = vrot.slane %v510, 5
        %v513 = vsel %vm309, %v508, %v512
        %v514 = vshrl.u32 %v290, 16
        %v516 = vrot.slane %v514, 4
        %v517 = vor.u32 %v516, %v512
        %v518 = vrot.slane %v517, 4
        %v520 = vshll.u32 %v291, 16
        %v522 = vrot.slane %v520, 5
        %v523 = vsel %vm309, %v518, %v522
        %v524 = vshrl.u32 %v291, 16
        %v526 = vrot.slane %v524, 4
        %v527 = vor.u32 %v526, %v522
        %v528 = vrot.slane %v527, 4
        %v530 = vshll.u32 %v292, 16
        %v532 = vrot.slane %v530, 5
        %v533 = vsel %vm309, %v528, %v532
        %v534 = vshrl.u32 %v292, 16
        %v536 = vrot.slane %v534, 4
        %v537 = vor.u32 %v536, %v532
        %v538 = vrot.slane %v537, 4
        %v540 = vshll.u32 %v293, 16
        %v542 = vrot.slane %v540, 5
        %v543 = vsel %vm309, %v538, %v542
        %v544 = vshrl.u32 %v293, 16
        %v546 = vrot.slane %v544, 4
        %v547 = vor.u32 %v546, %v542
        %v548 = vrot.slane %v547, 4
        %v550 = vshll.u32 %v294, 16
        %v552 = vrot.slane %v550, 5
        %v553 = vsel %vm309, %v548, %v552
        %v554 = vshrl.u32 %v294, 16
        %v556 = vrot.slane %v554, 4
        %v557 = vor.u32 %v556, %v552
        %v558 = vrot.slane %v557, 4
        %v560 = vshll.u32 %v295, 16
        %v562 = vrot.slane %v560, 5
        %v563 = vsel %vm309, %v558, %v562
        %v564 = vshrl.u32 %v295, 16
        %v566 = vrot.slane %v564, 4
        %v567 = vor.u32 %v566, %v562
        %v568 = vrot.slane %v567, 4
        %v570 = vshll.u32 %v296, 16
        %v572 = vrot.slane %v570, 5
        %v573 = vsel %vm309, %v568, %v572
        %v574 = vshrl.u32 %v296, 16
        %v576 = vrot.slane %v574, 4
        %v577 = vor.u32 %v576, %v572
        %v578 = vrot.slane %v577, 4
        %v580 = vshll.u32 %v297, 16
        %v582 = vrot.slane %v580, 5
        %v583 = vsel %vm309, %v578, %v582
        %v584 = vshrl.u32 %v297, 16
        %v586 = vrot.slane %v584, 4
        %v587 = vor.u32 %v586, %v582
        %v588 = vrot.slane %v587, 4
        %v590 = vshll.u32 %v298, 16
        %v592 = vrot.slane %v590, 5
        %v593 = vsel %vm309, %v588, %v592
        %v594 = vshrl.u32 %v298, 16
        %v596 = vrot.slane %v594, 4
        %v597 = vor.u32 %v596, %v592
        %v598 = vrot.slane %v597, 4
        %v600 = vshll.u32 %v299, 16
        %v602 = vrot.slane %v600, 5
        %v603 = vsel %vm309, %v598, %v602
        %v604 = vshrl.u32 %v299, 16
        %v606 = vrot.slane %v604, 4
        %v607 = vor.u32 %v606, %v602
        %v608 = vrot.slane %v607, 4
        %v610 = vshll.u32 %v300, 16
        %v612 = vrot.slane %v610, 5
        %v613 = vsel %vm309, %v608, %v612
        %v614 = vshrl.u32 %v300, 16
        %v616 = vrot.slane %v614, 4
        %v617 = vor.u32 %v616, %v612
        %v618 = vrot.slane %v617, 4
        %v620 = vshll.u32 %v301, 16
        %v622 = vrot.slane %v620, 5
        %v623 = vsel %vm309, %v618, %v622
        %v624 = vshrl.u32 %v301, 16
        %v626 = vrot.slane %v624, 4
        %v627 = vor.u32 %v626, %v622
        %v628 = vrot.slane %v627, 4
        %v630 = vshll.u32 %v302, 16
        %v632 = vrot.slane %v630, 5
        %v633 = vsel %vm309, %v628, %v632
        %v634 = vshrl.u32 %v302, 16
        %v636 = vrot.slane %v634, 4
        %v637 = vor.u32 %v636, %v632
        %v638 = vrot.slane %v637, 4
        %v640 = vshll.u32 %v303, 16
        %v642 = vrot.slane %v640, 5
        %v643 = vsel %vm309, %v638, %v642
        %v644 = vshrl.u32 %v303, 16
        %v646 = vrot.slane %v644, 4
        %v647 = vor.u32 %v646, %v642
        %v648 = vrot.slane %v647, 4
        %v650 = vshll.u32 %v304, 16
        %v652 = vrot.slane %v650, 5
        %v653 = vsel %vm309, %v648, %v652
        %v654 = vshrl.u32 %v304, 16
        %v656 = vrot.slane %v654, 4
        %v657 = vor.u32 %v656, %v652
        %v658 = vrot.slane %v657, 4
        %v660 = vshll.u32 %v305, 16
        %v662 = vrot.slane %v660, 5
        %v663 = vsel %vm309, %v658, %v662
        %v664 = vshrl.u32 %v305, 16
        %v666 = vrot.slane %v664, 4
        %v667 = vor.u32 %v666, %v662
        %v668 = vrot.slane %v667, 4
        %v670 = vshll.u32 %v306, 16
        %v672 = vrot.slane %v670, 5
        %v673 = vsel %vm309, %v668, %v672
        %674 = vrot.lane.b32.xlu0 %v323, 4
        %v675 = vpop.permute.xlu0 %674
        %676 = vrot.lane.b32.xlu0 %v333, 4
        %v677 = vpop.permute.xlu0 %676
        %678 = vrot.lane.b32.xlu0 %v343, 4
        %v679 = vpop.permute.xlu0 %678
        %680 = vrot.lane.b32.xlu0 %v353, 4
        %v681 = vpop.permute.xlu0 %680
        %682 = vrot.lane.b32.xlu0 %v363, 4
        %v683 = vpop.permute.xlu0 %682
        %684 = vrot.lane.b32.xlu0 %v373, 4
        %v685 = vpop.permute.xlu0 %684
        %686 = vrot.lane.b32.xlu0 %v383, 4
        %v687 = vpop.permute.xlu0 %686
        %688 = vrot.lane.b32.xlu0 %v393, 4
        %v689 = vpop.permute.xlu0 %688
        %690 = vrot.lane.b32.xlu0 %v403, 4
        %v691 = vpop.permute.xlu0 %690
        %692 = vrot.lane.b32.xlu0 %v413, 4
        %v693 = vpop.permute.xlu0 %692
        %694 = vrot.lane.b32.xlu0 %v423, 4
        %v695 = vpop.permute.xlu0 %694
        %696 = vrot.lane.b32.xlu0 %v433, 4
        %v697 = vpop.permute.xlu0 %696
        %698 = vrot.lane.b32.xlu0 %v443, 4
        %v699 = vpop.permute.xlu0 %698
        %700 = vrot.lane.b32.xlu0 %v453, 4
        %v701 = vpop.permute.xlu0 %700
        %702 = vrot.lane.b32.xlu0 %v463, 4
        %v703 = vpop.permute.xlu0 %702
        %704 = vrot.lane.b32.xlu0 %v473, 4
        %v705 = vpop.permute.xlu0 %704
        %706 = vrot.lane.b32.xlu0 %v483, 4
        %v707 = vpop.permute.xlu0 %706
        %708 = vrot.lane.b32.xlu0 %v493, 4
        %v709 = vpop.permute.xlu0 %708
        %710 = vrot.lane.b32.xlu0 %v503, 4
        %v711 = vpop.permute.xlu0 %710
        %712 = vrot.lane.b32.xlu0 %v513, 4
        %v713 = vpop.permute.xlu0 %712
        %714 = vrot.lane.b32.xlu0 %v523, 4
        %v715 = vpop.permute.xlu0 %714
        %716 = vrot.lane.b32.xlu0 %v533, 4
        %v717 = vpop.permute.xlu0 %716
        %718 = vrot.lane.b32.xlu0 %v543, 4
        %v719 = vpop.permute.xlu0 %718
        %720 = vrot.lane.b32.xlu0 %v553, 4
        %v721 = vpop.permute.xlu0 %720
        %722 = vrot.lane.b32.xlu0 %v563, 4
        %v723 = vpop.permute.xlu0 %722
        %724 = vrot.lane.b32.xlu0 %v573, 4
        %v725 = vpop.permute.xlu0 %724
        %726 = vrot.lane.b32.xlu0 %v583, 4
        %v727 = vpop.permute.xlu0 %726
        %728 = vrot.lane.b32.xlu0 %v593, 4
        %v729 = vpop.permute.xlu0 %728
        %730 = vrot.lane.b32.xlu0 %v603, 4
        %v731 = vpop.permute.xlu0 %730
        %732 = vrot.lane.b32.xlu0 %v613, 4
        %v733 = vpop.permute.xlu0 %732
        %734 = vrot.lane.b32.xlu0 %v623, 4
        %v735 = vpop.permute.xlu0 %734
        %736 = vrot.lane.b32.xlu0 %v633, 4
        %v737 = vpop.permute.xlu0 %736
        %738 = vrot.lane.b32.xlu0 %v643, 4
        %v739 = vpop.permute.xlu0 %738
        %740 = vrot.lane.b32.xlu0 %v653, 4
        %v741 = vpop.permute.xlu0 %740
        %742 = vrot.lane.b32.xlu0 %v663, 4
        %v743 = vpop.permute.xlu0 %742
        %744 = vrot.lane.b32.xlu0 %v673, 4
        %v745 = vpop.permute.xlu0 %744
        %vm782 = vcmask 60448
        %783 = vst.msk [vmem:[#allocation2] sm:$0xf] %vm782, %v675
        %784 = vst.msk [vmem:[#allocation2 + $0x4] sm:$0xf] %vm782, %v677
        %785 = vst.msk [vmem:[#allocation2 + $0x8] sm:$0xf] %vm782, %v679
        %786 = vst.msk [vmem:[#allocation2 + $0xc] sm:$0xf] %vm782, %v681
        %787 = vst.msk [vmem:[#allocation2 + $0x10] sm:$0xf] %vm782, %v683
        %788 = vst.msk [vmem:[#allocation2 + $0x14] sm:$0xf] %vm782, %v685
        %789 = vst.msk [vmem:[#allocation2 + $0x18] sm:$0xf] %vm782, %v687
        %790 = vst.msk [vmem:[#allocation2 + $0x1c] sm:$0xf] %vm782, %v689
        %791 = vst.msk [vmem:[#allocation2 + $0x20] sm:$0xf] %vm782, %v691
        %792 = vst.msk [vmem:[#allocation2 + $0x24] sm:$0xf] %vm782, %v693
        %793 = vst.msk [vmem:[#allocation2 + $0x28] sm:$0xf] %vm782, %v695
        %794 = vst.msk [vmem:[#allocation2 + $0x2c] sm:$0xf] %vm782, %v697
        %795 = vst.msk [vmem:[#allocation2 + $0x30] sm:$0xf] %vm782, %v699
        %796 = vst.msk [vmem:[#allocation2 + $0x34] sm:$0xf] %vm782, %v701
        %797 = vst.msk [vmem:[#allocation2 + $0x38] sm:$0xf] %vm782, %v703
        %798 = vst.msk [vmem:[#allocation2 + $0x3c] sm:$0xf] %vm782, %v705
        %799 = vst.msk [vmem:[#allocation2 + $0x40] sm:$0xf] %vm782, %v707
        %800 = vst.msk [vmem:[#allocation2 + $0x44] sm:$0xf] %vm782, %v709
        %801 = vst.msk [vmem:[#allocation2 + $0x48] sm:$0xf] %vm782, %v711
        %802 = vst.msk [vmem:[#allocation2 + $0x4c] sm:$0xf] %vm782, %v713
        %803 = vst.msk [vmem:[#allocation2 + $0x50] sm:$0xf] %vm782, %v715
        %804 = vst.msk [vmem:[#allocation2 + $0x54] sm:$0xf] %vm782, %v717
        %805 = vst.msk [vmem:[#allocation2 + $0x58] sm:$0xf] %vm782, %v719
        %806 = vst.msk [vmem:[#allocation2 + $0x5c] sm:$0xf] %vm782, %v721
        %807 = vst.msk [vmem:[#allocation2 + $0x60] sm:$0xf] %vm782, %v723
        %808 = vst.msk [vmem:[#allocation2 + $0x64] sm:$0xf] %vm782, %v725
        %809 = vst.msk [vmem:[#allocation2 + $0x68] sm:$0xf] %vm782, %v727
        %810 = vst.msk [vmem:[#allocation2 + $0x6c] sm:$0xf] %vm782, %v729
        %811 = vst.msk [vmem:[#allocation2 + $0x70] sm:$0xf] %vm782, %v731
        %812 = vst.msk [vmem:[#allocation2 + $0x74] sm:$0xf] %vm782, %v733
        %813 = vst.msk [vmem:[#allocation2 + $0x78] sm:$0xf] %vm782, %v735
        %814 = vst.msk [vmem:[#allocation2 + $0x7c] sm:$0xf] %vm782, %v737
        %815 = vst.msk [vmem:[#allocation2 + $0x80] sm:$0xf] %vm782, %v739
        %816 = vst.msk [vmem:[#allocation2 + $0x84] sm:$0xf] %vm782, %v741
        %817 = vst.msk [vmem:[#allocation2 + $0x88] sm:$0xf] %vm782, %v743
        %818 = vst.msk [vmem:[#allocation2 + $0x8c] sm:$0xf] %vm782, %v745
        %v819 = vld [vmem:[%s190] sm:$0xe]
        %v820 = vld [vmem:[%s190 + $0x4] sm:$0xf]
        %v821 = vld [vmem:[%s190 + $0x8] sm:$0xf]
        %v822 = vld [vmem:[%s190 + $0xc] sm:$0xf]
        %v823 = vld [vmem:[%s190 + $0x10] sm:$0xf]
        %v824 = vld [vmem:[%s190 + $0x14] sm:$0xf]
        %v825 = vld [vmem:[%s190 + $0x18] sm:$0xf]
        %v826 = vld [vmem:[%s190 + $0x1c] sm:$0xf]
        %v827 = vld [vmem:[%s190 + $0x20] sm:$0xf]
        %v828 = vld [vmem:[%s190 + $0x24] sm:$0xf]
        %v829 = vld [vmem:[%s190 + $0x28] sm:$0xf]
        %v830 = vld [vmem:[%s190 + $0x2c] sm:$0xf]
        %v831 = vld [vmem:[%s190 + $0x30] sm:$0xf]
        %v832 = vld [vmem:[%s190 + $0x34] sm:$0xf]
        %v833 = vld [vmem:[%s190 + $0x38] sm:$0xf]
        %v834 = vld [vmem:[%s190 + $0x3c] sm:$0xf]
        %v835 = vld [vmem:[%s190 + $0x40] sm:$0xf]
        %v836 = vld [vmem:[%s190 + $0x44] sm:$0xf]
        %v837 = vld [vmem:[%s190 + $0x48] sm:$0xf]
        %v838 = vld [vmem:[%s190 + $0x4c] sm:$0xf]
        %v839 = vld [vmem:[%s190 + $0x50] sm:$0xf]
        %v840 = vld [vmem:[%s190 + $0x54] sm:$0xf]
        %v841 = vld [vmem:[%s190 + $0x58] sm:$0xf]
        %v842 = vld [vmem:[%s190 + $0x5c] sm:$0xf]
        %v843 = vld [vmem:[%s190 + $0x60] sm:$0xf]
        %v844 = vld [vmem:[%s190 + $0x64] sm:$0xf]
        %v845 = vld [vmem:[%s190 + $0x68] sm:$0xf]
        %v846 = vld [vmem:[%s190 + $0x6c] sm:$0xf]
        %v847 = vld [vmem:[%s190 + $0x70] sm:$0xf]
        %v848 = vld [vmem:[%s190 + $0x74] sm:$0xf]
        %v849 = vld [vmem:[%s190 + $0x78] sm:$0xf]
        %v850 = vld [vmem:[%s190 + $0x7c] sm:$0xf]
        %v851 = vld [vmem:[%s190 + $0x80] sm:$0xf]
        %v852 = vld [vmem:[%s190 + $0x84] sm:$0xf]
        %v853 = vld [vmem:[%s190 + $0x88] sm:$0xf]
        %v854 = vld [vmem:[%s190 + $0x8c] sm:$0xf]
        %v855 = vld [vmem:[%s190 + $0x90] sm:$0x1]
        %vm893 = vcmask 1042432
        %vm894 = vcmask 1046532
        %vm895 = vmor %vm893, %vm894
        %v896 = vrot.slane %v819, 5
        %v897 = vrot.slane %v896, 4
        %v898 = vrot.slane %v820, 5
        %v899 = vsel %vm895, %v897, %v898
        %v900 = vrot.slane %v898, 4
        %v901 = vrot.slane %v821, 5
        %v902 = vsel %vm895, %v900, %v901
        %v903 = vrot.slane %v901, 4
        %v904 = vrot.slane %v822, 5
        %v905 = vsel %vm895, %v903, %v904
        %v906 = vrot.slane %v904, 4
        %v907 = vrot.slane %v823, 5
        %v908 = vsel %vm895, %v906, %v907
        %v909 = vrot.slane %v907, 4
        %v910 = vrot.slane %v824, 5
        %v911 = vsel %vm895, %v909, %v910
        %v912 = vrot.slane %v910, 4
        %v913 = vrot.slane %v825, 5
        %v914 = vsel %vm895, %v912, %v913
        %v915 = vrot.slane %v913, 4
        %v916 = vrot.slane %v826, 5
        %v917 = vsel %vm895, %v915, %v916
        %v918 = vrot.slane %v916, 4
        %v919 = vrot.slane %v827, 5
        %v920 = vsel %vm895, %v918, %v919
        %v921 = vrot.slane %v919, 4
        %v922 = vrot.slane %v828, 5
        %v923 = vsel %vm895, %v921, %v922
        %v924 = vrot.slane %v922, 4
        %v925 = vrot.slane %v829, 5
        %v926 = vsel %vm895, %v924, %v925
        %v927 = vrot.slane %v925, 4
        %v928 = vrot.slane %v830, 5
        %v929 = vsel %vm895, %v927, %v928
        %v930 = vrot.slane %v928, 4
        %v931 = vrot.slane %v831, 5
        %v932 = vsel %vm895, %v930, %v931
        %v933 = vrot.slane %v931, 4
        %v934 = vrot.slane %v832, 5
        %v935 = vsel %vm895, %v933, %v934
        %v936 = vrot.slane %v934, 4
        %v937 = vrot.slane %v833, 5
        %v938 = vsel %vm895, %v936, %v937
        %v939 = vrot.slane %v937, 4
        %v940 = vrot.slane %v834, 5
        %v941 = vsel %vm895, %v939, %v940
        %v942 = vrot.slane %v940, 4
        %v943 = vrot.slane %v835, 5
        %v944 = vsel %vm895, %v942, %v943
        %v945 = vrot.slane %v943, 4
        %v946 = vrot.slane %v836, 5
        %v947 = vsel %vm895, %v945, %v946
        %v948 = vrot.slane %v946, 4
        %v949 = vrot.slane %v837, 5
        %v950 = vsel %vm895, %v948, %v949
        %v951 = vrot.slane %v949, 4
        %v952 = vrot.slane %v838, 5
        %v953 = vsel %vm895, %v951, %v952
        %v954 = vrot.slane %v952, 4
        %v955 = vrot.slane %v839, 5
        %v956 = vsel %vm895, %v954, %v955
        %v957 = vrot.slane %v955, 4
        %v958 = vrot.slane %v840, 5
        %v959 = vsel %vm895, %v957, %v958
        %v960 = vrot.slane %v958, 4
        %v961 = vrot.slane %v841, 5
        %v962 = vsel %vm895, %v960, %v961
        %v963 = vrot.slane %v961, 4
        %v964 = vrot.slane %v842, 5
        %v965 = vsel %vm895, %v963, %v964
        %v966 = vrot.slane %v964, 4
        %v967 = vrot.slane %v843, 5
        %v968 = vsel %vm895, %v966, %v967
        %v969 = vrot.slane %v967, 4
        %v970 = vrot.slane %v844, 5
        %v971 = vsel %vm895, %v969, %v970
        %v972 = vrot.slane %v970, 4
        %v973 = vrot.slane %v845, 5
        %v974 = vsel %vm895, %v972, %v973
        %v975 = vrot.slane %v973, 4
        %v976 = vrot.slane %v846, 5
        %v977 = vsel %vm895, %v975, %v976
        %v978 = vrot.slane %v976, 4
        %v979 = vrot.slane %v847, 5
        %v980 = vsel %vm895, %v978, %v979
        %v981 = vrot.slane %v979, 4
        %v982 = vrot.slane %v848, 5
        %v983 = vsel %vm895, %v981, %v982
        %v984 = vrot.slane %v982, 4
        %v985 = vrot.slane %v849, 5
        %v986 = vsel %vm895, %v984, %v985
        %v987 = vrot.slane %v985, 4
        %v988 = vrot.slane %v850, 5
        %v989 = vsel %vm895, %v987, %v988
        %v990 = vrot.slane %v988, 4
        %v991 = vrot.slane %v851, 5
        %v992 = vsel %vm895, %v990, %v991
        %v993 = vrot.slane %v991, 4
        %v994 = vrot.slane %v852, 5
        %v995 = vsel %vm895, %v993, %v994
        %v996 = vrot.slane %v994, 4
        %v997 = vrot.slane %v853, 5
        %v998 = vsel %vm895, %v996, %v997
        %v999 = vrot.slane %v997, 4
        %v1000 = vrot.slane %v854, 5
        %v1001 = vsel %vm895, %v999, %v1000
        %v1002 = vrot.slane %v1000, 4
        %v1003 = vrot.slane %v855, 5
        %v1004 = vsel %vm895, %v1002, %v1003
        %1005 = vrot.lane.b32.xlu0 %v899, 8
        %v1006 = vpop.permute.xlu0 %1005
        %1007 = vrot.lane.b32.xlu0 %v902, 8
        %v1008 = vpop.permute.xlu0 %1007
        %1009 = vrot.lane.b32.xlu0 %v905, 8
        %v1010 = vpop.permute.xlu0 %1009
        %1011 = vrot.lane.b32.xlu0 %v908, 8
        %v1012 = vpop.permute.xlu0 %1011
        %1013 = vrot.lane.b32.xlu0 %v911, 8
        %v1014 = vpop.permute.xlu0 %1013
        %1015 = vrot.lane.b32.xlu0 %v914, 8
        %v1016 = vpop.permute.xlu0 %1015
        %1017 = vrot.lane.b32.xlu0 %v917, 8
        %v1018 = vpop.permute.xlu0 %1017
        %1019 = vrot.lane.b32.xlu0 %v920, 8
        %v1020 = vpop.permute.xlu0 %1019
        %1021 = vrot.lane.b32.xlu0 %v923, 8
        %v1022 = vpop.permute.xlu0 %1021
        %1023 = vrot.lane.b32.xlu0 %v926, 8
        %v1024 = vpop.permute.xlu0 %1023
        %1025 = vrot.lane.b32.xlu0 %v929, 8
        %v1026 = vpop.permute.xlu0 %1025
        %1027 = vrot.lane.b32.xlu0 %v932, 8
        %v1028 = vpop.permute.xlu0 %1027
        %1029 = vrot.lane.b32.xlu0 %v935, 8
        %v1030 = vpop.permute.xlu0 %1029
        %1031 = vrot.lane.b32.xlu0 %v938, 8
        %v1032 = vpop.permute.xlu0 %1031
        %1033 = vrot.lane.b32.xlu0 %v941, 8
        %v1034 = vpop.permute.xlu0 %1033
        %1035 = vrot.lane.b32.xlu0 %v944, 8
        %v1036 = vpop.permute.xlu0 %1035
        %1037 = vrot.lane.b32.xlu0 %v947, 8
        %v1038 = vpop.permute.xlu0 %1037
        %1039 = vrot.lane.b32.xlu0 %v950, 8
        %v1040 = vpop.permute.xlu0 %1039
        %1041 = vrot.lane.b32.xlu0 %v953, 8
        %v1042 = vpop.permute.xlu0 %1041
        %1043 = vrot.lane.b32.xlu0 %v956, 8
        %v1044 = vpop.permute.xlu0 %1043
        %1045 = vrot.lane.b32.xlu0 %v959, 8
        %v1046 = vpop.permute.xlu0 %1045
        %1047 = vrot.lane.b32.xlu0 %v962, 8
        %v1048 = vpop.permute.xlu0 %1047
        %1049 = vrot.lane.b32.xlu0 %v965, 8
        %v1050 = vpop.permute.xlu0 %1049
        %1051 = vrot.lane.b32.xlu0 %v968, 8
        %v1052 = vpop.permute.xlu0 %1051
        %1053 = vrot.lane.b32.xlu0 %v971, 8
        %v1054 = vpop.permute.xlu0 %1053
        %1055 = vrot.lane.b32.xlu0 %v974, 8
        %v1056 = vpop.permute.xlu0 %1055
        %1057 = vrot.lane.b32.xlu0 %v977, 8
        %v1058 = vpop.permute.xlu0 %1057
        %1059 = vrot.lane.b32.xlu0 %v980, 8
        %v1060 = vpop.permute.xlu0 %1059
        %1061 = vrot.lane.b32.xlu0 %v983, 8
        %v1062 = vpop.permute.xlu0 %1061
        %1063 = vrot.lane.b32.xlu0 %v986, 8
        %v1064 = vpop.permute.xlu0 %1063
        %1065 = vrot.lane.b32.xlu0 %v989, 8
        %v1066 = vpop.permute.xlu0 %1065
        %1067 = vrot.lane.b32.xlu0 %v992, 8
        %v1068 = vpop.permute.xlu0 %1067
        %1069 = vrot.lane.b32.xlu0 %v995, 8
        %v1070 = vpop.permute.xlu0 %1069
        %1071 = vrot.lane.b32.xlu0 %v998, 8
        %v1072 = vpop.permute.xlu0 %1071
        %1073 = vrot.lane.b32.xlu0 %v1001, 8
        %v1074 = vpop.permute.xlu0 %1073
        %1075 = vrot.lane.b32.xlu0 %v1004, 8
        %v1076 = vpop.permute.xlu0 %1075
        %vm1113 = vcmask 93248
        %1114 = vst.msk [vmem:[#allocation2] sm:$0xf] %vm1113, %v1006
        %1115 = vst.msk [vmem:[#allocation2 + $0x4] sm:$0xf] %vm1113, %v1008
        %1116 = vst.msk [vmem:[#allocation2 + $0x8] sm:$0xf] %vm1113, %v1010
        %1117 = vst.msk [vmem:[#allocation2 + $0xc] sm:$0xf] %vm1113, %v1012
        %1118 = vst.msk [vmem:[#allocation2 + $0x10] sm:$0xf] %vm1113, %v1014
        %1119 = vst.msk [vmem:[#allocation2 + $0x14] sm:$0xf] %vm1113, %v1016
        %1120 = vst.msk [vmem:[#allocation2 + $0x18] sm:$0xf] %vm1113, %v1018
        %1121 = vst.msk [vmem:[#allocation2 + $0x1c] sm:$0xf] %vm1113, %v1020
        %1122 = vst.msk [vmem:[#allocation2 + $0x20] sm:$0xf] %vm1113, %v1022
        %1123 = vst.msk [vmem:[#allocation2 + $0x24] sm:$0xf] %vm1113, %v1024
        %1124 = vst.msk [vmem:[#allocation2 + $0x28] sm:$0xf] %vm1113, %v1026
        %1125 = vst.msk [vmem:[#allocation2 + $0x2c] sm:$0xf] %vm1113, %v1028
        %1126 = vst.msk [vmem:[#allocation2 + $0x30] sm:$0xf] %vm1113, %v1030
        %1127 = vst.msk [vmem:[#allocation2 + $0x34] sm:$0xf] %vm1113, %v1032
        %1128 = vst.msk [vmem:[#allocation2 + $0x38] sm:$0xf] %vm1113, %v1034
        %1129 = vst.msk [vmem:[#allocation2 + $0x3c] sm:$0xf] %vm1113, %v1036
        %1130 = vst.msk [vmem:[#allocation2 + $0x40] sm:$0xf] %vm1113, %v1038
        %1131 = vst.msk [vmem:[#allocation2 + $0x44] sm:$0xf] %vm1113, %v1040
        %1132 = vst.msk [vmem:[#allocation2 + $0x48] sm:$0xf] %vm1113, %v1042
        %1133 = vst.msk [vmem:[#allocation2 + $0x4c] sm:$0xf] %vm1113, %v1044
        %1134 = vst.msk [vmem:[#allocation2 + $0x50] sm:$0xf] %vm1113, %v1046
        %1135 = vst.msk [vmem:[#allocation2 + $0x54] sm:$0xf] %vm1113, %v1048
        %1136 = vst.msk [vmem:[#allocation2 + $0x58] sm:$0xf] %vm1113, %v1050
        %1137 = vst.msk [vmem:[#allocation2 + $0x5c] sm:$0xf] %vm1113, %v1052
        %1138 = vst.msk [vmem:[#allocation2 + $0x60] sm:$0xf] %vm1113, %v1054
        %1139 = vst.msk [vmem:[#allocation2 + $0x64] sm:$0xf] %vm1113, %v1056
        %1140 = vst.msk [vmem:[#allocation2 + $0x68] sm:$0xf] %vm1113, %v1058
        %1141 = vst.msk [vmem:[#allocation2 + $0x6c] sm:$0xf] %vm1113, %v1060
        %1142 = vst.msk [vmem:[#allocation2 + $0x70] sm:$0xf] %vm1113, %v1062
        %1143 = vst.msk [vmem:[#allocation2 + $0x74] sm:$0xf] %vm1113, %v1064
        %1144 = vst.msk [vmem:[#allocation2 + $0x78] sm:$0xf] %vm1113, %v1066
        %1145 = vst.msk [vmem:[#allocation2 + $0x7c] sm:$0xf] %vm1113, %v1068
        %1146 = vst.msk [vmem:[#allocation2 + $0x80] sm:$0xf] %vm1113, %v1070
        %1147 = vst.msk [vmem:[#allocation2 + $0x84] sm:$0xf] %vm1113, %v1072
        %1148 = vst.msk [vmem:[#allocation2 + $0x88] sm:$0xf] %vm1113, %v1074
        %1149 = vst.msk [vmem:[#allocation2 + $0x8c] sm:$0xf] %vm1113, %v1076
        %v1150 = vld [vmem:[%s190 + $0x8] sm:$0xe]
        %v1151 = vld [vmem:[%s190 + $0xc] sm:$0xf]
        %v1152 = vld [vmem:[%s190 + $0x10] sm:$0xf]
        %v1153 = vld [vmem:[%s190 + $0x14] sm:$0xf]
        %v1154 = vld [vmem:[%s190 + $0x18] sm:$0xf]
        %v1155 = vld [vmem:[%s190 + $0x1c] sm:$0xf]
        %v1156 = vld [vmem:[%s190 + $0x20] sm:$0xf]
        %v1157 = vld [vmem:[%s190 + $0x24] sm:$0xf]
        %v1158 = vld [vmem:[%s190 + $0x28] sm:$0xf]
        %v1159 = vld [vmem:[%s190 + $0x2c] sm:$0xf]
        %v1160 = vld [vmem:[%s190 + $0x30] sm:$0xf]
        %v1161 = vld [vmem:[%s190 + $0x34] sm:$0xf]
        %v1162 = vld [vmem:[%s190 + $0x38] sm:$0xf]
        %v1163 = vld [vmem:[%s190 + $0x3c] sm:$0xf]
        %v1164 = vld [vmem:[%s190 + $0x40] sm:$0xf]
        %v1165 = vld [vmem:[%s190 + $0x44] sm:$0xf]
        %v1166 = vld [vmem:[%s190 + $0x48] sm:$0xf]
        %v1167 = vld [vmem:[%s190 + $0x4c] sm:$0xf]
        %v1168 = vld [vmem:[%s190 + $0x50] sm:$0xf]
        %v1169 = vld [vmem:[%s190 + $0x54] sm:$0xf]
        %v1170 = vld [vmem:[%s190 + $0x58] sm:$0xf]
        %v1171 = vld [vmem:[%s190 + $0x5c] sm:$0xf]
        %v1172 = vld [vmem:[%s190 + $0x60] sm:$0xf]
        %v1173 = vld [vmem:[%s190 + $0x64] sm:$0xf]
        %v1174 = vld [vmem:[%s190 + $0x68] sm:$0xf]
        %v1175 = vld [vmem:[%s190 + $0x6c] sm:$0xf]
        %v1176 = vld [vmem:[%s190 + $0x70] sm:$0xf]
        %v1177 = vld [vmem:[%s190 + $0x74] sm:$0xf]
        %v1178 = vld [vmem:[%s190 + $0x78] sm:$0xf]
        %v1179 = vld [vmem:[%s190 + $0x7c] sm:$0xf]
        %v1180 = vld [vmem:[%s190 + $0x80] sm:$0xf]
        %v1181 = vld [vmem:[%s190 + $0x84] sm:$0xf]
        %v1182 = vld [vmem:[%s190 + $0x88] sm:$0xf]
        %v1183 = vld [vmem:[%s190 + $0x8c] sm:$0xf]
        %v1184 = vld [vmem:[%s190 + $0x90] sm:$0xf]
        %v1185 = vld [vmem:[%s190 + $0x94] sm:$0xf]
        %v1186 = vld [vmem:[%s190 + $0x98] sm:$0x1]
        %v1224 = vrot.slane %v1150, 5
        %v1225 = vrot.slane %v1224, 4
        %v1226 = vrot.slane %v1151, 5
        %v1227 = vsel %vm895, %v1225, %v1226
        %v1228 = vrot.slane %v1226, 4
        %v1229 = vrot.slane %v1152, 5
        %v1230 = vsel %vm895, %v1228, %v1229
        %v1231 = vrot.slane %v1229, 4
        %v1232 = vrot.slane %v1153, 5
        %v1233 = vsel %vm895, %v1231, %v1232
        %v1234 = vrot.slane %v1232, 4
        %v1235 = vrot.slane %v1154, 5
        %v1236 = vsel %vm895, %v1234, %v1235
        %v1237 = vrot.slane %v1235, 4
        %v1238 = vrot.slane %v1155, 5
        %v1239 = vsel %vm895, %v1237, %v1238
        %v1240 = vrot.slane %v1238, 4
        %v1241 = vrot.slane %v1156, 5
        %v1242 = vsel %vm895, %v1240, %v1241
        %v1243 = vrot.slane %v1241, 4
        %v1244 = vrot.slane %v1157, 5
        %v1245 = vsel %vm895, %v1243, %v1244
        %v1246 = vrot.slane %v1244, 4
        %v1247 = vrot.slane %v1158, 5
        %v1248 = vsel %vm895, %v1246, %v1247
        %v1249 = vrot.slane %v1247, 4
        %v1250 = vrot.slane %v1159, 5
        %v1251 = vsel %vm895, %v1249, %v1250
        %v1252 = vrot.slane %v1250, 4
        %v1253 = vrot.slane %v1160, 5
        %v1254 = vsel %vm895, %v1252, %v1253
        %v1255 = vrot.slane %v1253, 4
        %v1256 = vrot.slane %v1161, 5
        %v1257 = vsel %vm895, %v1255, %v1256
        %v1258 = vrot.slane %v1256, 4
        %v1259 = vrot.slane %v1162, 5
        %v1260 = vsel %vm895, %v1258, %v1259
        %v1261 = vrot.slane %v1259, 4
        %v1262 = vrot.slane %v1163, 5
        %v1263 = vsel %vm895, %v1261, %v1262
        %v1264 = vrot.slane %v1262, 4
        %v1265 = vrot.slane %v1164, 5
        %v1266 = vsel %vm895, %v1264, %v1265
        %v1267 = vrot.slane %v1265, 4
        %v1268 = vrot.slane %v1165, 5
        %v1269 = vsel %vm895, %v1267, %v1268
        %v1270 = vrot.slane %v1268, 4
        %v1271 = vrot.slane %v1166, 5
        %v1272 = vsel %vm895, %v1270, %v1271
        %v1273 = vrot.slane %v1271, 4
        %v1274 = vrot.slane %v1167, 5
        %v1275 = vsel %vm895, %v1273, %v1274
        %v1276 = vrot.slane %v1274, 4
        %v1277 = vrot.slane %v1168, 5
        %v1278 = vsel %vm895, %v1276, %v1277
        %v1279 = vrot.slane %v1277, 4
        %v1280 = vrot.slane %v1169, 5
        %v1281 = vsel %vm895, %v1279, %v1280
        %v1282 = vrot.slane %v1280, 4
        %v1283 = vrot.slane %v1170, 5
        %v1284 = vsel %vm895, %v1282, %v1283
        %v1285 = vrot.slane %v1283, 4
        %v1286 = vrot.slane %v1171, 5
        %v1287 = vsel %vm895, %v1285, %v1286
        %v1288 = vrot.slane %v1286, 4
        %v1289 = vrot.slane %v1172, 5
        %v1290 = vsel %vm895, %v1288, %v1289
        %v1291 = vrot.slane %v1289, 4
        %v1292 = vrot.slane %v1173, 5
        %v1293 = vsel %vm895, %v1291, %v1292
        %v1294 = vrot.slane %v1292, 4
        %v1295 = vrot.slane %v1174, 5
        %v1296 = vsel %vm895, %v1294, %v1295
        %v1297 = vrot.slane %v1295, 4
        %v1298 = vrot.slane %v1175, 5
        %v1299 = vsel %vm895, %v1297, %v1298
        %v1300 = vrot.slane %v1298, 4
        %v1301 = vrot.slane %v1176, 5
        %v1302 = vsel %vm895, %v1300, %v1301
        %v1303 = vrot.slane %v1301, 4
        %v1304 = vrot.slane %v1177, 5
        %v1305 = vsel %vm895, %v1303, %v1304
        %v1306 = vrot.slane %v1304, 4
        %v1307 = vrot.slane %v1178, 5
        %v1308 = vsel %vm895, %v1306, %v1307
        %v1309 = vrot.slane %v1307, 4
        %v1310 = vrot.slane %v1179, 5
        %v1311 = vsel %vm895, %v1309, %v1310
        %v1312 = vrot.slane %v1310, 4
        %v1313 = vrot.slane %v1180, 5
        %v1314 = vsel %vm895, %v1312, %v1313
        %v1315 = vrot.slane %v1313, 4
        %v1316 = vrot.slane %v1181, 5
        %v1317 = vsel %vm895, %v1315, %v1316
        %v1318 = vrot.slane %v1316, 4
        %v1319 = vrot.slane %v1182, 5
        %v1320 = vsel %vm895, %v1318, %v1319
        %v1321 = vrot.slane %v1319, 4
        %v1322 = vrot.slane %v1183, 5
        %v1323 = vsel %vm895, %v1321, %v1322
        %v1324 = vrot.slane %v1322, 4
        %v1325 = vrot.slane %v1184, 5
        %v1326 = vsel %vm895, %v1324, %v1325
        %v1327 = vrot.slane %v1325, 4
        %v1328 = vrot.slane %v1185, 5
        %v1329 = vsel %vm895, %v1327, %v1328
        %v1330 = vrot.slane %v1328, 4
        %v1331 = vrot.slane %v1186, 5
        %v1332 = vsel %vm895, %v1330, %v1331
        %1333 = vrot.lane.b32.xlu0 %v1227, 12
        %v1334 = vpop.permute.xlu0 %1333
        %1335 = vrot.lane.b32.xlu0 %v1230, 12
        %v1336 = vpop.permute.xlu0 %1335
        %1337 = vrot.lane.b32.xlu0 %v1233, 12
        %v1338 = vpop.permute.xlu0 %1337
        %1339 = vrot.lane.b32.xlu0 %v1236, 12
        %v1340 = vpop.permute.xlu0 %1339
        %1341 = vrot.lane.b32.xlu0 %v1239, 12
        %v1342 = vpop.permute.xlu0 %1341
        %1343 = vrot.lane.b32.xlu0 %v1242, 12
        %v1344 = vpop.permute.xlu0 %1343
        %1345 = vrot.lane.b32.xlu0 %v1245, 12
        %v1346 = vpop.permute.xlu0 %1345
        %1347 = vrot.lane.b32.xlu0 %v1248, 12
        %v1348 = vpop.permute.xlu0 %1347
        %1349 = vrot.lane.b32.xlu0 %v1251, 12
        %v1350 = vpop.permute.xlu0 %1349
        %1351 = vrot.lane.b32.xlu0 %v1254, 12
        %v1352 = vpop.permute.xlu0 %1351
        %1353 = vrot.lane.b32.xlu0 %v1257, 12
        %v1354 = vpop.permute.xlu0 %1353
        %1355 = vrot.lane.b32.xlu0 %v1260, 12
        %v1356 = vpop.permute.xlu0 %1355
        %1357 = vrot.lane.b32.xlu0 %v1263, 12
        %v1358 = vpop.permute.xlu0 %1357
        %1359 = vrot.lane.b32.xlu0 %v1266, 12
        %v1360 = vpop.permute.xlu0 %1359
        %1361 = vrot.lane.b32.xlu0 %v1269, 12
        %v1362 = vpop.permute.xlu0 %1361
        %1363 = vrot.lane.b32.xlu0 %v1272, 12
        %v1364 = vpop.permute.xlu0 %1363
        %1365 = vrot.lane.b32.xlu0 %v1275, 12
        %v1366 = vpop.permute.xlu0 %1365
        %1367 = vrot.lane.b32.xlu0 %v1278, 12
        %v1368 = vpop.permute.xlu0 %1367
        %1369 = vrot.lane.b32.xlu0 %v1281, 12
        %v1370 = vpop.permute.xlu0 %1369
        %1371 = vrot.lane.b32.xlu0 %v1284, 12
        %v1372 = vpop.permute.xlu0 %1371
        %1373 = vrot.lane.b32.xlu0 %v1287, 12
        %v1374 = vpop.permute.xlu0 %1373
        %1375 = vrot.lane.b32.xlu0 %v1290, 12
        %v1376 = vpop.permute.xlu0 %1375
        %1377 = vrot.lane.b32.xlu0 %v1293, 12
        %v1378 = vpop.permute.xlu0 %1377
        %1379 = vrot.lane.b32.xlu0 %v1296, 12
        %v1380 = vpop.permute.xlu0 %1379
        %1381 = vrot.lane.b32.xlu0 %v1299, 12
        %v1382 = vpop.permute.xlu0 %1381
        %1383 = vrot.lane.b32.xlu0 %v1302, 12
        %v1384 = vpop.permute.xlu0 %1383
        %1385 = vrot.lane.b32.xlu0 %v1305, 12
        %v1386 = vpop.permute.xlu0 %1385
        %1387 = vrot.lane.b32.xlu0 %v1308, 12
        %v1388 = vpop.permute.xlu0 %1387
        %1389 = vrot.lane.b32.xlu0 %v1311, 12
        %v1390 = vpop.permute.xlu0 %1389
        %1391 = vrot.lane.b32.xlu0 %v1314, 12
        %v1392 = vpop.permute.xlu0 %1391
        %1393 = vrot.lane.b32.xlu0 %v1317, 12
        %v1394 = vpop.permute.xlu0 %1393
        %1395 = vrot.lane.b32.xlu0 %v1320, 12
        %v1396 = vpop.permute.xlu0 %1395
        %1397 = vrot.lane.b32.xlu0 %v1323, 12
        %v1398 = vpop.permute.xlu0 %1397
        %1399 = vrot.lane.b32.xlu0 %v1326, 12
        %v1400 = vpop.permute.xlu0 %1399
        %1401 = vrot.lane.b32.xlu0 %v1329, 12
        %v1402 = vpop.permute.xlu0 %1401
        %1403 = vrot.lane.b32.xlu0 %v1332, 12
        %v1404 = vpop.permute.xlu0 %1403
        %vm1441 = vcmask 126048
        %1442 = vst.msk [vmem:[#allocation2] sm:$0xf] %vm1441, %v1334
        %1443 = vst.msk [vmem:[#allocation2 + $0x4] sm:$0xf] %vm1441, %v1336
        %1444 = vst.msk [vmem:[#allocation2 + $0x8] sm:$0xf] %vm1441, %v1338
        %1445 = vst.msk [vmem:[#allocation2 + $0xc] sm:$0xf] %vm1441, %v1340
        %1446 = vst.msk [vmem:[#allocation2 + $0x10] sm:$0xf] %vm1441, %v1342
        %1447 = vst.msk [vmem:[#allocation2 + $0x14] sm:$0xf] %vm1441, %v1344
        %1448 = vst.msk [vmem:[#allocation2 + $0x18] sm:$0xf] %vm1441, %v1346
        %1449 = vst.msk [vmem:[#allocation2 + $0x1c] sm:$0xf] %vm1441, %v1348
        %1450 = vst.msk [vmem:[#allocation2 + $0x20] sm:$0xf] %vm1441, %v1350
        %1451 = vst.msk [vmem:[#allocation2 + $0x24] sm:$0xf] %vm1441, %v1352
        %1452 = vst.msk [vmem:[#allocation2 + $0x28] sm:$0xf] %vm1441, %v1354
        %1453 = vst.msk [vmem:[#allocation2 + $0x2c] sm:$0xf] %vm1441, %v1356
        %1454 = vst.msk [vmem:[#allocation2 + $0x30] sm:$0xf] %vm1441, %v1358
        %1455 = vst.msk [vmem:[#allocation2 + $0x34] sm:$0xf] %vm1441, %v1360
        %1456 = vst.msk [vmem:[#allocation2 + $0x38] sm:$0xf] %vm1441, %v1362
        %1457 = vst.msk [vmem:[#allocation2 + $0x3c] sm:$0xf] %vm1441, %v1364
        %1458 = vst.msk [vmem:[#allocation2 + $0x40] sm:$0xf] %vm1441, %v1366
        %1459 = vst.msk [vmem:[#allocation2 + $0x44] sm:$0xf] %vm1441, %v1368
        %1460 = vst.msk [vmem:[#allocation2 + $0x48] sm:$0xf] %vm1441, %v1370
        %1461 = vst.msk [vmem:[#allocation2 + $0x4c] sm:$0xf] %vm1441, %v1372
        %1462 = vst.msk [vmem:[#allocation2 + $0x50] sm:$0xf] %vm1441, %v1374
        %1463 = vst.msk [vmem:[#allocation2 + $0x54] sm:$0xf] %vm1441, %v1376
        %1464 = vst.msk [vmem:[#allocation2 + $0x58] sm:$0xf] %vm1441, %v1378
        %1465 = vst.msk [vmem:[#allocation2 + $0x5c] sm:$0xf] %vm1441, %v1380
        %1466 = vst.msk [vmem:[#allocation2 + $0x60] sm:$0xf] %vm1441, %v1382
        %1467 = vst.msk [vmem:[#allocation2 + $0x64] sm:$0xf] %vm1441, %v1384
        %1468 = vst.msk [vmem:[#allocation2 + $0x68] sm:$0xf] %vm1441, %v1386
        %1469 = vst.msk [vmem:[#allocation2 + $0x6c] sm:$0xf] %vm1441, %v1388
        %1470 = vst.msk [vmem:[#allocation2 + $0x70] sm:$0xf] %vm1441, %v1390
        %1471 = vst.msk [vmem:[#allocation2 + $0x74] sm:$0xf] %vm1441, %v1392
        %1472 = vst.msk [vmem:[#allocation2 + $0x78] sm:$0xf] %vm1441, %v1394
        %1473 = vst.msk [vmem:[#allocation2 + $0x7c] sm:$0xf] %vm1441, %v1396
        %1474 = vst.msk [vmem:[#allocation2 + $0x80] sm:$0xf] %vm1441, %v1398
        %1475 = vst.msk [vmem:[#allocation2 + $0x84] sm:$0xf] %vm1441, %v1400
        %1476 = vst.msk [vmem:[#allocation2 + $0x88] sm:$0xf] %vm1441, %v1402
        %1477 = vst.msk [vmem:[#allocation2 + $0x8c] sm:$0xf] %vm1441, %v1404
        %v1478 = vld [vmem:[%s190 + $0x8] sm:$0xe]
        %v1479 = vld [vmem:[%s190 + $0xc] sm:$0xf]
        %v1480 = vld [vmem:[%s190 + $0x10] sm:$0xf]
        %v1481 = vld [vmem:[%s190 + $0x14] sm:$0xf]
        %v1482 = vld [vmem:[%s190 + $0x18] sm:$0xf]
        %v1483 = vld [vmem:[%s190 + $0x1c] sm:$0xf]
        %v1484 = vld [vmem:[%s190 + $0x20] sm:$0xf]
        %v1485 = vld [vmem:[%s190 + $0x24] sm:$0xf]
        %v1486 = vld [vmem:[%s190 + $0x28] sm:$0xf]
        %v1487 = vld [vmem:[%s190 + $0x2c] sm:$0xf]
        %v1488 = vld [vmem:[%s190 + $0x30] sm:$0xf]
        %v1489 = vld [vmem:[%s190 + $0x34] sm:$0xf]
        %v1490 = vld [vmem:[%s190 + $0x38] sm:$0xf]
        %v1491 = vld [vmem:[%s190 + $0x3c] sm:$0xf]
        %v1492 = vld [vmem:[%s190 + $0x40] sm:$0xf]
        %v1493 = vld [vmem:[%s190 + $0x44] sm:$0xf]
        %v1494 = vld [vmem:[%s190 + $0x48] sm:$0xf]
        %v1495 = vld [vmem:[%s190 + $0x4c] sm:$0xf]
        %v1496 = vld [vmem:[%s190 + $0x50] sm:$0xf]
        %v1497 = vld [vmem:[%s190 + $0x54] sm:$0xf]
        %v1498 = vld [vmem:[%s190 + $0x58] sm:$0xf]
        %v1499 = vld [vmem:[%s190 + $0x5c] sm:$0xf]
        %v1500 = vld [vmem:[%s190 + $0x60] sm:$0xf]
        %v1501 = vld [vmem:[%s190 + $0x64] sm:$0xf]
        %v1502 = vld [vmem:[%s190 + $0x68] sm:$0xf]
        %v1503 = vld [vmem:[%s190 + $0x6c] sm:$0xf]
        %v1504 = vld [vmem:[%s190 + $0x70] sm:$0xf]
        %v1505 = vld [vmem:[%s190 + $0x74] sm:$0xf]
        %v1506 = vld [vmem:[%s190 + $0x78] sm:$0xf]
        %v1507 = vld [vmem:[%s190 + $0x7c] sm:$0xf]
        %v1508 = vld [vmem:[%s190 + $0x80] sm:$0xf]
        %v1509 = vld [vmem:[%s190 + $0x84] sm:$0xf]
        %v1510 = vld [vmem:[%s190 + $0x88] sm:$0xf]
        %v1511 = vld [vmem:[%s190 + $0x8c] sm:$0xf]
        %v1512 = vld [vmem:[%s190 + $0x90] sm:$0xf]
        %v1513 = vld [vmem:[%s190 + $0x94] sm:$0xf]
        %v1514 = vld [vmem:[%s190 + $0x98] sm:$0x3]
        %vm1515 = vsmask.f32 2304
        %vm1516 = vsmask.f32 6416
        %vm1517 = vmor %vm1515, %vm1516
        %v1519 = vshrl.u32 %v1478, 16
        %v1521 = vrot.slane %v1519, 5
        %v1522 = vshll.u32 %v1478, 16
        %v1524 = vrot.slane %v1522, 6
        %v1525 = vor.u32 %v1521, %v1524
        %v1526 = vrot.slane %v1525, 4
        %v1528 = vshrl.u32 %v1479, 16
        %v1530 = vrot.slane %v1528, 5
        %v1531 = vshll.u32 %v1479, 16
        %v1533 = vrot.slane %v1531, 6
        %v1534 = vor.u32 %v1530, %v1533
        %v1535 = vsel %vm1517, %v1526, %v1534
        %v1536 = vrot.slane %v1534, 4
        %v1538 = vshrl.u32 %v1480, 16
        %v1540 = vrot.slane %v1538, 5
        %v1541 = vshll.u32 %v1480, 16
        %v1543 = vrot.slane %v1541, 6
        %v1544 = vor.u32 %v1540, %v1543
        %v1545 = vsel %vm1517, %v1536, %v1544
        %v1546 = vrot.slane %v1544, 4
        %v1548 = vshrl.u32 %v1481, 16
        %v1550 = vrot.slane %v1548, 5
        %v1551 = vshll.u32 %v1481, 16
        %v1553 = vrot.slane %v1551, 6
        %v1554 = vor.u32 %v1550, %v1553
        %v1555 = vsel %vm1517, %v1546, %v1554
        %v1556 = vrot.slane %v1554, 4
        %v1558 = vshrl.u32 %v1482, 16
        %v1560 = vrot.slane %v1558, 5
        %v1561 = vshll.u32 %v1482, 16
        %v1563 = vrot.slane %v1561, 6
        %v1564 = vor.u32 %v1560, %v1563
        %v1565 = vsel %vm1517, %v1556, %v1564
        %v1566 = vrot.slane %v1564, 4
        %v1568 = vshrl.u32 %v1483, 16
        %v1570 = vrot.slane %v1568, 5
        %v1571 = vshll.u32 %v1483, 16
        %v1573 = vrot.slane %v1571, 6
        %v1574 = vor.u32 %v1570, %v1573
        %v1575 = vsel %vm1517, %v1566, %v1574
        %v1576 = vrot.slane %v1574, 4
        %v1578 = vshrl.u32 %v1484, 16
        %v1580 = vrot.slane %v1578, 5
        %v1581 = vshll.u32 %v1484, 16
        %v1583 = vrot.slane %v1581, 6
        %v1584 = vor.u32 %v1580, %v1583
        %v1585 = vsel %vm1517, %v1576, %v1584
        %v1586 = vrot.slane %v1584, 4
        %v1588 = vshrl.u32 %v1485, 16
        %v1590 = vrot.slane %v1588, 5
        %v1591 = vshll.u32 %v1485, 16
        %v1593 = vrot.slane %v1591, 6
        %v1594 = vor.u32 %v1590, %v1593
        %v1595 = vsel %vm1517, %v1586, %v1594
        %v1596 = vrot.slane %v1594, 4
        %v1598 = vshrl.u32 %v1486, 16
        %v1600 = vrot.slane %v1598, 5
        %v1601 = vshll.u32 %v1486, 16
        %v1603 = vrot.slane %v1601, 6
        %v1604 = vor.u32 %v1600, %v1603
        %v1605 = vsel %vm1517, %v1596, %v1604
        %v1606 = vrot.slane %v1604, 4
        %v1608 = vshrl.u32 %v1487, 16
        %v1610 = vrot.slane %v1608, 5
        %v1611 = vshll.u32 %v1487, 16
        %v1613 = vrot.slane %v1611, 6
        %v1614 = vor.u32 %v1610, %v1613
        %v1615 = vsel %vm1517, %v1606, %v1614
        %v1616 = vrot.slane %v1614, 4
        %v1618 = vshrl.u32 %v1488, 16
        %v1620 = vrot.slane %v1618, 5
        %v1621 = vshll.u32 %v1488, 16
        %v1623 = vrot.slane %v1621, 6
        %v1624 = vor.u32 %v1620, %v1623
        %v1625 = vsel %vm1517, %v1616, %v1624
        %v1626 = vrot.slane %v1624, 4
        %v1628 = vshrl.u32 %v1489, 16
        %v1630 = vrot.slane %v1628, 5
        %v1631 = vshll.u32 %v1489, 16
        %v1633 = vrot.slane %v1631, 6
        %v1634 = vor.u32 %v1630, %v1633
        %v1635 = vsel %vm1517, %v1626, %v1634
        %v1636 = vrot.slane %v1634, 4
        %v1638 = vshrl.u32 %v1490, 16
        %v1640 = vrot.slane %v1638, 5
        %v1641 = vshll.u32 %v1490, 16
        %v1643 = vrot.slane %v1641, 6
        %v1644 = vor.u32 %v1640, %v1643
        %v1645 = vsel %vm1517, %v1636, %v1644
        %v1646 = vrot.slane %v1644, 4
        %v1648 = vshrl.u32 %v1491, 16
        %v1650 = vrot.slane %v1648, 5
        %v1651 = vshll.u32 %v1491, 16
        %v1653 = vrot.slane %v1651, 6
        %v1654 = vor.u32 %v1650, %v1653
        %v1655 = vsel %vm1517, %v1646, %v1654
        %v1656 = vrot.slane %v1654, 4
        %v1658 = vshrl.u32 %v1492, 16
        %v1660 = vrot.slane %v1658, 5
        %v1661 = vshll.u32 %v1492, 16
        %v1663 = vrot.slane %v1661, 6
        %v1664 = vor.u32 %v1660, %v1663
        %v1665 = vsel %vm1517, %v1656, %v1664
        %v1666 = vrot.slane %v1664, 4
        %v1668 = vshrl.u32 %v1493, 16
        %v1670 = vrot.slane %v1668, 5
        %v1671 = vshll.u32 %v1493, 16
        %v1673 = vrot.slane %v1671, 6
        %v1674 = vor.u32 %v1670, %v1673
        %v1675 = vsel %vm1517, %v1666, %v1674
        %v1676 = vrot.slane %v1674, 4
        %v1678 = vshrl.u32 %v1494, 16
        %v1680 = vrot.slane %v1678, 5
        %v1681 = vshll.u32 %v1494, 16
        %v1683 = vrot.slane %v1681, 6
        %v1684 = vor.u32 %v1680, %v1683
        %v1685 = vsel %vm1517, %v1676, %v1684
        %v1686 = vrot.slane %v1684, 4
        %v1688 = vshrl.u32 %v1495, 16
        %v1690 = vrot.slane %v1688, 5
        %v1691 = vshll.u32 %v1495, 16
        %v1693 = vrot.slane %v1691, 6
        %v1694 = vor.u32 %v1690, %v1693
        %v1695 = vsel %vm1517, %v1686, %v1694
        %v1696 = vrot.slane %v1694, 4
        %v1698 = vshrl.u32 %v1496, 16
        %v1700 = vrot.slane %v1698, 5
        %v1701 = vshll.u32 %v1496, 16
        %v1703 = vrot.slane %v1701, 6
        %v1704 = vor.u32 %v1700, %v1703
        %v1705 = vsel %vm1517, %v1696, %v1704
        %v1706 = vrot.slane %v1704, 4
        %v1708 = vshrl.u32 %v1497, 16
        %v1710 = vrot.slane %v1708, 5
        %v1711 = vshll.u32 %v1497, 16
        %v1713 = vrot.slane %v1711, 6
        %v1714 = vor.u32 %v1710, %v1713
        %v1715 = vsel %vm1517, %v1706, %v1714
        %v1716 = vrot.slane %v1714, 4
        %v1718 = vshrl.u32 %v1498, 16
        %v1720 = vrot.slane %v1718, 5
        %v1721 = vshll.u32 %v1498, 16
        %v1723 = vrot.slane %v1721, 6
        %v1724 = vor.u32 %v1720, %v1723
        %v1725 = vsel %vm1517, %v1716, %v1724
        %v1726 = vrot.slane %v1724, 4
        %v1728 = vshrl.u32 %v1499, 16
        %v1730 = vrot.slane %v1728, 5
        %v1731 = vshll.u32 %v1499, 16
        %v1733 = vrot.slane %v1731, 6
        %v1734 = vor.u32 %v1730, %v1733
        %v1735 = vsel %vm1517, %v1726, %v1734
        %v1736 = vrot.slane %v1734, 4
        %v1738 = vshrl.u32 %v1500, 16
        %v1740 = vrot.slane %v1738, 5
        %v1741 = vshll.u32 %v1500, 16
        %v1743 = vrot.slane %v1741, 6
        %v1744 = vor.u32 %v1740, %v1743
        %v1745 = vsel %vm1517, %v1736, %v1744
        %v1746 = vrot.slane %v1744, 4
        %v1748 = vshrl.u32 %v1501, 16
        %v1750 = vrot.slane %v1748, 5
        %v1751 = vshll.u32 %v1501, 16
        %v1753 = vrot.slane %v1751, 6
        %v1754 = vor.u32 %v1750, %v1753
        %v1755 = vsel %vm1517, %v1746, %v1754
        %v1756 = vrot.slane %v1754, 4
        %v1758 = vshrl.u32 %v1502, 16
        %v1760 = vrot.slane %v1758, 5
        %v1761 = vshll.u32 %v1502, 16
        %v1763 = vrot.slane %v1761, 6
        %v1764 = vor.u32 %v1760, %v1763
        %v1765 = vsel %vm1517, %v1756, %v1764
        %v1766 = vrot.slane %v1764, 4
        %v1768 = vshrl.u32 %v1503, 16
        %v1770 = vrot.slane %v1768, 5
        %v1771 = vshll.u32 %v1503, 16
        %v1773 = vrot.slane %v1771, 6
        %v1774 = vor.u32 %v1770, %v1773
        %v1775 = vsel %vm1517, %v1766, %v1774
        %v1776 = vrot.slane %v1774, 4
        %v1778 = vshrl.u32 %v1504, 16
        %v1780 = vrot.slane %v1778, 5
        %v1781 = vshll.u32 %v1504, 16
        %v1783 = vrot.slane %v1781, 6
        %v1784 = vor.u32 %v1780, %v1783
        %v1785 = vsel %vm1517, %v1776, %v1784
        %v1786 = vrot.slane %v1784, 4
        %v1788 = vshrl.u32 %v1505, 16
        %v1790 = vrot.slane %v1788, 5
        %v1791 = vshll.u32 %v1505, 16
        %v1793 = vrot.slane %v1791, 6
        %v1794 = vor.u32 %v1790, %v1793
        %v1795 = vsel %vm1517, %v1786, %v1794
        %v1796 = vrot.slane %v1794, 4
        %v1798 = vshrl.u32 %v1506, 16
        %v1800 = vrot.slane %v1798, 5
        %v1801 = vshll.u32 %v1506, 16
        %v1803 = vrot.slane %v1801, 6
        %v1804 = vor.u32 %v1800, %v1803
        %v1805 = vsel %vm1517, %v1796, %v1804
        %v1806 = vrot.slane %v1804, 4
        %v1808 = vshrl.u32 %v1507, 16
        %v1810 = vrot.slane %v1808, 5
        %v1811 = vshll.u32 %v1507, 16
        %v1813 = vrot.slane %v1811, 6
        %v1814 = vor.u32 %v1810, %v1813
        %v1815 = vsel %vm1517, %v1806, %v1814
        %v1816 = vrot.slane %v1814, 4
        %v1818 = vshrl.u32 %v1508, 16
        %v1820 = vrot.slane %v1818, 5
        %v1821 = vshll.u32 %v1508, 16
        %v1823 = vrot.slane %v1821, 6
        %v1824 = vor.u32 %v1820, %v1823
        %v1825 = vsel %vm1517, %v1816, %v1824
        %v1826 = vrot.slane %v1824, 4
        %v1828 = vshrl.u32 %v1509, 16
        %v1830 = vrot.slane %v1828, 5
        %v1831 = vshll.u32 %v1509, 16
        %v1833 = vrot.slane %v1831, 6
        %v1834 = vor.u32 %v1830, %v1833
        %v1835 = vsel %vm1517, %v1826, %v1834
        %v1836 = vrot.slane %v1834, 4
        %v1838 = vshrl.u32 %v1510, 16
        %v1840 = vrot.slane %v1838, 5
        %v1841 = vshll.u32 %v1510, 16
        %v1843 = vrot.slane %v1841, 6
        %v1844 = vor.u32 %v1840, %v1843
        %v1845 = vsel %vm1517, %v1836, %v1844
        %v1846 = vrot.slane %v1844, 4
        %v1848 = vshrl.u32 %v1511, 16
        %v1850 = vrot.slane %v1848, 5
        %v1851 = vshll.u32 %v1511, 16
        %v1853 = vrot.slane %v1851, 6
        %v1854 = vor.u32 %v1850, %v1853
        %v1855 = vsel %vm1517, %v1846, %v1854
        %v1856 = vrot.slane %v1854, 4
        %v1858 = vshrl.u32 %v1512, 16
        %v1860 = vrot.slane %v1858, 5
        %v1861 = vshll.u32 %v1512, 16
        %v1863 = vrot.slane %v1861, 6
        %v1864 = vor.u32 %v1860, %v1863
        %v1865 = vsel %vm1517, %v1856, %v1864
        %v1866 = vrot.slane %v1864, 4
        %v1868 = vshrl.u32 %v1513, 16
        %v1870 = vrot.slane %v1868, 5
        %v1871 = vshll.u32 %v1513, 16
        %v1873 = vrot.slane %v1871, 6
        %v1874 = vor.u32 %v1870, %v1873
        %v1875 = vsel %vm1517, %v1866, %v1874
        %v1876 = vrot.slane %v1874, 4
        %v1878 = vshrl.u32 %v1514, 16
        %v1880 = vrot.slane %v1878, 5
        %v1881 = vshll.u32 %v1514, 16
        %v1883 = vrot.slane %v1881, 6
        %v1884 = vor.u32 %v1880, %v1883
        %v1885 = vsel %vm1517, %v1876, %v1884
        %1886 = vrot.lane.b32.xlu0 %v1535, 16
        %v1887 = vpop.permute.xlu0 %1886
        %1888 = vrot.lane.b32.xlu0 %v1545, 16
        %v1889 = vpop.permute.xlu0 %1888
        %1890 = vrot.lane.b32.xlu0 %v1555, 16
        %v1891 = vpop.permute.xlu0 %1890
        %1892 = vrot.lane.b32.xlu0 %v1565, 16
        %v1893 = vpop.permute.xlu0 %1892
        %1894 = vrot.lane.b32.xlu0 %v1575, 16
        %v1895 = vpop.permute.xlu0 %1894
        %1896 = vrot.lane.b32.xlu0 %v1585, 16
        %v1897 = vpop.permute.xlu0 %1896
        %1898 = vrot.lane.b32.xlu0 %v1595, 16
        %v1899 = vpop.permute.xlu0 %1898
        %1900 = vrot.lane.b32.xlu0 %v1605, 16
        %v1901 = vpop.permute.xlu0 %1900
        %1902 = vrot.lane.b32.xlu0 %v1615, 16
        %v1903 = vpop.permute.xlu0 %1902
        %1904 = vrot.lane.b32.xlu0 %v1625, 16
        %v1905 = vpop.permute.xlu0 %1904
        %1906 = vrot.lane.b32.xlu0 %v1635, 16
        %v1907 = vpop.permute.xlu0 %1906
        %1908 = vrot.lane.b32.xlu0 %v1645, 16
        %v1909 = vpop.permute.xlu0 %1908
        %1910 = vrot.lane.b32.xlu0 %v1655, 16
        %v1911 = vpop.permute.xlu0 %1910
        %1912 = vrot.lane.b32.xlu0 %v1665, 16
        %v1913 = vpop.permute.xlu0 %1912
        %1914 = vrot.lane.b32.xlu0 %v1675, 16
        %v1915 = vpop.permute.xlu0 %1914
        %1916 = vrot.lane.b32.xlu0 %v1685, 16
        %v1917 = vpop.permute.xlu0 %1916
        %1918 = vrot.lane.b32.xlu0 %v1695, 16
        %v1919 = vpop.permute.xlu0 %1918
        %1920 = vrot.lane.b32.xlu0 %v1705, 16
        %v1921 = vpop.permute.xlu0 %1920
        %1922 = vrot.lane.b32.xlu0 %v1715, 16
        %v1923 = vpop.permute.xlu0 %1922
        %1924 = vrot.lane.b32.xlu0 %v1725, 16
        %v1925 = vpop.permute.xlu0 %1924
        %1926 = vrot.lane.b32.xlu0 %v1735, 16
        %v1927 = vpop.permute.xlu0 %1926
        %1928 = vrot.lane.b32.xlu0 %v1745, 16
        %v1929 = vpop.permute.xlu0 %1928
        %1930 = vrot.lane.b32.xlu0 %v1755, 16
        %v1931 = vpop.permute.xlu0 %1930
        %1932 = vrot.lane.b32.xlu0 %v1765, 16
        %v1933 = vpop.permute.xlu0 %1932
        %1934 = vrot.lane.b32.xlu0 %v1775, 16
        %v1935 = vpop.permute.xlu0 %1934
        %1936 = vrot.lane.b32.xlu0 %v1785, 16
        %v1937 = vpop.permute.xlu0 %1936
        %1938 = vrot.lane.b32.xlu0 %v1795, 16
        %v1939 = vpop.permute.xlu0 %1938
        %1940 = vrot.lane.b32.xlu0 %v1805, 16
        %v1941 = vpop.permute.xlu0 %1940
        %1942 = vrot.lane.b32.xlu0 %v1815, 16
        %v1943 = vpop.permute.xlu0 %1942
        %1944 = vrot.lane.b32.xlu0 %v1825, 16
        %v1945 = vpop.permute.xlu0 %1944
        %1946 = vrot.lane.b32.xlu0 %v1835, 16
        %v1947 = vpop.permute.xlu0 %1946
        %1948 = vrot.lane.b32.xlu0 %v1845, 16
        %v1949 = vpop.permute.xlu0 %1948
        %1950 = vrot.lane.b32.xlu0 %v1855, 16
        %v1951 = vpop.permute.xlu0 %1950
        %1952 = vrot.lane.b32.xlu0 %v1865, 16
        %v1953 = vpop.permute.xlu0 %1952
        %1954 = vrot.lane.b32.xlu0 %v1875, 16
        %v1955 = vpop.permute.xlu0 %1954
        %1956 = vrot.lane.b32.xlu0 %v1885, 16
        %v1957 = vpop.permute.xlu0 %1956
        %vm1994 = vcmask 158848
        %1995 = vst.msk [vmem:[#allocation2] sm:$0xf] %vm1994, %v1887
        %1996 = vst.msk [vmem:[#allocation2 + $0x4] sm:$0xf] %vm1994, %v1889
        %1997 = vst.msk [vmem:[#allocation2 + $0x8] sm:$0xf] %vm1994, %v1891
        %1998 = vst.msk [vmem:[#allocation2 + $0xc] sm:$0xf] %vm1994, %v1893
        %1999 = vst.msk [vmem:[#allocation2 + $0x10] sm:$0xf] %vm1994, %v1895
        %2000 = vst.msk [vmem:[#allocation2 + $0x14] sm:$0xf] %vm1994, %v1897
        %2001 = vst.msk [vmem:[#allocation2 + $0x18] sm:$0xf] %vm1994, %v1899
        %2002 = vst.msk [vmem:[#allocation2 + $0x1c] sm:$0xf] %vm1994, %v1901
        %2003 = vst.msk [vmem:[#allocation2 + $0x20] sm:$0xf] %vm1994, %v1903
        %2004 = vst.msk [vmem:[#allocation2 + $0x24] sm:$0xf] %vm1994, %v1905
        %2005 = vst.msk [vmem:[#allocation2 + $0x28] sm:$0xf] %vm1994, %v1907
        %2006 = vst.msk [vmem:[#allocation2 + $0x2c] sm:$0xf] %vm1994, %v1909
        %2007 = vst.msk [vmem:[#allocation2 + $0x30] sm:$0xf] %vm1994, %v1911
        %2008 = vst.msk [vmem:[#allocation2 + $0x34] sm:$0xf] %vm1994, %v1913
        %2009 = vst.msk [vmem:[#allocation2 + $0x38] sm:$0xf] %vm1994, %v1915
        %2010 = vst.msk [vmem:[#allocation2 + $0x3c] sm:$0xf] %vm1994, %v1917
        %2011 = vst.msk [vmem:[#allocation2 + $0x40] sm:$0xf] %vm1994, %v1919
        %2012 = vst.msk [vmem:[#allocation2 + $0x44] sm:$0xf] %vm1994, %v1921
        %2013 = vst.msk [vmem:[#allocation2 + $0x48] sm:$0xf] %vm1994, %v1923
        %2014 = vst.msk [vmem:[#allocation2 + $0x4c] sm:$0xf] %vm1994, %v1925
        %2015 = vst.msk [vmem:[#allocation2 + $0x50] sm:$0xf] %vm1994, %v1927
        %2016 = vst.msk [vmem:[#allocation2 + $0x54] sm:$0xf] %vm1994, %v1929
        %2017 = vst.msk [vmem:[#allocation2 + $0x58] sm:$0xf] %vm1994, %v1931
        %2018 = vst.msk [vmem:[#allocation2 + $0x5c] sm:$0xf] %vm1994, %v1933
        %2019 = vst.msk [vmem:[#allocation2 + $0x60] sm:$0xf] %vm1994, %v1935
        %2020 = vst.msk [vmem:[#allocation2 + $0x64] sm:$0xf] %vm1994, %v1937
        %2021 = vst.msk [vmem:[#allocation2 + $0x68] sm:$0xf] %vm1994, %v1939
        %2022 = vst.msk [vmem:[#allocation2 + $0x6c] sm:$0xf] %vm1994, %v1941
        %2023 = vst.msk [vmem:[#allocation2 + $0x70] sm:$0xf] %vm1994, %v1943
        %2024 = vst.msk [vmem:[#allocation2 + $0x74] sm:$0xf] %vm1994, %v1945
        %2025 = vst.msk [vmem:[#allocation2 + $0x78] sm:$0xf] %vm1994, %v1947
        %2026 = vst.msk [vmem:[#allocation2 + $0x7c] sm:$0xf] %vm1994, %v1949
        %2027 = vst.msk [vmem:[#allocation2 + $0x80] sm:$0xf] %vm1994, %v1951
        %2028 = vst.msk [vmem:[#allocation2 + $0x84] sm:$0xf] %vm1994, %v1953
        %2029 = vst.msk [vmem:[#allocation2 + $0x88] sm:$0xf] %vm1994, %v1955
        %2030 = vst.msk [vmem:[#allocation2 + $0x8c] sm:$0xf] %vm1994, %v1957
        %v2031 = vld [vmem:[%s190 + $0x8] sm:$0xc]
        %v2032 = vld [vmem:[%s190 + $0xc] sm:$0xf]
        %v2033 = vld [vmem:[%s190 + $0x10] sm:$0xf]
        %v2034 = vld [vmem:[%s190 + $0x14] sm:$0xf]
        %v2035 = vld [vmem:[%s190 + $0x18] sm:$0xf]
        %v2036 = vld [vmem:[%s190 + $0x1c] sm:$0xf]
        %v2037 = vld [vmem:[%s190 + $0x20] sm:$0xf]
        %v2038 = vld [vmem:[%s190 + $0x24] sm:$0xf]
        %v2039 = vld [vmem:[%s190 + $0x28] sm:$0xf]
        %v2040 = vld [vmem:[%s190 + $0x2c] sm:$0xf]
        %v2041 = vld [vmem:[%s190 + $0x30] sm:$0xf]
        %v2042 = vld [vmem:[%s190 + $0x34] sm:$0xf]
        %v2043 = vld [vmem:[%s190 + $0x38] sm:$0xf]
        %v2044 = vld [vmem:[%s190 + $0x3c] sm:$0xf]
        %v2045 = vld [vmem:[%s190 + $0x40] sm:$0xf]
        %v2046 = vld [vmem:[%s190 + $0x44] sm:$0xf]
        %v2047 = vld [vmem:[%s190 + $0x48] sm:$0xf]
        %v2048 = vld [vmem:[%s190 + $0x4c] sm:$0xf]
        %v2049 = vld [vmem:[%s190 + $0x50] sm:$0xf]
        %v2050 = vld [vmem:[%s190 + $0x54] sm:$0xf]
        %v2051 = vld [vmem:[%s190 + $0x58] sm:$0xf]
        %v2052 = vld [vmem:[%s190 + $0x5c] sm:$0xf]
        %v2053 = vld [vmem:[%s190 + $0x60] sm:$0xf]
        %v2054 = vld [vmem:[%s190 + $0x64] sm:$0xf]
        %v2055 = vld [vmem:[%s190 + $0x68] sm:$0xf]
        %v2056 = vld [vmem:[%s190 + $0x6c] sm:$0xf]
        %v2057 = vld [vmem:[%s190 + $0x70] sm:$0xf]
        %v2058 = vld [vmem:[%s190 + $0x74] sm:$0xf]
        %v2059 = vld [vmem:[%s190 + $0x78] sm:$0xf]
        %v2060 = vld [vmem:[%s190 + $0x7c] sm:$0xf]
        %v2061 = vld [vmem:[%s190 + $0x80] sm:$0xf]
        %v2062 = vld [vmem:[%s190 + $0x84] sm:$0xf]
        %v2063 = vld [vmem:[%s190 + $0x88] sm:$0xf]
        %v2064 = vld [vmem:[%s190 + $0x8c] sm:$0xf]
        %v2065 = vld [vmem:[%s190 + $0x90] sm:$0xf]
        %v2066 = vld [vmem:[%s190 + $0x94] sm:$0xf]
        %v2067 = vld [vmem:[%s190 + $0x98] sm:$0x3]
        %vm2105 = vcmask 1041408
        %vm2106 = vcmask 1045508
        %vm2107 = vmor %vm2105, %vm2106
        %v2108 = vrot.slane %v2031, 6
        %v2109 = vrot.slane %v2108, 4
        %v2110 = vrot.slane %v2032, 6
        %v2111 = vsel %vm2107, %v2109, %v2110
        %v2112 = vrot.slane %v2110, 4
        %v2113 = vrot.slane %v2033, 6
        %v2114 = vsel %vm2107, %v2112, %v2113
        %v2115 = vrot.slane %v2113, 4
        %v2116 = vrot.slane %v2034, 6
        %v2117 = vsel %vm2107, %v2115, %v2116
        %v2118 = vrot.slane %v2116, 4
        %v2119 = vrot.slane %v2035, 6
        %v2120 = vsel %vm2107, %v2118, %v2119
        %v2121 = vrot.slane %v2119, 4
        %v2122 = vrot.slane %v2036, 6
        %v2123 = vsel %vm2107, %v2121, %v2122
        %v2124 = vrot.slane %v2122, 4
        %v2125 = vrot.slane %v2037, 6
        %v2126 = vsel %vm2107, %v2124, %v2125
        %v2127 = vrot.slane %v2125, 4
        %v2128 = vrot.slane %v2038, 6
        %v2129 = vsel %vm2107, %v2127, %v2128
        %v2130 = vrot.slane %v2128, 4
        %v2131 = vrot.slane %v2039, 6
        %v2132 = vsel %vm2107, %v2130, %v2131
        %v2133 = vrot.slane %v2131, 4
        %v2134 = vrot.slane %v2040, 6
        %v2135 = vsel %vm2107, %v2133, %v2134
        %v2136 = vrot.slane %v2134, 4
        %v2137 = vrot.slane %v2041, 6
        %v2138 = vsel %vm2107, %v2136, %v2137
        %v2139 = vrot.slane %v2137, 4
        %v2140 = vrot.slane %v2042, 6
        %v2141 = vsel %vm2107, %v2139, %v2140
        %v2142 = vrot.slane %v2140, 4
        %v2143 = vrot.slane %v2043, 6
        %v2144 = vsel %vm2107, %v2142, %v2143
        %v2145 = vrot.slane %v2143, 4
        %v2146 = vrot.slane %v2044, 6
        %v2147 = vsel %vm2107, %v2145, %v2146
        %v2148 = vrot.slane %v2146, 4
        %v2149 = vrot.slane %v2045, 6
        %v2150 = vsel %vm2107, %v2148, %v2149
        %v2151 = vrot.slane %v2149, 4
        %v2152 = vrot.slane %v2046, 6
        %v2153 = vsel %vm2107, %v2151, %v2152
        %v2154 = vrot.slane %v2152, 4
        %v2155 = vrot.slane %v2047, 6
        %v2156 = vsel %vm2107, %v2154, %v2155
        %v2157 = vrot.slane %v2155, 4
        %v2158 = vrot.slane %v2048, 6
        %v2159 = vsel %vm2107, %v2157, %v2158
        %v2160 = vrot.slane %v2158, 4
        %v2161 = vrot.slane %v2049, 6
        %v2162 = vsel %vm2107, %v2160, %v2161
        %v2163 = vrot.slane %v2161, 4
        %v2164 = vrot.slane %v2050, 6
        %v2165 = vsel %vm2107, %v2163, %v2164
        %v2166 = vrot.slane %v2164, 4
        %v2167 = vrot.slane %v2051, 6
        %v2168 = vsel %vm2107, %v2166, %v2167
        %v2169 = vrot.slane %v2167, 4
        %v2170 = vrot.slane %v2052, 6
        %v2171 = vsel %vm2107, %v2169, %v2170
        %v2172 = vrot.slane %v2170, 4
        %v2173 = vrot.slane %v2053, 6
        %v2174 = vsel %vm2107, %v2172, %v2173
        %v2175 = vrot.slane %v2173, 4
        %v2176 = vrot.slane %v2054, 6
        %v2177 = vsel %vm2107, %v2175, %v2176
        %v2178 = vrot.slane %v2176, 4
        %v2179 = vrot.slane %v2055, 6
        %v2180 = vsel %vm2107, %v2178, %v2179
        %v2181 = vrot.slane %v2179, 4
        %v2182 = vrot.slane %v2056, 6
        %v2183 = vsel %vm2107, %v2181, %v2182
        %v2184 = vrot.slane %v2182, 4
        %v2185 = vrot.slane %v2057, 6
        %v2186 = vsel %vm2107, %v2184, %v2185
        %v2187 = vrot.slane %v2185, 4
        %v2188 = vrot.slane %v2058, 6
        %v2189 = vsel %vm2107, %v2187, %v2188
        %v2190 = vrot.slane %v2188, 4
        %v2191 = vrot.slane %v2059, 6
        %v2192 = vsel %vm2107, %v2190, %v2191
        %v2193 = vrot.slane %v2191, 4
        %v2194 = vrot.slane %v2060, 6
        %v2195 = vsel %vm2107, %v2193, %v2194
        %v2196 = vrot.slane %v2194, 4
        %v2197 = vrot.slane %v2061, 6
        %v2198 = vsel %vm2107, %v2196, %v2197
        %v2199 = vrot.slane %v2197, 4
        %v2200 = vrot.slane %v2062, 6
        %v2201 = vsel %vm2107, %v2199, %v2200
        %v2202 = vrot.slane %v2200, 4
        %v2203 = vrot.slane %v2063, 6
        %v2204 = vsel %vm2107, %v2202, %v2203
        %v2205 = vrot.slane %v2203, 4
        %v2206 = vrot.slane %v2064, 6
        %v2207 = vsel %vm2107, %v2205, %v2206
        %v2208 = vrot.slane %v2206, 4
        %v2209 = vrot.slane %v2065, 6
        %v2210 = vsel %vm2107, %v2208, %v2209
        %v2211 = vrot.slane %v2209, 4
        %v2212 = vrot.slane %v2066, 6
        %v2213 = vsel %vm2107, %v2211, %v2212
        %v2214 = vrot.slane %v2212, 4
        %v2215 = vrot.slane %v2067, 6
        %v2216 = vsel %vm2107, %v2214, %v2215
        %2217 = vrot.lane.b32.xlu0 %v2111, 20
        %v2218 = vpop.permute.xlu0 %2217
        %2219 = vrot.lane.b32.xlu0 %v2114, 20
        %v2220 = vpop.permute.xlu0 %2219
        %2221 = vrot.lane.b32.xlu0 %v2117, 20
        %v2222 = vpop.permute.xlu0 %2221
        %2223 = vrot.lane.b32.xlu0 %v2120, 20
        %v2224 = vpop.permute.xlu0 %2223
        %2225 = vrot.lane.b32.xlu0 %v2123, 20
        %v2226 = vpop.permute.xlu0 %2225
        %2227 = vrot.lane.b32.xlu0 %v2126, 20
        %v2228 = vpop.permute.xlu0 %2227
        %2229 = vrot.lane.b32.xlu0 %v2129, 20
        %v2230 = vpop.permute.xlu0 %2229
        %2231 = vrot.lane.b32.xlu0 %v2132, 20
        %v2232 = vpop.permute.xlu0 %2231
        %2233 = vrot.lane.b32.xlu0 %v2135, 20
        %v2234 = vpop.permute.xlu0 %2233
        %2235 = vrot.lane.b32.xlu0 %v2138, 20
        %v2236 = vpop.permute.xlu0 %2235
        %2237 = vrot.lane.b32.xlu0 %v2141, 20
        %v2238 = vpop.permute.xlu0 %2237
        %2239 = vrot.lane.b32.xlu0 %v2144, 20
        %v2240 = vpop.permute.xlu0 %2239
        %2241 = vrot.lane.b32.xlu0 %v2147, 20
        %v2242 = vpop.permute.xlu0 %2241
        %2243 = vrot.lane.b32.xlu0 %v2150, 20
        %v2244 = vpop.permute.xlu0 %2243
        %2245 = vrot.lane.b32.xlu0 %v2153, 20
        %v2246 = vpop.permute.xlu0 %2245
        %2247 = vrot.lane.b32.xlu0 %v2156, 20
        %v2248 = vpop.permute.xlu0 %2247
        %2249 = vrot.lane.b32.xlu0 %v2159, 20
        %v2250 = vpop.permute.xlu0 %2249
        %2251 = vrot.lane.b32.xlu0 %v2162, 20
        %v2252 = vpop.permute.xlu0 %2251
        %2253 = vrot.lane.b32.xlu0 %v2165, 20
        %v2254 = vpop.permute.xlu0 %2253
        %2255 = vrot.lane.b32.xlu0 %v2168, 20
        %v2256 = vpop.permute.xlu0 %2255
        %2257 = vrot.lane.b32.xlu0 %v2171, 20
        %v2258 = vpop.permute.xlu0 %2257
        %2259 = vrot.lane.b32.xlu0 %v2174, 20
        %v2260 = vpop.permute.xlu0 %2259
        %2261 = vrot.lane.b32.xlu0 %v2177, 20
        %v2262 = vpop.permute.xlu0 %2261
        %2263 = vrot.lane.b32.xlu0 %v2180, 20
        %v2264 = vpop.permute.xlu0 %2263
        %2265 = vrot.lane.b32.xlu0 %v2183, 20
        %v2266 = vpop.permute.xlu0 %2265
        %2267 = vrot.lane.b32.xlu0 %v2186, 20
        %v2268 = vpop.permute.xlu0 %2267
        %2269 = vrot.lane.b32.xlu0 %v2189, 20
        %v2270 = vpop.permute.xlu0 %2269
        %2271 = vrot.lane.b32.xlu0 %v2192, 20
        %v2272 = vpop.permute.xlu0 %2271
        %2273 = vrot.lane.b32.xlu0 %v2195, 20
        %v2274 = vpop.permute.xlu0 %2273
        %2275 = vrot.lane.b32.xlu0 %v2198, 20
        %v2276 = vpop.permute.xlu0 %2275
        %2277 = vrot.lane.b32.xlu0 %v2201, 20
        %v2278 = vpop.permute.xlu0 %2277
        %2279 = vrot.lane.b32.xlu0 %v2204, 20
        %v2280 = vpop.permute.xlu0 %2279
        %2281 = vrot.lane.b32.xlu0 %v2207, 20
        %v2282 = vpop.permute.xlu0 %2281
        %2283 = vrot.lane.b32.xlu0 %v2210, 20
        %v2284 = vpop.permute.xlu0 %2283
        %2285 = vrot.lane.b32.xlu0 %v2213, 20
        %v2286 = vpop.permute.xlu0 %2285
        %2287 = vrot.lane.b32.xlu0 %v2216, 20
        %v2288 = vpop.permute.xlu0 %2287
        %vm2325 = vcmask 191648
        %2326 = vst.msk [vmem:[#allocation2] sm:$0xf] %vm2325, %v2218
        %2327 = vst.msk [vmem:[#allocation2 + $0x4] sm:$0xf] %vm2325, %v2220
        %2328 = vst.msk [vmem:[#allocation2 + $0x8] sm:$0xf] %vm2325, %v2222
        %2329 = vst.msk [vmem:[#allocation2 + $0xc] sm:$0xf] %vm2325, %v2224
        %2330 = vst.msk [vmem:[#allocation2 + $0x10] sm:$0xf] %vm2325, %v2226
        %2331 = vst.msk [vmem:[#allocation2 + $0x14] sm:$0xf] %vm2325, %v2228
        %2332 = vst.msk [vmem:[#allocation2 + $0x18] sm:$0xf] %vm2325, %v2230
        %2333 = vst.msk [vmem:[#allocation2 + $0x1c] sm:$0xf] %vm2325, %v2232
        %2334 = vst.msk [vmem:[#allocation2 + $0x20] sm:$0xf] %vm2325, %v2234
        %2335 = vst.msk [vmem:[#allocation2 + $0x24] sm:$0xf] %vm2325, %v2236
        %2336 = vst.msk [vmem:[#allocation2 + $0x28] sm:$0xf] %vm2325, %v2238
        %2337 = vst.msk [vmem:[#allocation2 + $0x2c] sm:$0xf] %vm2325, %v2240
        %2338 = vst.msk [vmem:[#allocation2 + $0x30] sm:$0xf] %vm2325, %v2242
        %2339 = vst.msk [vmem:[#allocation2 + $0x34] sm:$0xf] %vm2325, %v2244
        %2340 = vst.msk [vmem:[#allocation2 + $0x38] sm:$0xf] %vm2325, %v2246
        %2341 = vst.msk [vmem:[#allocation2 + $0x3c] sm:$0xf] %vm2325, %v2248
        %2342 = vst.msk [vmem:[#allocation2 + $0x40] sm:$0xf] %vm2325, %v2250
        %2343 = vst.msk [vmem:[#allocation2 + $0x44] sm:$0xf] %vm2325, %v2252
        %2344 = vst.msk [vmem:[#allocation2 + $0x48] sm:$0xf] %vm2325, %v2254
        %2345 = vst.msk [vmem:[#allocation2 + $0x4c] sm:$0xf] %vm2325, %v2256
        %2346 = vst.msk [vmem:[#allocation2 + $0x50] sm:$0xf] %vm2325, %v2258
        %2347 = vst.msk [vmem:[#allocation2 + $0x54] sm:$0xf] %vm2325, %v2260
        %2348 = vst.msk [vmem:[#allocation2 + $0x58] sm:$0xf] %vm2325, %v2262
        %2349 = vst.msk [vmem:[#allocation2 + $0x5c] sm:$0xf] %vm2325, %v2264
        %2350 = vst.msk [vmem:[#allocation2 + $0x60] sm:$0xf] %vm2325, %v2266
        %2351 = vst.msk [vmem:[#allocation2 + $0x64] sm:$0xf] %vm2325, %v2268
        %2352 = vst.msk [vmem:[#allocation2 + $0x68] sm:$0xf] %vm2325, %v2270
        %2353 = vst.msk [vmem:[#allocation2 + $0x6c] sm:$0xf] %vm2325, %v2272
        %2354 = vst.msk [vmem:[#allocation2 + $0x70] sm:$0xf] %vm2325, %v2274
        %2355 = vst.msk [vmem:[#allocation2 + $0x74] sm:$0xf] %vm2325, %v2276
        %2356 = vst.msk [vmem:[#allocation2 + $0x78] sm:$0xf] %vm2325, %v2278
        %2357 = vst.msk [vmem:[#allocation2 + $0x7c] sm:$0xf] %vm2325, %v2280
        %2358 = vst.msk [vmem:[#allocation2 + $0x80] sm:$0xf] %vm2325, %v2282
        %2359 = vst.msk [vmem:[#allocation2 + $0x84] sm:$0xf] %vm2325, %v2284
        %2360 = vst.msk [vmem:[#allocation2 + $0x88] sm:$0xf] %vm2325, %v2286
        %2361 = vst.msk [vmem:[#allocation2 + $0x8c] sm:$0xf] %vm2325, %v2288
        %v2362 = vld [vmem:[%s190 + $0x10] sm:$0xc]
        %v2363 = vld [vmem:[%s190 + $0x14] sm:$0xf]
        %v2364 = vld [vmem:[%s190 + $0x18] sm:$0xf]
        %v2365 = vld [vmem:[%s190 + $0x1c] sm:$0xf]
        %v2366 = vld [vmem:[%s190 + $0x20] sm:$0xf]
        %v2367 = vld [vmem:[%s190 + $0x24] sm:$0xf]
        %v2368 = vld [vmem:[%s190 + $0x28] sm:$0xf]
        %v2369 = vld [vmem:[%s190 + $0x2c] sm:$0xf]
        %v2370 = vld [vmem:[%s190 + $0x30] sm:$0xf]
        %v2371 = vld [vmem:[%s190 + $0x34] sm:$0xf]
        %v2372 = vld [vmem:[%s190 + $0x38] sm:$0xf]
        %v2373 = vld [vmem:[%s190 + $0x3c] sm:$0xf]
        %v2374 = vld [vmem:[%s190 + $0x40] sm:$0xf]
        %v2375 = vld [vmem:[%s190 + $0x44] sm:$0xf]
        %v2376 = vld [vmem:[%s190 + $0x48] sm:$0xf]
        %v2377 = vld [vmem:[%s190 + $0x4c] sm:$0xf]
        %v2378 = vld [vmem:[%s190 + $0x50] sm:$0xf]
        %v2379 = vld [vmem:[%s190 + $0x54] sm:$0xf]
        %v2380 = vld [vmem:[%s190 + $0x58] sm:$0xf]
        %v2381 = vld [vmem:[%s190 + $0x5c] sm:$0xf]
        %v2382 = vld [vmem:[%s190 + $0x60] sm:$0xf]
        %v2383 = vld [vmem:[%s190 + $0x64] sm:$0xf]
        %v2384 = vld [vmem:[%s190 + $0x68] sm:$0xf]
        %v2385 = vld [vmem:[%s190 + $0x6c] sm:$0xf]
        %v2386 = vld [vmem:[%s190 + $0x70] sm:$0xf]
        %v2387 = vld [vmem:[%s190 + $0x74] sm:$0xf]
        %v2388 = vld [vmem:[%s190 + $0x78] sm:$0xf]
        %v2389 = vld [vmem:[%s190 + $0x7c] sm:$0xf]
        %v2390 = vld [vmem:[%s190 + $0x80] sm:$0xf]
        %v2391 = vld [vmem:[%s190 + $0x84] sm:$0xf]
        %v2392 = vld [vmem:[%s190 + $0x88] sm:$0xf]
        %v2393 = vld [vmem:[%s190 + $0x8c] sm:$0xf]
        %v2394 = vld [vmem:[%s190 + $0x90] sm:$0xf]
        %v2395 = vld [vmem:[%s190 + $0x94] sm:$0xf]
        %v2396 = vld [vmem:[%s190 + $0x98] sm:$0xf]
        %v2397 = vld [vmem:[%s190 + $0x9c] sm:$0xf]
        %v2398 = vld [vmem:[%s190 + $0xa0] sm:$0x3]
        %v2436 = vrot.slane %v2362, 6
        %v2437 = vrot.slane %v2436, 4
        %v2438 = vrot.slane %v2363, 6
        %v2439 = vsel %vm2107, %v2437, %v2438
        %v2440 = vrot.slane %v2438, 4
        %v2441 = vrot.slane %v2364, 6
        %v2442 = vsel %vm2107, %v2440, %v2441
        %v2443 = vrot.slane %v2441, 4
        %v2444 = vrot.slane %v2365, 6
        %v2445 = vsel %vm2107, %v2443, %v2444
        %v2446 = vrot.slane %v2444, 4
        %v2447 = vrot.slane %v2366, 6
        %v2448 = vsel %vm2107, %v2446, %v2447
        %v2449 = vrot.slane %v2447, 4
        %v2450 = vrot.slane %v2367, 6
        %v2451 = vsel %vm2107, %v2449, %v2450
        %v2452 = vrot.slane %v2450, 4
        %v2453 = vrot.slane %v2368, 6
        %v2454 = vsel %vm2107, %v2452, %v2453
        %v2455 = vrot.slane %v2453, 4
        %v2456 = vrot.slane %v2369, 6
        %v2457 = vsel %vm2107, %v2455, %v2456
        %v2458 = vrot.slane %v2456, 4
        %v2459 = vrot.slane %v2370, 6
        %v2460 = vsel %vm2107, %v2458, %v2459
        %v2461 = vrot.slane %v2459, 4
        %v2462 = vrot.slane %v2371, 6
        %v2463 = vsel %vm2107, %v2461, %v2462
        %v2464 = vrot.slane %v2462, 4
        %v2465 = vrot.slane %v2372, 6
        %v2466 = vsel %vm2107, %v2464, %v2465
        %v2467 = vrot.slane %v2465, 4
        %v2468 = vrot.slane %v2373, 6
        %v2469 = vsel %vm2107, %v2467, %v2468
        %v2470 = vrot.slane %v2468, 4
        %v2471 = vrot.slane %v2374, 6
        %v2472 = vsel %vm2107, %v2470, %v2471
        %v2473 = vrot.slane %v2471, 4
        %v2474 = vrot.slane %v2375, 6
        %v2475 = vsel %vm2107, %v2473, %v2474
        %v2476 = vrot.slane %v2474, 4
        %v2477 = vrot.slane %v2376, 6
        %v2478 = vsel %vm2107, %v2476, %v2477
        %v2479 = vrot.slane %v2477, 4
        %v2480 = vrot.slane %v2377, 6
        %v2481 = vsel %vm2107, %v2479, %v2480
        %v2482 = vrot.slane %v2480, 4
        %v2483 = vrot.slane %v2378, 6
        %v2484 = vsel %vm2107, %v2482, %v2483
        %v2485 = vrot.slane %v2483, 4
        %v2486 = vrot.slane %v2379, 6
        %v2487 = vsel %vm2107, %v2485, %v2486
        %v2488 = vrot.slane %v2486, 4
        %v2489 = vrot.slane %v2380, 6
        %v2490 = vsel %vm2107, %v2488, %v2489
        %v2491 = vrot.slane %v2489, 4
        %v2492 = vrot.slane %v2381, 6
        %v2493 = vsel %vm2107, %v2491, %v2492
        %v2494 = vrot.slane %v2492, 4
        %v2495 = vrot.slane %v2382, 6
        %v2496 = vsel %vm2107, %v2494, %v2495
        %v2497 = vrot.slane %v2495, 4
        %v2498 = vrot.slane %v2383, 6
        %v2499 = vsel %vm2107, %v2497, %v2498
        %v2500 = vrot.slane %v2498, 4
        %v2501 = vrot.slane %v2384, 6
        %v2502 = vsel %vm2107, %v2500, %v2501
        %v2503 = vrot.slane %v2501, 4
        %v2504 = vrot.slane %v2385, 6
        %v2505 = vsel %vm2107, %v2503, %v2504
        %v2506 = vrot.slane %v2504, 4
        %v2507 = vrot.slane %v2386, 6
        %v2508 = vsel %vm2107, %v2506, %v2507
        %v2509 = vrot.slane %v2507, 4
        %v2510 = vrot.slane %v2387, 6
        %v2511 = vsel %vm2107, %v2509, %v2510
        %v2512 = vrot.slane %v2510, 4
        %v2513 = vrot.slane %v2388, 6
        %v2514 = vsel %vm2107, %v2512, %v2513
        %v2515 = vrot.slane %v2513, 4
        %v2516 = vrot.slane %v2389, 6
        %v2517 = vsel %vm2107, %v2515, %v2516
        %v2518 = vrot.slane %v2516, 4
        %v2519 = vrot.slane %v2390, 6
        %v2520 = vsel %vm2107, %v2518, %v2519
        %v2521 = vrot.slane %v2519, 4
        %v2522 = vrot.slane %v2391, 6
        %v2523 = vsel %vm2107, %v2521, %v2522
        %v2524 = vrot.slane %v2522, 4
        %v2525 = vrot.slane %v2392, 6
        %v2526 = vsel %vm2107, %v2524, %v2525
        %v2527 = vrot.slane %v2525, 4
        %v2528 = vrot.slane %v2393, 6
        %v2529 = vsel %vm2107, %v2527, %v2528
        %v2530 = vrot.slane %v2528, 4
        %v2531 = vrot.slane %v2394, 6
        %v2532 = vsel %vm2107, %v2530, %v2531
        %v2533 = vrot.slane %v2531, 4
        %v2534 = vrot.slane %v2395, 6
        %v2535 = vsel %vm2107, %v2533, %v2534
        %v2536 = vrot.slane %v2534, 4
        %v2537 = vrot.slane %v2396, 6
        %v2538 = vsel %vm2107, %v2536, %v2537
        %v2539 = vrot.slane %v2537, 4
        %v2540 = vrot.slane %v2397, 6
        %v2541 = vsel %vm2107, %v2539, %v2540
        %v2542 = vrot.slane %v2540, 4
        %v2543 = vrot.slane %v2398, 6
        %v2544 = vsel %vm2107, %v2542, %v2543
        %2545 = vrot.lane.b32.xlu0 %v2439, 24
        %v2546 = vpop.permute.xlu0 %2545
        %2547 = vrot.lane.b32.xlu0 %v2442, 24
        %v2548 = vpop.permute.xlu0 %2547
        %2549 = vrot.lane.b32.xlu0 %v2445, 24
        %v2550 = vpop.permute.xlu0 %2549
        %2551 = vrot.lane.b32.xlu0 %v2448, 24
        %v2552 = vpop.permute.xlu0 %2551
        %2553 = vrot.lane.b32.xlu0 %v2451, 24
        %v2554 = vpop.permute.xlu0 %2553
        %2555 = vrot.lane.b32.xlu0 %v2454, 24
        %v2556 = vpop.permute.xlu0 %2555
        %2557 = vrot.lane.b32.xlu0 %v2457, 24
        %v2558 = vpop.permute.xlu0 %2557
        %2559 = vrot.lane.b32.xlu0 %v2460, 24
        %v2560 = vpop.permute.xlu0 %2559
        %2561 = vrot.lane.b32.xlu0 %v2463, 24
        %v2562 = vpop.permute.xlu0 %2561
        %2563 = vrot.lane.b32.xlu0 %v2466, 24
        %v2564 = vpop.permute.xlu0 %2563
        %2565 = vrot.lane.b32.xlu0 %v2469, 24
        %v2566 = vpop.permute.xlu0 %2565
        %2567 = vrot.lane.b32.xlu0 %v2472, 24
        %v2568 = vpop.permute.xlu0 %2567
        %2569 = vrot.lane.b32.xlu0 %v2475, 24
        %v2570 = vpop.permute.xlu0 %2569
        %2571 = vrot.lane.b32.xlu0 %v2478, 24
        %v2572 = vpop.permute.xlu0 %2571
        %2573 = vrot.lane.b32.xlu0 %v2481, 24
        %v2574 = vpop.permute.xlu0 %2573
        %2575 = vrot.lane.b32.xlu0 %v2484, 24
        %v2576 = vpop.permute.xlu0 %2575
        %2577 = vrot.lane.b32.xlu0 %v2487, 24
        %v2578 = vpop.permute.xlu0 %2577
        %2579 = vrot.lane.b32.xlu0 %v2490, 24
        %v2580 = vpop.permute.xlu0 %2579
        %2581 = vrot.lane.b32.xlu0 %v2493, 24
        %v2582 = vpop.permute.xlu0 %2581
        %2583 = vrot.lane.b32.xlu0 %v2496, 24
        %v2584 = vpop.permute.xlu0 %2583
        %2585 = vrot.lane.b32.xlu0 %v2499, 24
        %v2586 = vpop.permute.xlu0 %2585
        %2587 = vrot.lane.b32.xlu0 %v2502, 24
        %v2588 = vpop.permute.xlu0 %2587
        %2589 = vrot.lane.b32.xlu0 %v2505, 24
        %v2590 = vpop.permute.xlu0 %2589
        %2591 = vrot.lane.b32.xlu0 %v2508, 24
        %v2592 = vpop.permute.xlu0 %2591
        %2593 = vrot.lane.b32.xlu0 %v2511, 24
        %v2594 = vpop.permute.xlu0 %2593
        %2595 = vrot.lane.b32.xlu0 %v2514, 24
        %v2596 = vpop.permute.xlu0 %2595
        %2597 = vrot.lane.b32.xlu0 %v2517, 24
        %v2598 = vpop.permute.xlu0 %2597
        %2599 = vrot.lane.b32.xlu0 %v2520, 24
        %v2600 = vpop.permute.xlu0 %2599
        %2601 = vrot.lane.b32.xlu0 %v2523, 24
        %v2602 = vpop.permute.xlu0 %2601
        %2603 = vrot.lane.b32.xlu0 %v2526, 24
        %v2604 = vpop.permute.xlu0 %2603
        %2605 = vrot.lane.b32.xlu0 %v2529, 24
        %v2606 = vpop.permute.xlu0 %2605
        %2607 = vrot.lane.b32.xlu0 %v2532, 24
        %v2608 = vpop.permute.xlu0 %2607
        %2609 = vrot.lane.b32.xlu0 %v2535, 24
        %v2610 = vpop.permute.xlu0 %2609
        %2611 = vrot.lane.b32.xlu0 %v2538, 24
        %v2612 = vpop.permute.xlu0 %2611
        %2613 = vrot.lane.b32.xlu0 %v2541, 24
        %v2614 = vpop.permute.xlu0 %2613
        %2615 = vrot.lane.b32.xlu0 %v2544, 24
        %v2616 = vpop.permute.xlu0 %2615
        %vm2653 = vcmask 224448
        %2654 = vst.msk [vmem:[#allocation2] sm:$0xf] %vm2653, %v2546
        %2655 = vst.msk [vmem:[#allocation2 + $0x4] sm:$0xf] %vm2653, %v2548
        %2656 = vst.msk [vmem:[#allocation2 + $0x8] sm:$0xf] %vm2653, %v2550
        %2657 = vst.msk [vmem:[#allocation2 + $0xc] sm:$0xf] %vm2653, %v2552
        %2658 = vst.msk [vmem:[#allocation2 + $0x10] sm:$0xf] %vm2653, %v2554
        %2659 = vst.msk [vmem:[#allocation2 + $0x14] sm:$0xf] %vm2653, %v2556
        %2660 = vst.msk [vmem:[#allocation2 + $0x18] sm:$0xf] %vm2653, %v2558
        %2661 = vst.msk [vmem:[#allocation2 + $0x1c] sm:$0xf] %vm2653, %v2560
        %2662 = vst.msk [vmem:[#allocation2 + $0x20] sm:$0xf] %vm2653, %v2562
        %2663 = vst.msk [vmem:[#allocation2 + $0x24] sm:$0xf] %vm2653, %v2564
        %2664 = vst.msk [vmem:[#allocation2 + $0x28] sm:$0xf] %vm2653, %v2566
        %2665 = vst.msk [vmem:[#allocation2 + $0x2c] sm:$0xf] %vm2653, %v2568
        %2666 = vst.msk [vmem:[#allocation2 + $0x30] sm:$0xf] %vm2653, %v2570
        %2667 = vst.msk [vmem:[#allocation2 + $0x34] sm:$0xf] %vm2653, %v2572
        %2668 = vst.msk [vmem:[#allocation2 + $0x38] sm:$0xf] %vm2653, %v2574
        %2669 = vst.msk [vmem:[#allocation2 + $0x3c] sm:$0xf] %vm2653, %v2576
        %2670 = vst.msk [vmem:[#allocation2 + $0x40] sm:$0xf] %vm2653, %v2578
        %2671 = vst.msk [vmem:[#allocation2 + $0x44] sm:$0xf] %vm2653, %v2580
        %2672 = vst.msk [vmem:[#allocation2 + $0x48] sm:$0xf] %vm2653, %v2582
        %2673 = vst.msk [vmem:[#allocation2 + $0x4c] sm:$0xf] %vm2653, %v2584
        %2674 = vst.msk [vmem:[#allocation2 + $0x50] sm:$0xf] %vm2653, %v2586
        %2675 = vst.msk [vmem:[#allocation2 + $0x54] sm:$0xf] %vm2653, %v2588
        %2676 = vst.msk [vmem:[#allocation2 + $0x58] sm:$0xf] %vm2653, %v2590
        %2677 = vst.msk [vmem:[#allocation2 + $0x5c] sm:$0xf] %vm2653, %v2592
        %2678 = vst.msk [vmem:[#allocation2 + $0x60] sm:$0xf] %vm2653, %v2594
        %2679 = vst.msk [vmem:[#allocation2 + $0x64] sm:$0xf] %vm2653, %v2596
        %2680 = vst.msk [vmem:[#allocation2 + $0x68] sm:$0xf] %vm2653, %v2598
        %2681 = vst.msk [vmem:[#allocation2 + $0x6c] sm:$0xf] %vm2653, %v2600
        %2682 = vst.msk [vmem:[#allocation2 + $0x70] sm:$0xf] %vm2653, %v2602
        %2683 = vst.msk [vmem:[#allocation2 + $0x74] sm:$0xf] %vm2653, %v2604
        %2684 = vst.msk [vmem:[#allocation2 + $0x78] sm:$0xf] %vm2653, %v2606
        %2685 = vst.msk [vmem:[#allocation2 + $0x7c] sm:$0xf] %vm2653, %v2608
        %2686 = vst.msk [vmem:[#allocation2 + $0x80] sm:$0xf] %vm2653, %v2610
        %2687 = vst.msk [vmem:[#allocation2 + $0x84] sm:$0xf] %vm2653, %v2612
        %2688 = vst.msk [vmem:[#allocation2 + $0x88] sm:$0xf] %vm2653, %v2614
        %2689 = vst.msk [vmem:[#allocation2 + $0x8c] sm:$0xf] %vm2653, %v2616
        %v2690 = vld [vmem:[%s190 + $0x10] sm:$0xc]
        %v2691 = vld [vmem:[%s190 + $0x14] sm:$0xf]
        %v2692 = vld [vmem:[%s190 + $0x18] sm:$0xf]
        %v2693 = vld [vmem:[%s190 + $0x1c] sm:$0xf]
        %v2694 = vld [vmem:[%s190 + $0x20] sm:$0xf]
        %v2695 = vld [vmem:[%s190 + $0x24] sm:$0xf]
        %v2696 = vld [vmem:[%s190 + $0x28] sm:$0xf]
        %v2697 = vld [vmem:[%s190 + $0x2c] sm:$0xf]
        %v2698 = vld [vmem:[%s190 + $0x30] sm:$0xf]
        %v2699 = vld [vmem:[%s190 + $0x34] sm:$0xf]
        %v2700 = vld [vmem:[%s190 + $0x38] sm:$0xf]
        %v2701 = vld [vmem:[%s190 + $0x3c] sm:$0xf]
        %v2702 = vld [vmem:[%s190 + $0x40] sm:$0xf]
        %v2703 = vld [vmem:[%s190 + $0x44] sm:$0xf]
        %v2704 = vld [vmem:[%s190 + $0x48] sm:$0xf]
        %v2705 = vld [vmem:[%s190 + $0x4c] sm:$0xf]
        %v2706 = vld [vmem:[%s190 + $0x50] sm:$0xf]
        %v2707 = vld [vmem:[%s190 + $0x54] sm:$0xf]
        %v2708 = vld [vmem:[%s190 + $0x58] sm:$0xf]
        %v2709 = vld [vmem:[%s190 + $0x5c] sm:$0xf]
        %v2710 = vld [vmem:[%s190 + $0x60] sm:$0xf]
        %v2711 = vld [vmem:[%s190 + $0x64] sm:$0xf]
        %v2712 = vld [vmem:[%s190 + $0x68] sm:$0xf]
        %v2713 = vld [vmem:[%s190 + $0x6c] sm:$0xf]
        %v2714 = vld [vmem:[%s190 + $0x70] sm:$0xf]
        %v2715 = vld [vmem:[%s190 + $0x74] sm:$0xf]
        %v2716 = vld [vmem:[%s190 + $0x78] sm:$0xf]
        %v2717 = vld [vmem:[%s190 + $0x7c] sm:$0xf]
        %v2718 = vld [vmem:[%s190 + $0x80] sm:$0xf]
        %v2719 = vld [vmem:[%s190 + $0x84] sm:$0xf]
        %v2720 = vld [vmem:[%s190 + $0x88] sm:$0xf]
        %v2721 = vld [vmem:[%s190 + $0x8c] sm:$0xf]
        %v2722 = vld [vmem:[%s190 + $0x90] sm:$0xf]
        %v2723 = vld [vmem:[%s190 + $0x94] sm:$0xf]
        %v2724 = vld [vmem:[%s190 + $0x98] sm:$0xf]
        %v2725 = vld [vmem:[%s190 + $0x9c] sm:$0xf]
        %v2726 = vld [vmem:[%s190 + $0xa0] sm:$0x7]
        %vm2727 = vsmask.f32 1280
        %vm2728 = vsmask.f32 5392
        %vm2729 = vmor %vm2727, %vm2728
        %v2731 = vshrl.u32 %v2690, 16
        %v2733 = vrot.slane %v2731, 6
        %v2734 = vshll.u32 %v2690, 16
        %v2736 = vrot.slane %v2734, 7
        %v2737 = vor.u32 %v2733, %v2736
        %v2738 = vrot.slane %v2737, 4
        %v2740 = vshrl.u32 %v2691, 16
        %v2742 = vrot.slane %v2740, 6
        %v2743 = vshll.u32 %v2691, 16
        %v2745 = vrot.slane %v2743, 7
        %v2746 = vor.u32 %v2742, %v2745
        %v2747 = vsel %vm2729, %v2738, %v2746
        %v2748 = vrot.slane %v2746, 4
        %v2750 = vshrl.u32 %v2692, 16
        %v2752 = vrot.slane %v2750, 6
        %v2753 = vshll.u32 %v2692, 16
        %v2755 = vrot.slane %v2753, 7
        %v2756 = vor.u32 %v2752, %v2755
        %v2757 = vsel %vm2729, %v2748, %v2756
        %v2758 = vrot.slane %v2756, 4
        %v2760 = vshrl.u32 %v2693, 16
        %v2762 = vrot.slane %v2760, 6
        %v2763 = vshll.u32 %v2693, 16
        %v2765 = vrot.slane %v2763, 7
        %v2766 = vor.u32 %v2762, %v2765
        %v2767 = vsel %vm2729, %v2758, %v2766
        %v2768 = vrot.slane %v2766, 4
        %v2770 = vshrl.u32 %v2694, 16
        %v2772 = vrot.slane %v2770, 6
        %v2773 = vshll.u32 %v2694, 16
        %v2775 = vrot.slane %v2773, 7
        %v2776 = vor.u32 %v2772, %v2775
        %v2777 = vsel %vm2729, %v2768, %v2776
        %v2778 = vrot.slane %v2776, 4
        %v2780 = vshrl.u32 %v2695, 16
        %v2782 = vrot.slane %v2780, 6
        %v2783 = vshll.u32 %v2695, 16
        %v2785 = vrot.slane %v2783, 7
        %v2786 = vor.u32 %v2782, %v2785
        %v2787 = vsel %vm2729, %v2778, %v2786
        %v2788 = vrot.slane %v2786, 4
        %v2790 = vshrl.u32 %v2696, 16
        %v2792 = vrot.slane %v2790, 6
        %v2793 = vshll.u32 %v2696, 16
        %v2795 = vrot.slane %v2793, 7
        %v2796 = vor.u32 %v2792, %v2795
        %v2797 = vsel %vm2729, %v2788, %v2796
        %v2798 = vrot.slane %v2796, 4
        %v2800 = vshrl.u32 %v2697, 16
        %v2802 = vrot.slane %v2800, 6
        %v2803 = vshll.u32 %v2697, 16
        %v2805 = vrot.slane %v2803, 7
        %v2806 = vor.u32 %v2802, %v2805
        %v2807 = vsel %vm2729, %v2798, %v2806
        %v2808 = vrot.slane %v2806, 4
        %v2810 = vshrl.u32 %v2698, 16
        %v2812 = vrot.slane %v2810, 6
        %v2813 = vshll.u32 %v2698, 16
        %v2815 = vrot.slane %v2813, 7
        %v2816 = vor.u32 %v2812, %v2815
        %v2817 = vsel %vm2729, %v2808, %v2816
        %v2818 = vrot.slane %v2816, 4
        %v2820 = vshrl.u32 %v2699, 16
        %v2822 = vrot.slane %v2820, 6
        %v2823 = vshll.u32 %v2699, 16
        %v2825 = vrot.slane %v2823, 7
        %v2826 = vor.u32 %v2822, %v2825
        %v2827 = vsel %vm2729, %v2818, %v2826
        %v2828 = vrot.slane %v2826, 4
        %v2830 = vshrl.u32 %v2700, 16
        %v2832 = vrot.slane %v2830, 6
        %v2833 = vshll.u32 %v2700, 16
        %v2835 = vrot.slane %v2833, 7
        %v2836 = vor.u32 %v2832, %v2835
        %v2837 = vsel %vm2729, %v2828, %v2836
        %v2838 = vrot.slane %v2836, 4
        %v2840 = vshrl.u32 %v2701, 16
        %v2842 = vrot.slane %v2840, 6
        %v2843 = vshll.u32 %v2701, 16
        %v2845 = vrot.slane %v2843, 7
        %v2846 = vor.u32 %v2842, %v2845
        %v2847 = vsel %vm2729, %v2838, %v2846
        %v2848 = vrot.slane %v2846, 4
        %v2850 = vshrl.u32 %v2702, 16
        %v2852 = vrot.slane %v2850, 6
        %v2853 = vshll.u32 %v2702, 16
        %v2855 = vrot.slane %v2853, 7
        %v2856 = vor.u32 %v2852, %v2855
        %v2857 = vsel %vm2729, %v2848, %v2856
        %v2858 = vrot.slane %v2856, 4
        %v2860 = vshrl.u32 %v2703, 16
        %v2862 = vrot.slane %v2860, 6
        %v2863 = vshll.u32 %v2703, 16
        %v2865 = vrot.slane %v2863, 7
        %v2866 = vor.u32 %v2862, %v2865
        %v2867 = vsel %vm2729, %v2858, %v2866
        %v2868 = vrot.slane %v2866, 4
        %v2870 = vshrl.u32 %v2704, 16
        %v2872 = vrot.slane %v2870, 6
        %v2873 = vshll.u32 %v2704, 16
        %v2875 = vrot.slane %v2873, 7
        %v2876 = vor.u32 %v2872, %v2875
        %v2877 = vsel %vm2729, %v2868, %v2876
        %v2878 = vrot.slane %v2876, 4
        %v2880 = vshrl.u32 %v2705, 16
        %v2882 = vrot.slane %v2880, 6
        %v2883 = vshll.u32 %v2705, 16
        %v2885 = vrot.slane %v2883, 7
        %v2886 = vor.u32 %v2882, %v2885
        %v2887 = vsel %vm2729, %v2878, %v2886
        %v2888 = vrot.slane %v2886, 4
        %v2890 = vshrl.u32 %v2706, 16
        %v2892 = vrot.slane %v2890, 6
        %v2893 = vshll.u32 %v2706, 16
        %v2895 = vrot.slane %v2893, 7
        %v2896 = vor.u32 %v2892, %v2895
        %v2897 = vsel %vm2729, %v2888, %v2896
        %v2898 = vrot.slane %v2896, 4
        %v2900 = vshrl.u32 %v2707, 16
        %v2902 = vrot.slane %v2900, 6
        %v2903 = vshll.u32 %v2707, 16
        %v2905 = vrot.slane %v2903, 7
        %v2906 = vor.u32 %v2902, %v2905
        %v2907 = vsel %vm2729, %v2898, %v2906
        %v2908 = vrot.slane %v2906, 4
        %v2910 = vshrl.u32 %v2708, 16
        %v2912 = vrot.slane %v2910, 6
        %v2913 = vshll.u32 %v2708, 16
        %v2915 = vrot.slane %v2913, 7
        %v2916 = vor.u32 %v2912, %v2915
        %v2917 = vsel %vm2729, %v2908, %v2916
        %v2918 = vrot.slane %v2916, 4
        %v2920 = vshrl.u32 %v2709, 16
        %v2922 = vrot.slane %v2920, 6
        %v2923 = vshll.u32 %v2709, 16
        %v2925 = vrot.slane %v2923, 7
        %v2926 = vor.u32 %v2922, %v2925
        %v2927 = vsel %vm2729, %v2918, %v2926
        %v2928 = vrot.slane %v2926, 4
        %v2930 = vshrl.u32 %v2710, 16
        %v2932 = vrot.slane %v2930, 6
        %v2933 = vshll.u32 %v2710, 16
        %v2935 = vrot.slane %v2933, 7
        %v2936 = vor.u32 %v2932, %v2935
        %v2937 = vsel %vm2729, %v2928, %v2936
        %v2938 = vrot.slane %v2936, 4
        %v2940 = vshrl.u32 %v2711, 16
        %v2942 = vrot.slane %v2940, 6
        %v2943 = vshll.u32 %v2711, 16
        %v2945 = vrot.slane %v2943, 7
        %v2946 = vor.u32 %v2942, %v2945
        %v2947 = vsel %vm2729, %v2938, %v2946
        %v2948 = vrot.slane %v2946, 4
        %v2950 = vshrl.u32 %v2712, 16
        %v2952 = vrot.slane %v2950, 6
        %v2953 = vshll.u32 %v2712, 16
        %v2955 = vrot.slane %v2953, 7
        %v2956 = vor.u32 %v2952, %v2955
        %v2957 = vsel %vm2729, %v2948, %v2956
        %v2958 = vrot.slane %v2956, 4
        %v2960 = vshrl.u32 %v2713, 16
        %v2962 = vrot.slane %v2960, 6
        %v2963 = vshll.u32 %v2713, 16
        %v2965 = vrot.slane %v2963, 7
        %v2966 = vor.u32 %v2962, %v2965
        %v2967 = vsel %vm2729, %v2958, %v2966
        %v2968 = vrot.slane %v2966, 4
        %v2970 = vshrl.u32 %v2714, 16
        %v2972 = vrot.slane %v2970, 6
        %v2973 = vshll.u32 %v2714, 16
        %v2975 = vrot.slane %v2973, 7
        %v2976 = vor.u32 %v2972, %v2975
        %v2977 = vsel %vm2729, %v2968, %v2976
        %v2978 = vrot.slane %v2976, 4
        %v2980 = vshrl.u32 %v2715, 16
        %v2982 = vrot.slane %v2980, 6
        %v2983 = vshll.u32 %v2715, 16
        %v2985 = vrot.slane %v2983, 7
        %v2986 = vor.u32 %v2982, %v2985
        %v2987 = vsel %vm2729, %v2978, %v2986
        %v2988 = vrot.slane %v2986, 4
        %v2990 = vshrl.u32 %v2716, 16
        %v2992 = vrot.slane %v2990, 6
        %v2993 = vshll.u32 %v2716, 16
        %v2995 = vrot.slane %v2993, 7
        %v2996 = vor.u32 %v2992, %v2995
        %v2997 = vsel %vm2729, %v2988, %v2996
        %v2998 = vrot.slane %v2996, 4
        %v3000 = vshrl.u32 %v2717, 16
        %v3002 = vrot.slane %v3000, 6
        %v3003 = vshll.u32 %v2717, 16
        %v3005 = vrot.slane %v3003, 7
        %v3006 = vor.u32 %v3002, %v3005
        %v3007 = vsel %vm2729, %v2998, %v3006
        %v3008 = vrot.slane %v3006, 4
        %v3010 = vshrl.u32 %v2718, 16
        %v3012 = vrot.slane %v3010, 6
        %v3013 = vshll.u32 %v2718, 16
        %v3015 = vrot.slane %v3013, 7
        %v3016 = vor.u32 %v3012, %v3015
        %v3017 = vsel %vm2729, %v3008, %v3016
        %v3018 = vrot.slane %v3016, 4
        %v3020 = vshrl.u32 %v2719, 16
        %v3022 = vrot.slane %v3020, 6
        %v3023 = vshll.u32 %v2719, 16
        %v3025 = vrot.slane %v3023, 7
        %v3026 = vor.u32 %v3022, %v3025
        %v3027 = vsel %vm2729, %v3018, %v3026
        %v3028 = vrot.slane %v3026, 4
        %v3030 = vshrl.u32 %v2720, 16
        %v3032 = vrot.slane %v3030, 6
        %v3033 = vshll.u32 %v2720, 16
        %v3035 = vrot.slane %v3033, 7
        %v3036 = vor.u32 %v3032, %v3035
        %v3037 = vsel %vm2729, %v3028, %v3036
        %v3038 = vrot.slane %v3036, 4
        %v3040 = vshrl.u32 %v2721, 16
        %v3042 = vrot.slane %v3040, 6
        %v3043 = vshll.u32 %v2721, 16
        %v3045 = vrot.slane %v3043, 7
        %v3046 = vor.u32 %v3042, %v3045
        %v3047 = vsel %vm2729, %v3038, %v3046
        %v3048 = vrot.slane %v3046, 4
        %v3050 = vshrl.u32 %v2722, 16
        %v3052 = vrot.slane %v3050, 6
        %v3053 = vshll.u32 %v2722, 16
        %v3055 = vrot.slane %v3053, 7
        %v3056 = vor.u32 %v3052, %v3055
        %v3057 = vsel %vm2729, %v3048, %v3056
        %v3058 = vrot.slane %v3056, 4
        %v3060 = vshrl.u32 %v2723, 16
        %v3062 = vrot.slane %v3060, 6
        %v3063 = vshll.u32 %v2723, 16
        %v3065 = vrot.slane %v3063, 7
        %v3066 = vor.u32 %v3062, %v3065
        %v3067 = vsel %vm2729, %v3058, %v3066
        %v3068 = vrot.slane %v3066, 4
        %v3070 = vshrl.u32 %v2724, 16
        %v3072 = vrot.slane %v3070, 6
        %v3073 = vshll.u32 %v2724, 16
        %v3075 = vrot.slane %v3073, 7
        %v3076 = vor.u32 %v3072, %v3075
        %v3077 = vsel %vm2729, %v3068, %v3076
        %v3078 = vrot.slane %v3076, 4
        %v3080 = vshrl.u32 %v2725, 16
        %v3082 = vrot.slane %v3080, 6
        %v3083 = vshll.u32 %v2725, 16
        %v3085 = vrot.slane %v3083, 7
        %v3086 = vor.u32 %v3082, %v3085
        %v3087 = vsel %vm2729, %v3078, %v3086
        %v3088 = vrot.slane %v3086, 4
        %v3090 = vshrl.u32 %v2726, 16
        %v3092 = vrot.slane %v3090, 6
        %v3093 = vshll.u32 %v2726, 16
        %v3095 = vrot.slane %v3093, 7
        %v3096 = vor.u32 %v3092, %v3095
        %v3097 = vsel %vm2729, %v3088, %v3096
        %3098 = vrot.lane.b32.xlu0 %v2747, 28
        %v3099 = vpop.permute.xlu0 %3098
        %3100 = vrot.lane.b32.xlu0 %v2757, 28
        %v3101 = vpop.permute.xlu0 %3100
        %3102 = vrot.lane.b32.xlu0 %v2767, 28
        %v3103 = vpop.permute.xlu0 %3102
        %3104 = vrot.lane.b32.xlu0 %v2777, 28
        %v3105 = vpop.permute.xlu0 %3104
        %3106 = vrot.lane.b32.xlu0 %v2787, 28
        %v3107 = vpop.permute.xlu0 %3106
        %3108 = vrot.lane.b32.xlu0 %v2797, 28
        %v3109 = vpop.permute.xlu0 %3108
        %3110 = vrot.lane.b32.xlu0 %v2807, 28
        %v3111 = vpop.permute.xlu0 %3110
        %3112 = vrot.lane.b32.xlu0 %v2817, 28
        %v3113 = vpop.permute.xlu0 %3112
        %3114 = vrot.lane.b32.xlu0 %v2827, 28
        %v3115 = vpop.permute.xlu0 %3114
        %3116 = vrot.lane.b32.xlu0 %v2837, 28
        %v3117 = vpop.permute.xlu0 %3116
        %3118 = vrot.lane.b32.xlu0 %v2847, 28
        %v3119 = vpop.permute.xlu0 %3118
        %3120 = vrot.lane.b32.xlu0 %v2857, 28
        %v3121 = vpop.permute.xlu0 %3120
        %3122 = vrot.lane.b32.xlu0 %v2867, 28
        %v3123 = vpop.permute.xlu0 %3122
        %3124 = vrot.lane.b32.xlu0 %v2877, 28
        %v3125 = vpop.permute.xlu0 %3124
        %3126 = vrot.lane.b32.xlu0 %v2887, 28
        %v3127 = vpop.permute.xlu0 %3126
        %3128 = vrot.lane.b32.xlu0 %v2897, 28
        %v3129 = vpop.permute.xlu0 %3128
        %3130 = vrot.lane.b32.xlu0 %v2907, 28
        %v3131 = vpop.permute.xlu0 %3130
        %3132 = vrot.lane.b32.xlu0 %v2917, 28
        %v3133 = vpop.permute.xlu0 %3132
        %3134 = vrot.lane.b32.xlu0 %v2927, 28
        %v3135 = vpop.permute.xlu0 %3134
        %3136 = vrot.lane.b32.xlu0 %v2937, 28
        %v3137 = vpop.permute.xlu0 %3136
        %3138 = vrot.lane.b32.xlu0 %v2947, 28
        %v3139 = vpop.permute.xlu0 %3138
        %3140 = vrot.lane.b32.xlu0 %v2957, 28
        %v3141 = vpop.permute.xlu0 %3140
        %3142 = vrot.lane.b32.xlu0 %v2967, 28
        %v3143 = vpop.permute.xlu0 %3142
        %3144 = vrot.lane.b32.xlu0 %v2977, 28
        %v3145 = vpop.permute.xlu0 %3144
        %3146 = vrot.lane.b32.xlu0 %v2987, 28
        %v3147 = vpop.permute.xlu0 %3146
        %3148 = vrot.lane.b32.xlu0 %v2997, 28
        %v3149 = vpop.permute.xlu0 %3148
        %3150 = vrot.lane.b32.xlu0 %v3007, 28
        %v3151 = vpop.permute.xlu0 %3150
        %3152 = vrot.lane.b32.xlu0 %v3017, 28
        %v3153 = vpop.permute.xlu0 %3152
        %3154 = vrot.lane.b32.xlu0 %v3027, 28
        %v3155 = vpop.permute.xlu0 %3154
        %3156 = vrot.lane.b32.xlu0 %v3037, 28
        %v3157 = vpop.permute.xlu0 %3156
        %3158 = vrot.lane.b32.xlu0 %v3047, 28
        %v3159 = vpop.permute.xlu0 %3158
        %3160 = vrot.lane.b32.xlu0 %v3057, 28
        %v3161 = vpop.permute.xlu0 %3160
        %3162 = vrot.lane.b32.xlu0 %v3067, 28
        %v3163 = vpop.permute.xlu0 %3162
        %3164 = vrot.lane.b32.xlu0 %v3077, 28
        %v3165 = vpop.permute.xlu0 %3164
        %3166 = vrot.lane.b32.xlu0 %v3087, 28
        %v3167 = vpop.permute.xlu0 %3166
        %3168 = vrot.lane.b32.xlu0 %v3097, 28
        %v3169 = vpop.permute.xlu0 %3168
        %vm3206 = vcmask 257248
        %3207 = vst.msk [vmem:[#allocation2] sm:$0xf] %vm3206, %v3099
        %3208 = vst.msk [vmem:[#allocation2 + $0x4] sm:$0xf] %vm3206, %v3101
        %3209 = vst.msk [vmem:[#allocation2 + $0x8] sm:$0xf] %vm3206, %v3103
        %3210 = vst.msk [vmem:[#allocation2 + $0xc] sm:$0xf] %vm3206, %v3105
        %3211 = vst.msk [vmem:[#allocation2 + $0x10] sm:$0xf] %vm3206, %v3107
        %3212 = vst.msk [vmem:[#allocation2 + $0x14] sm:$0xf] %vm3206, %v3109
        %3213 = vst.msk [vmem:[#allocation2 + $0x18] sm:$0xf] %vm3206, %v3111
        %3214 = vst.msk [vmem:[#allocation2 + $0x1c] sm:$0xf] %vm3206, %v3113
        %3215 = vst.msk [vmem:[#allocation2 + $0x20] sm:$0xf] %vm3206, %v3115
        %3216 = vst.msk [vmem:[#allocation2 + $0x24] sm:$0xf] %vm3206, %v3117
        %3217 = vst.msk [vmem:[#allocation2 + $0x28] sm:$0xf] %vm3206, %v3119
        %3218 = vst.msk [vmem:[#allocation2 + $0x2c] sm:$0xf] %vm3206, %v3121
        %3219 = vst.msk [vmem:[#allocation2 + $0x30] sm:$0xf] %vm3206, %v3123
        %3220 = vst.msk [vmem:[#allocation2 + $0x34] sm:$0xf] %vm3206, %v3125
        %3221 = vst.msk [vmem:[#allocation2 + $0x38] sm:$0xf] %vm3206, %v3127
        %3222 = vst.msk [vmem:[#allocation2 + $0x3c] sm:$0xf] %vm3206, %v3129
        %3223 = vst.msk [vmem:[#allocation2 + $0x40] sm:$0xf] %vm3206, %v3131
        %3224 = vst.msk [vmem:[#allocation2 + $0x44] sm:$0xf] %vm3206, %v3133
        %3225 = vst.msk [vmem:[#allocation2 + $0x48] sm:$0xf] %vm3206, %v3135
        %3226 = vst.msk [vmem:[#allocation2 + $0x4c] sm:$0xf] %vm3206, %v3137
        %3227 = vst.msk [vmem:[#allocation2 + $0x50] sm:$0xf] %vm3206, %v3139
        %3228 = vst.msk [vmem:[#allocation2 + $0x54] sm:$0xf] %vm3206, %v3141
        %3229 = vst.msk [vmem:[#allocation2 + $0x58] sm:$0xf] %vm3206, %v3143
        %3230 = vst.msk [vmem:[#allocation2 + $0x5c] sm:$0xf] %vm3206, %v3145
        %3231 = vst.msk [vmem:[#allocation2 + $0x60] sm:$0xf] %vm3206, %v3147
        %3232 = vst.msk [vmem:[#allocation2 + $0x64] sm:$0xf] %vm3206, %v3149
        %3233 = vst.msk [vmem:[#allocation2 + $0x68] sm:$0xf] %vm3206, %v3151
        %3234 = vst.msk [vmem:[#allocation2 + $0x6c] sm:$0xf] %vm3206, %v3153
        %3235 = vst.msk [vmem:[#allocation2 + $0x70] sm:$0xf] %vm3206, %v3155
        %3236 = vst.msk [vmem:[#allocation2 + $0x74] sm:$0xf] %vm3206, %v3157
        %3237 = vst.msk [vmem:[#allocation2 + $0x78] sm:$0xf] %vm3206, %v3159
        %3238 = vst.msk [vmem:[#allocation2 + $0x7c] sm:$0xf] %vm3206, %v3161
        %3239 = vst.msk [vmem:[#allocation2 + $0x80] sm:$0xf] %vm3206, %v3163
        %3240 = vst.msk [vmem:[#allocation2 + $0x84] sm:$0xf] %vm3206, %v3165
        %3241 = vst.msk [vmem:[#allocation2 + $0x88] sm:$0xf] %vm3206, %v3167
        %3242 = vst.msk [vmem:[#allocation2 + $0x8c] sm:$0xf] %vm3206, %v3169
        %v3243 = vld [vmem:[%s190 + $0x10] sm:$0x8]
        %v3244 = vld [vmem:[%s190 + $0x14] sm:$0xf]
        %v3245 = vld [vmem:[%s190 + $0x18] sm:$0xf]
        %v3246 = vld [vmem:[%s190 + $0x1c] sm:$0xf]
        %v3247 = vld [vmem:[%s190 + $0x20] sm:$0xf]
        %v3248 = vld [vmem:[%s190 + $0x24] sm:$0xf]
        %v3249 = vld [vmem:[%s190 + $0x28] sm:$0xf]
        %v3250 = vld [vmem:[%s190 + $0x2c] sm:$0xf]
        %v3251 = vld [vmem:[%s190 + $0x30] sm:$0xf]
        %v3252 = vld [vmem:[%s190 + $0x34] sm:$0xf]
        %v3253 = vld [vmem:[%s190 + $0x38] sm:$0xf]
        %v3254 = vld [vmem:[%s190 + $0x3c] sm:$0xf]
        %v3255 = vld [vmem:[%s190 + $0x40] sm:$0xf]
        %v3256 = vld [vmem:[%s190 + $0x44] sm:$0xf]
        %v3257 = vld [vmem:[%s190 + $0x48] sm:$0xf]
        %v3258 = vld [vmem:[%s190 + $0x4c] sm:$0xf]
        %v3259 = vld [vmem:[%s190 + $0x50] sm:$0xf]
        %v3260 = vld [vmem:[%s190 + $0x54] sm:$0xf]
        %v3261 = vld [vmem:[%s190 + $0x58] sm:$0xf]
        %v3262 = vld [vmem:[%s190 + $0x5c] sm:$0xf]
        %v3263 = vld [vmem:[%s190 + $0x60] sm:$0xf]
        %v3264 = vld [vmem:[%s190 + $0x64] sm:$0xf]
        %v3265 = vld [vmem:[%s190 + $0x68] sm:$0xf]
        %v3266 = vld [vmem:[%s190 + $0x6c] sm:$0xf]
        %v3267 = vld [vmem:[%s190 + $0x70] sm:$0xf]
        %v3268 = vld [vmem:[%s190 + $0x74] sm:$0xf]
        %v3269 = vld [vmem:[%s190 + $0x78] sm:$0xf]
        %v3270 = vld [vmem:[%s190 + $0x7c] sm:$0xf]
        %v3271 = vld [vmem:[%s190 + $0x80] sm:$0xf]
        %v3272 = vld [vmem:[%s190 + $0x84] sm:$0xf]
        %v3273 = vld [vmem:[%s190 + $0x88] sm:$0xf]
        %v3274 = vld [vmem:[%s190 + $0x8c] sm:$0xf]
        %v3275 = vld [vmem:[%s190 + $0x90] sm:$0xf]
        %v3276 = vld [vmem:[%s190 + $0x94] sm:$0xf]
        %v3277 = vld [vmem:[%s190 + $0x98] sm:$0xf]
        %v3278 = vld [vmem:[%s190 + $0x9c] sm:$0xf]
        %v3279 = vld [vmem:[%s190 + $0xa0] sm:$0x7]
        %vm3317 = vcmask 1040384
        %vm3318 = vcmask 1044484
        %vm3319 = vmor %vm3317, %vm3318
        %v3320 = vrot.slane %v3243, 7
        %v3321 = vrot.slane %v3320, 4
        %v3322 = vrot.slane %v3244, 7
        %v3323 = vsel %vm3319, %v3321, %v3322
        %v3324 = vrot.slane %v3322, 4
        %v3325 = vrot.slane %v3245, 7
        %v3326 = vsel %vm3319, %v3324, %v3325
        %v3327 = vrot.slane %v3325, 4
        %v3328 = vrot.slane %v3246, 7
        %v3329 = vsel %vm3319, %v3327, %v3328
        %v3330 = vrot.slane %v3328, 4
        %v3331 = vrot.slane %v3247, 7
        %v3332 = vsel %vm3319, %v3330, %v3331
        %v3333 = vrot.slane %v3331, 4
        %v3334 = vrot.slane %v3248, 7
        %v3335 = vsel %vm3319, %v3333, %v3334
        %v3336 = vrot.slane %v3334, 4
        %v3337 = vrot.slane %v3249, 7
        %v3338 = vsel %vm3319, %v3336, %v3337
        %v3339 = vrot.slane %v3337, 4
        %v3340 = vrot.slane %v3250, 7
        %v3341 = vsel %vm3319, %v3339, %v3340
        %v3342 = vrot.slane %v3340, 4
        %v3343 = vrot.slane %v3251, 7
        %v3344 = vsel %vm3319, %v3342, %v3343
        %v3345 = vrot.slane %v3343, 4
        %v3346 = vrot.slane %v3252, 7
        %v3347 = vsel %vm3319, %v3345, %v3346
        %v3348 = vrot.slane %v3346, 4
        %v3349 = vrot.slane %v3253, 7
        %v3350 = vsel %vm3319, %v3348, %v3349
        %v3351 = vrot.slane %v3349, 4
        %v3352 = vrot.slane %v3254, 7
        %v3353 = vsel %vm3319, %v3351, %v3352
        %v3354 = vrot.slane %v3352, 4
        %v3355 = vrot.slane %v3255, 7
        %v3356 = vsel %vm3319, %v3354, %v3355
        %v3357 = vrot.slane %v3355, 4
        %v3358 = vrot.slane %v3256, 7
        %v3359 = vsel %vm3319, %v3357, %v3358
        %v3360 = vrot.slane %v3358, 4
        %v3361 = vrot.slane %v3257, 7
        %v3362 = vsel %vm3319, %v3360, %v3361
        %v3363 = vrot.slane %v3361, 4
        %v3364 = vrot.slane %v3258, 7
        %v3365 = vsel %vm3319, %v3363, %v3364
        %v3366 = vrot.slane %v3364, 4
        %v3367 = vrot.slane %v3259, 7
        %v3368 = vsel %vm3319, %v3366, %v3367
        %v3369 = vrot.slane %v3367, 4
        %v3370 = vrot.slane %v3260, 7
        %v3371 = vsel %vm3319, %v3369, %v3370
        %v3372 = vrot.slane %v3370, 4
        %v3373 = vrot.slane %v3261, 7
        %v3374 = vsel %vm3319, %v3372, %v3373
        %v3375 = vrot.slane %v3373, 4
        %v3376 = vrot.slane %v3262, 7
        %v3377 = vsel %vm3319, %v3375, %v3376
        %v3378 = vrot.slane %v3376, 4
        %v3379 = vrot.slane %v3263, 7
        %v3380 = vsel %vm3319, %v3378, %v3379
        %v3381 = vrot.slane %v3379, 4
        %v3382 = vrot.slane %v3264, 7
        %v3383 = vsel %vm3319, %v3381, %v3382
        %v3384 = vrot.slane %v3382, 4
        %v3385 = vrot.slane %v3265, 7
        %v3386 = vsel %vm3319, %v3384, %v3385
        %v3387 = vrot.slane %v3385, 4
        %v3388 = vrot.slane %v3266, 7
        %v3389 = vsel %vm3319, %v3387, %v3388
        %v3390 = vrot.slane %v3388, 4
        %v3391 = vrot.slane %v3267, 7
        %v3392 = vsel %vm3319, %v3390, %v3391
        %v3393 = vrot.slane %v3391, 4
        %v3394 = vrot.slane %v3268, 7
        %v3395 = vsel %vm3319, %v3393, %v3394
        %v3396 = vrot.slane %v3394, 4
        %v3397 = vrot.slane %v3269, 7
        %v3398 = vsel %vm3319, %v3396, %v3397
        %v3399 = vrot.slane %v3397, 4
        %v3400 = vrot.slane %v3270, 7
        %v3401 = vsel %vm3319, %v3399, %v3400
        %v3402 = vrot.slane %v3400, 4
        %v3403 = vrot.slane %v3271, 7
        %v3404 = vsel %vm3319, %v3402, %v3403
        %v3405 = vrot.slane %v3403, 4
        %v3406 = vrot.slane %v3272, 7
        %v3407 = vsel %vm3319, %v3405, %v3406
        %v3408 = vrot.slane %v3406, 4
        %v3409 = vrot.slane %v3273, 7
        %v3410 = vsel %vm3319, %v3408, %v3409
        %v3411 = vrot.slane %v3409, 4
        %v3412 = vrot.slane %v3274, 7
        %v3413 = vsel %vm3319, %v3411, %v3412
        %v3414 = vrot.slane %v3412, 4
        %v3415 = vrot.slane %v3275, 7
        %v3416 = vsel %vm3319, %v3414, %v3415
        %v3417 = vrot.slane %v3415, 4
        %v3418 = vrot.slane %v3276, 7
        %v3419 = vsel %vm3319, %v3417, %v3418
        %v3420 = vrot.slane %v3418, 4
        %v3421 = vrot.slane %v3277, 7
        %v3422 = vsel %vm3319, %v3420, %v3421
        %v3423 = vrot.slane %v3421, 4
        %v3424 = vrot.slane %v3278, 7
        %v3425 = vsel %vm3319, %v3423, %v3424
        %v3426 = vrot.slane %v3424, 4
        %v3427 = vrot.slane %v3279, 7
        %v3428 = vsel %vm3319, %v3426, %v3427
        %3429 = vrot.lane.b32.xlu0 %v3323, 32
        %v3430 = vpop.permute.xlu0 %3429
        %3431 = vrot.lane.b32.xlu0 %v3326, 32
        %v3432 = vpop.permute.xlu0 %3431
        %3433 = vrot.lane.b32.xlu0 %v3329, 32
        %v3434 = vpop.permute.xlu0 %3433
        %3435 = vrot.lane.b32.xlu0 %v3332, 32
        %v3436 = vpop.permute.xlu0 %3435
        %3437 = vrot.lane.b32.xlu0 %v3335, 32
        %v3438 = vpop.permute.xlu0 %3437
        %3439 = vrot.lane.b32.xlu0 %v3338, 32
        %v3440 = vpop.permute.xlu0 %3439
        %3441 = vrot.lane.b32.xlu0 %v3341, 32
        %v3442 = vpop.permute.xlu0 %3441
        %3443 = vrot.lane.b32.xlu0 %v3344, 32
        %v3444 = vpop.permute.xlu0 %3443
        %3445 = vrot.lane.b32.xlu0 %v3347, 32
        %v3446 = vpop.permute.xlu0 %3445
        %3447 = vrot.lane.b32.xlu0 %v3350, 32
        %v3448 = vpop.permute.xlu0 %3447
        %3449 = vrot.lane.b32.xlu0 %v3353, 32
        %v3450 = vpop.permute.xlu0 %3449
        %3451 = vrot.lane.b32.xlu0 %v3356, 32
        %v3452 = vpop.permute.xlu0 %3451
        %3453 = vrot.lane.b32.xlu0 %v3359, 32
        %v3454 = vpop.permute.xlu0 %3453
        %3455 = vrot.lane.b32.xlu0 %v3362, 32
        %v3456 = vpop.permute.xlu0 %3455
        %3457 = vrot.lane.b32.xlu0 %v3365, 32
        %v3458 = vpop.permute.xlu0 %3457
        %3459 = vrot.lane.b32.xlu0 %v3368, 32
        %v3460 = vpop.permute.xlu0 %3459
        %3461 = vrot.lane.b32.xlu0 %v3371, 32
        %v3462 = vpop.permute.xlu0 %3461
        %3463 = vrot.lane.b32.xlu0 %v3374, 32
        %v3464 = vpop.permute.xlu0 %3463
        %3465 = vrot.lane.b32.xlu0 %v3377, 32
        %v3466 = vpop.permute.xlu0 %3465
        %3467 = vrot.lane.b32.xlu0 %v3380, 32
        %v3468 = vpop.permute.xlu0 %3467
        %3469 = vrot.lane.b32.xlu0 %v3383, 32
        %v3470 = vpop.permute.xlu0 %3469
        %3471 = vrot.lane.b32.xlu0 %v3386, 32
        %v3472 = vpop.permute.xlu0 %3471
        %3473 = vrot.lane.b32.xlu0 %v3389, 32
        %v3474 = vpop.permute.xlu0 %3473
        %3475 = vrot.lane.b32.xlu0 %v3392, 32
        %v3476 = vpop.permute.xlu0 %3475
        %3477 = vrot.lane.b32.xlu0 %v3395, 32
        %v3478 = vpop.permute.xlu0 %3477
        %3479 = vrot.lane.b32.xlu0 %v3398, 32
        %v3480 = vpop.permute.xlu0 %3479
        %3481 = vrot.lane.b32.xlu0 %v3401, 32
        %v3482 = vpop.permute.xlu0 %3481
        %3483 = vrot.lane.b32.xlu0 %v3404, 32
        %v3484 = vpop.permute.xlu0 %3483
        %3485 = vrot.lane.b32.xlu0 %v3407, 32
        %v3486 = vpop.permute.xlu0 %3485
        %3487 = vrot.lane.b32.xlu0 %v3410, 32
        %v3488 = vpop.permute.xlu0 %3487
        %3489 = vrot.lane.b32.xlu0 %v3413, 32
        %v3490 = vpop.permute.xlu0 %3489
        %3491 = vrot.lane.b32.xlu0 %v3416, 32
        %v3492 = vpop.permute.xlu0 %3491
        %3493 = vrot.lane.b32.xlu0 %v3419, 32
        %v3494 = vpop.permute.xlu0 %3493
        %3495 = vrot.lane.b32.xlu0 %v3422, 32
        %v3496 = vpop.permute.xlu0 %3495
        %3497 = vrot.lane.b32.xlu0 %v3425, 32
        %v3498 = vpop.permute.xlu0 %3497
        %3499 = vrot.lane.b32.xlu0 %v3428, 32
        %v3500 = vpop.permute.xlu0 %3499
        %vm3537 = vcmask 290048
        %3538 = vst.msk [vmem:[#allocation2] sm:$0xf] %vm3537, %v3430
        %3539 = vst.msk [vmem:[#allocation2 + $0x4] sm:$0xf] %vm3537, %v3432
        %3540 = vst.msk [vmem:[#allocation2 + $0x8] sm:$0xf] %vm3537, %v3434
        %3541 = vst.msk [vmem:[#allocation2 + $0xc] sm:$0xf] %vm3537, %v3436
        %3542 = vst.msk [vmem:[#allocation2 + $0x10] sm:$0xf] %vm3537, %v3438
        %3543 = vst.msk [vmem:[#allocation2 + $0x14] sm:$0xf] %vm3537, %v3440
        %3544 = vst.msk [vmem:[#allocation2 + $0x18] sm:$0xf] %vm3537, %v3442
        %3545 = vst.msk [vmem:[#allocation2 + $0x1c] sm:$0xf] %vm3537, %v3444
        %3546 = vst.msk [vmem:[#allocation2 + $0x20] sm:$0xf] %vm3537, %v3446
        %3547 = vst.msk [vmem:[#allocation2 + $0x24] sm:$0xf] %vm3537, %v3448
        %3548 = vst.msk [vmem:[#allocation2 + $0x28] sm:$0xf] %vm3537, %v3450
        %3549 = vst.msk [vmem:[#allocation2 + $0x2c] sm:$0xf] %vm3537, %v3452
        %3550 = vst.msk [vmem:[#allocation2 + $0x30] sm:$0xf] %vm3537, %v3454
        %3551 = vst.msk [vmem:[#allocation2 + $0x34] sm:$0xf] %vm3537, %v3456
        %3552 = vst.msk [vmem:[#allocation2 + $0x38] sm:$0xf] %vm3537, %v3458
        %3553 = vst.msk [vmem:[#allocation2 + $0x3c] sm:$0xf] %vm3537, %v3460
        %3554 = vst.msk [vmem:[#allocation2 + $0x40] sm:$0xf] %vm3537, %v3462
        %3555 = vst.msk [vmem:[#allocation2 + $0x44] sm:$0xf] %vm3537, %v3464
        %3556 = vst.msk [vmem:[#allocation2 + $0x48] sm:$0xf] %vm3537, %v3466
        %3557 = vst.msk [vmem:[#allocation2 + $0x4c] sm:$0xf] %vm3537, %v3468
        %3558 = vst.msk [vmem:[#allocation2 + $0x50] sm:$0xf] %vm3537, %v3470
        %3559 = vst.msk [vmem:[#allocation2 + $0x54] sm:$0xf] %vm3537, %v3472
        %3560 = vst.msk [vmem:[#allocation2 + $0x58] sm:$0xf] %vm3537, %v3474
        %3561 = vst.msk [vmem:[#allocation2 + $0x5c] sm:$0xf] %vm3537, %v3476
        %3562 = vst.msk [vmem:[#allocation2 + $0x60] sm:$0xf] %vm3537, %v3478
        %3563 = vst.msk [vmem:[#allocation2 + $0x64] sm:$0xf] %vm3537, %v3480
        %3564 = vst.msk [vmem:[#allocation2 + $0x68] sm:$0xf] %vm3537, %v3482
        %3565 = vst.msk [vmem:[#allocation2 + $0x6c] sm:$0xf] %vm3537, %v3484
        %3566 = vst.msk [vmem:[#allocation2 + $0x70] sm:$0xf] %vm3537, %v3486
        %3567 = vst.msk [vmem:[#allocation2 + $0x74] sm:$0xf] %vm3537, %v3488
        %3568 = vst.msk [vmem:[#allocation2 + $0x78] sm:$0xf] %vm3537, %v3490
        %3569 = vst.msk [vmem:[#allocation2 + $0x7c] sm:$0xf] %vm3537, %v3492
        %3570 = vst.msk [vmem:[#allocation2 + $0x80] sm:$0xf] %vm3537, %v3494
        %3571 = vst.msk [vmem:[#allocation2 + $0x84] sm:$0xf] %vm3537, %v3496
        %3572 = vst.msk [vmem:[#allocation2 + $0x88] sm:$0xf] %vm3537, %v3498
        %3573 = vst.msk [vmem:[#allocation2 + $0x8c] sm:$0xf] %vm3537, %v3500
        %v3574 = vld [vmem:[#allocation2] sm:$0xf]
        %v3575 = vld [vmem:[#allocation2 + $0x4] sm:$0xf]
        %v3576 = vld [vmem:[#allocation2 + $0x8] sm:$0xf]
        %v3577 = vld [vmem:[#allocation2 + $0xc] sm:$0xf]
        %v3578 = vld [vmem:[#allocation2 + $0x10] sm:$0xf]
        %v3579 = vld [vmem:[#allocation2 + $0x14] sm:$0xf]
        %v3580 = vld [vmem:[#allocation2 + $0x18] sm:$0xf]
        %v3581 = vld [vmem:[#allocation2 + $0x1c] sm:$0xf]
        %v3582 = vld [vmem:[#allocation2 + $0x20] sm:$0xf]
        %v3583 = vld [vmem:[#allocation2 + $0x24] sm:$0xf]
        %v3584 = vld [vmem:[#allocation2 + $0x28] sm:$0xf]
        %v3585 = vld [vmem:[#allocation2 + $0x2c] sm:$0xf]
        %v3586 = vld [vmem:[#allocation2 + $0x30] sm:$0xf]
        %v3587 = vld [vmem:[#allocation2 + $0x34] sm:$0xf]
        %v3588 = vld [vmem:[#allocation2 + $0x38] sm:$0xf]
        %v3589 = vld [vmem:[#allocation2 + $0x3c] sm:$0xf]
        %v3590 = vld [vmem:[#allocation2 + $0x40] sm:$0xf]
        %v3591 = vld [vmem:[#allocation2 + $0x44] sm:$0xf]
        %v3592 = vld [vmem:[#allocation2 + $0x48] sm:$0xf]
        %v3593 = vld [vmem:[#allocation2 + $0x4c] sm:$0xf]
        %v3594 = vld [vmem:[#allocation2 + $0x50] sm:$0xf]
        %v3595 = vld [vmem:[#allocation2 + $0x54] sm:$0xf]
        %v3596 = vld [vmem:[#allocation2 + $0x58] sm:$0xf]
        %v3597 = vld [vmem:[#allocation2 + $0x5c] sm:$0xf]
        %v3598 = vld [vmem:[#allocation2 + $0x60] sm:$0xf]
        %v3599 = vld [vmem:[#allocation2 + $0x64] sm:$0xf]
        %v3600 = vld [vmem:[#allocation2 + $0x68] sm:$0xf]
        %v3601 = vld [vmem:[#allocation2 + $0x6c] sm:$0xf]
        %v3602 = vld [vmem:[#allocation2 + $0x70] sm:$0xf]
        %v3603 = vld [vmem:[#allocation2 + $0x74] sm:$0xf]
        %v3604 = vld [vmem:[#allocation2 + $0x78] sm:$0xf]
        %v3605 = vld [vmem:[#allocation2 + $0x7c] sm:$0xf]
        %v3606 = vld [vmem:[#allocation2 + $0x80] sm:$0xf]
        %v3607 = vld [vmem:[#allocation2 + $0x84] sm:$0xf]
        %v3608 = vld [vmem:[#allocation2 + $0x88] sm:$0xf]
        %v3609 = vld [vmem:[#allocation2 + $0x8c] sm:$0xf]
        %v3610 = vld [vmem:[%s1] sm:$0xf]
        %v3611 = vld [vmem:[%s1 + $0x4] sm:$0xf]
        %v3612 = vld [vmem:[%s1 + $0x8] sm:$0xf]
        %v3613 = vld [vmem:[%s1 + $0xc] sm:$0xf]
        %v3614 = vld [vmem:[%s1 + $0x10] sm:$0x3]
        %v3651 = vunpack.c.l.b16 %v3574
        %v3652 = vunpack.c.l.b16 %v3575
        %v3653 = vunpack.c.l.b16 %v3576
        %v3654 = vunpack.c.l.b16 %v3577
        %v3655 = vunpack.c.l.b16 %v3578
        %v3656 = vunpack.c.l.b16 %v3579
        %v3657 = vunpack.c.l.b16 %v3580
        %v3658 = vunpack.c.l.b16 %v3581
        %v3659 = vunpack.c.l.b16 %v3582
        %v3660 = vunpack.c.l.b16 %v3583
        %v3661 = vunpack.c.l.b16 %v3584
        %v3662 = vunpack.c.l.b16 %v3585
        %v3663 = vunpack.c.l.b16 %v3586
        %v3664 = vunpack.c.l.b16 %v3587
        %v3665 = vunpack.c.l.b16 %v3588
        %v3666 = vunpack.c.l.b16 %v3589
        %v3667 = vunpack.c.l.b16 %v3590
        %v3668 = vunpack.c.l.b16 %v3591
        %v3669 = vunpack.c.l.b16 %v3592
        %v3670 = vunpack.c.l.b16 %v3593
        %v3671 = vunpack.c.l.b16 %v3594
        %v3672 = vunpack.c.l.b16 %v3595
        %v3673 = vunpack.c.l.b16 %v3596
        %v3674 = vunpack.c.l.b16 %v3597
        %v3675 = vunpack.c.l.b16 %v3598
        %v3676 = vunpack.c.l.b16 %v3599
        %v3677 = vunpack.c.l.b16 %v3600
        %v3678 = vunpack.c.l.b16 %v3601
        %v3679 = vunpack.c.l.b16 %v3602
        %v3680 = vunpack.c.l.b16 %v3603
        %v3681 = vunpack.c.l.b16 %v3604
        %v3682 = vunpack.c.l.b16 %v3605
        %v3683 = vunpack.c.l.b16 %v3606
        %v3684 = vunpack.c.l.b16 %v3607
        %v3685 = vunpack.c.l.b16 %v3608
        %v3686 = vunpack.c.l.b16 %v3609
        %v3687 = vpack.c.b16 %v3652, %v3651
        %v3688 = vpack.c.b16 %v3654, %v3653
        %v3689 = vpack.c.b16 %v3656, %v3655
        %v3690 = vpack.c.b16 %v3658, %v3657
        %v3691 = vpack.c.b16 %v3660, %v3659
        %v3692 = vpack.c.b16 %v3662, %v3661
        %v3693 = vpack.c.b16 %v3664, %v3663
        %v3694 = vpack.c.b16 %v3666, %v3665
        %v3695 = vpack.c.b16 %v3668, %v3667
        %v3696 = vpack.c.b16 %v3670, %v3669
        %v3697 = vpack.c.b16 %v3672, %v3671
        %v3698 = vpack.c.b16 %v3674, %v3673
        %v3699 = vpack.c.b16 %v3676, %v3675
        %v3700 = vpack.c.b16 %v3678, %v3677
        %v3701 = vpack.c.b16 %v3680, %v3679
        %v3702 = vpack.c.b16 %v3682, %v3681
        %v3703 = vpack.c.b16 %v3684, %v3683
        %v3704 = vpack.c.b16 %v3686, %v3685
        %v3710 = vunpack.c.l.b16 %v3610
        %v3711 = vunpack.c.l.b16 %v3611
        %v3712 = vunpack.c.l.b16 %v3612
        %v3713 = vunpack.c.l.b16 %v3613
        %v3714 = vunpack.c.l.b16 %v3614
        %v3715 = vpack.c.b16 %v3711, %v3710
        %v3716 = vpack.c.b16 %v3713, %v3712
        %v3717 = vpack.c.b16 %v3714, %v3714
        %vm3720 = vcmask 293888
        %v3722 = vsel %vm3720, %v3687, 0
        %v3725 = vsel %vm3720, %v3688, 0
        %v3728 = vsel %vm3720, %v3689, 0
        %v3731 = vsel %vm3720, %v3690, 0
        %v3734 = vsel %vm3720, %v3691, 0
        %v3737 = vsel %vm3720, %v3692, 0
        %v3740 = vsel %vm3720, %v3693, 0
        %v3743 = vsel %vm3720, %v3694, 0
        %v3746 = vsel %vm3720, %v3695, 0
        %v3749 = vsel %vm3720, %v3696, 0
        %v3752 = vsel %vm3720, %v3697, 0
        %v3755 = vsel %vm3720, %v3698, 0
        %v3758 = vsel %vm3720, %v3699, 0
        %v3761 = vsel %vm3720, %v3700, 0
        %v3764 = vsel %vm3720, %v3701, 0
        %v3767 = vsel %vm3720, %v3702, 0
        %v3770 = vsel %vm3720, %v3703, 0
        %v3773 = vsel %vm3720, %v3704, 0
        %vm3775 = vcmask 1041408
        %v3777 = vsel %vm3775, %v3717, 0
        %3779 = vmatprep.subr.bf16.mxu0 0
        %3780 = vmatpush1.bf16.msra.mxu0 0
        %3781 = vmatprep.subr.bf16.mxu0 0
        %3782 = vmatpush1.bf16.msra.mxu0 0
        %3783 = vmatprep.subr.bf16.mxu0 0
        %3784 = vmatpush1.bf16.msra.mxu0 0
        %3785 = vmatprep.subr.bf16.mxu0 0
        %3786 = vmatpush1.bf16.msra.mxu0 0
        %3787 = vmatprep.subr.bf16.mxu0 0
        %3788 = vmatpush1.bf16.msra.mxu0 0
        %3789 = vmatprep.subr.bf16.mxu0 0
        %3790 = vmatpush1.bf16.msra.mxu0 %v3777
        %3791 = vmatprep.subr.bf16.mxu0 0
        %3792 = vmatpush1.bf16.msra.mxu0 %v3716
        %3793 = vmatprep.subr.bf16.mxu0 0
        %3794 = vmatpush1.bf16.msra.mxu0 %v3715
        %3795 = vmatprep.subr.bf16.mxu0 0
        %3796 = vmatpush2.bf16.msra.mxu0 0
        %3797 = vmatprep.subr.bf16.mxu0 0
        %3798 = vmatpush2.bf16.msra.mxu0 0
        %3799 = vmatprep.subr.bf16.mxu0 0
        %3800 = vmatpush2.bf16.msra.mxu0 0
        %3801 = vmatprep.subr.bf16.mxu0 0
        %3802 = vmatpush2.bf16.msra.mxu0 0
        %3803 = vmatprep.subr.bf16.mxu0 0
        %3804 = vmatpush2.bf16.msra.mxu0 0
        %3805 = vmatprep.subr.bf16.mxu0 0
        %3806 = vmatpush2.bf16.msra.mxu0 0
        %3807 = vmatprep.subr.bf16.mxu0 0
        %3808 = vmatpush2.bf16.msra.mxu0 0
        %3809 = vmatprep.subr.bf16.mxu0 0
        %3810 = vmatpush2.bf16.msra.mxu0 0
        %3811 = vmatprep.mubr.bf16.mxu0 0
        %3812 = vmatmul.mubr.bf16.gmra.mxu0 %v3722
        %v3813 = vpop.f32.mrf.mxu0
        %v3814 = vadd.f32 0.0, %v3813
        %v3815 = vpop.f32.mrf.mxu0
        %v3816 = vpop.f32.mrf.mxu0
        %v3817 = vadd.f32 0.0, %v3816
        %v3818 = vpop.f32.mrf.mxu0
        %3819 = vmatprep.mubr.bf16.mxu0 0
        %3820 = vmatmul.mubr.bf16.gmra.mxu0 %v3725
        %v3821 = vpop.f32.mrf.mxu0
        %v3822 = vadd.f32 0.0, %v3821
        %v3823 = vpop.f32.mrf.mxu0
        %v3824 = vpop.f32.mrf.mxu0
        %v3825 = vadd.f32 0.0, %v3824
        %v3826 = vpop.f32.mrf.mxu0
        %3827 = vmatprep.mubr.bf16.mxu0 0
        %3828 = vmatmul.mubr.bf16.gmra.mxu0 %v3728
        %v3829 = vpop.f32.mrf.mxu0
        %v3830 = vadd.f32 0.0, %v3829
        %v3831 = vpop.f32.mrf.mxu0
        %v3832 = vpop.f32.mrf.mxu0
        %v3833 = vadd.f32 0.0, %v3832
        %v3834 = vpop.f32.mrf.mxu0
        %3835 = vmatprep.mubr.bf16.mxu0 0
        %3836 = vmatmul.mubr.bf16.gmra.mxu0 %v3731
        %v3837 = vpop.f32.mrf.mxu0
        %v3838 = vadd.f32 0.0, %v3837
        %v3839 = vpop.f32.mrf.mxu0
        %v3840 = vpop.f32.mrf.mxu0
        %v3841 = vadd.f32 0.0, %v3840
        %v3842 = vpop.f32.mrf.mxu0
        %3843 = vmatprep.mubr.bf16.mxu0 0
        %3844 = vmatmul.mubr.bf16.gmra.mxu0 %v3734
        %v3845 = vpop.f32.mrf.mxu0
        %v3846 = vadd.f32 0.0, %v3845
        %v3847 = vpop.f32.mrf.mxu0
        %v3848 = vpop.f32.mrf.mxu0
        %v3849 = vadd.f32 0.0, %v3848
        %v3850 = vpop.f32.mrf.mxu0
        %3851 = vmatprep.mubr.bf16.mxu0 0
        %3852 = vmatmul.mubr.bf16.gmra.mxu0 %v3737
        %v3853 = vpop.f32.mrf.mxu0
        %v3854 = vadd.f32 0.0, %v3853
        %v3855 = vpop.f32.mrf.mxu0
        %v3856 = vpop.f32.mrf.mxu0
        %v3857 = vadd.f32 0.0, %v3856
        %v3858 = vpop.f32.mrf.mxu0
        %3859 = vmatprep.mubr.bf16.mxu0 0
        %3860 = vmatmul.mubr.bf16.gmra.mxu0 %v3740
        %v3861 = vpop.f32.mrf.mxu0
        %v3862 = vadd.f32 0.0, %v3861
        %v3863 = vpop.f32.mrf.mxu0
        %v3864 = vpop.f32.mrf.mxu0
        %v3865 = vadd.f32 0.0, %v3864
        %v3866 = vpop.f32.mrf.mxu0
        %3867 = vmatprep.mubr.bf16.mxu0 0
        %3868 = vmatmul.mubr.bf16.gmra.mxu0 %v3743
        %v3869 = vpop.f32.mrf.mxu0
        %v3870 = vadd.f32 0.0, %v3869
        %v3871 = vpop.f32.mrf.mxu0
        %v3872 = vpop.f32.mrf.mxu0
        %v3873 = vadd.f32 0.0, %v3872
        %v3874 = vpop.f32.mrf.mxu0
        %3875 = vmatprep.mubr.bf16.mxu0 0
        %3876 = vmatmul.mubr.bf16.gmra.mxu0 %v3746
        %v3877 = vpop.f32.mrf.mxu0
        %v3878 = vadd.f32 0.0, %v3877
        %v3879 = vpop.f32.mrf.mxu0
        %v3880 = vpop.f32.mrf.mxu0
        %v3881 = vadd.f32 0.0, %v3880
        %v3882 = vpop.f32.mrf.mxu0
        %3883 = vmatprep.mubr.bf16.mxu0 0
        %3884 = vmatmul.mubr.bf16.gmra.mxu0 %v3749
        %v3885 = vpop.f32.mrf.mxu0
        %v3886 = vadd.f32 0.0, %v3885
        %v3887 = vpop.f32.mrf.mxu0
        %v3888 = vpop.f32.mrf.mxu0
        %v3889 = vadd.f32 0.0, %v3888
        %v3890 = vpop.f32.mrf.mxu0
        %3891 = vmatprep.mubr.bf16.mxu0 0
        %3892 = vmatmul.mubr.bf16.gmra.mxu0 %v3752
        %v3893 = vpop.f32.mrf.mxu0
        %v3894 = vadd.f32 0.0, %v3893
        %v3895 = vpop.f32.mrf.mxu0
        %v3896 = vpop.f32.mrf.mxu0
        %v3897 = vadd.f32 0.0, %v3896
        %v3898 = vpop.f32.mrf.mxu0
        %3899 = vmatprep.mubr.bf16.mxu0 0
        %3900 = vmatmul.mubr.bf16.gmra.mxu0 %v3755
        %v3901 = vpop.f32.mrf.mxu0
        %v3902 = vadd.f32 0.0, %v3901
        %v3903 = vpop.f32.mrf.mxu0
        %v3904 = vpop.f32.mrf.mxu0
        %v3905 = vadd.f32 0.0, %v3904
        %v3906 = vpop.f32.mrf.mxu0
        %3907 = vmatprep.mubr.bf16.mxu0 0
        %3908 = vmatmul.mubr.bf16.gmra.mxu0 %v3758
        %v3909 = vpop.f32.mrf.mxu0
        %v3910 = vadd.f32 0.0, %v3909
        %v3911 = vpop.f32.mrf.mxu0
        %v3912 = vpop.f32.mrf.mxu0
        %v3913 = vadd.f32 0.0, %v3912
        %v3914 = vpop.f32.mrf.mxu0
        %3915 = vmatprep.mubr.bf16.mxu0 0
        %3916 = vmatmul.mubr.bf16.gmra.mxu0 %v3761
        %v3917 = vpop.f32.mrf.mxu0
        %v3918 = vadd.f32 0.0, %v3917
        %v3919 = vpop.f32.mrf.mxu0
        %v3920 = vpop.f32.mrf.mxu0
        %v3921 = vadd.f32 0.0, %v3920
        %v3922 = vpop.f32.mrf.mxu0
        %3923 = vmatprep.mubr.bf16.mxu0 0
        %3924 = vmatmul.mubr.bf16.gmra.mxu0 %v3764
        %v3925 = vpop.f32.mrf.mxu0
        %v3926 = vadd.f32 0.0, %v3925
        %v3927 = vpop.f32.mrf.mxu0
        %v3928 = vpop.f32.mrf.mxu0
        %v3929 = vadd.f32 0.0, %v3928
        %v3930 = vpop.f32.mrf.mxu0
        %3931 = vmatprep.mubr.bf16.mxu0 0
        %3932 = vmatmul.mubr.bf16.gmra.mxu0 %v3767
        %v3933 = vpop.f32.mrf.mxu0
        %v3934 = vadd.f32 0.0, %v3933
        %v3935 = vpop.f32.mrf.mxu0
        %v3936 = vpop.f32.mrf.mxu0
        %v3937 = vadd.f32 0.0, %v3936
        %v3938 = vpop.f32.mrf.mxu0
        %3939 = vmatprep.mubr.bf16.mxu0 0
        %3940 = vmatmul.mubr.bf16.gmra.mxu0 %v3770
        %v3941 = vpop.f32.mrf.mxu0
        %v3942 = vadd.f32 0.0, %v3941
        %v3943 = vpop.f32.mrf.mxu0
        %v3944 = vpop.f32.mrf.mxu0
        %v3945 = vadd.f32 0.0, %v3944
        %v3946 = vpop.f32.mrf.mxu0
        %3947 = vmatprep.mubr.bf16.mxu0 0
        %3948 = vmatmul.mubr.bf16.gmra.mxu0 %v3773
        %v3949 = vpop.f32.mrf.mxu0
        %v3950 = vadd.f32 0.0, %v3949
        %v3951 = vpop.f32.mrf.mxu0
        %v3952 = vpop.f32.mrf.mxu0
        %v3953 = vadd.f32 0.0, %v3952
        %v3954 = vpop.f32.mrf.mxu0
        %3955 = vdwg.mxu0
        %v3956 = vpack.c.bf16 %v3817, %v3814
        %v3957 = vpack.c.bf16 %v3825, %v3822
        %v3958 = vpack.c.bf16 %v3833, %v3830
        %v3959 = vpack.c.bf16 %v3841, %v3838
        %v3960 = vpack.c.bf16 %v3849, %v3846
        %v3961 = vpack.c.bf16 %v3857, %v3854
        %v3962 = vpack.c.bf16 %v3865, %v3862
        %v3963 = vpack.c.bf16 %v3873, %v3870
        %v3964 = vpack.c.bf16 %v3881, %v3878
        %v3965 = vpack.c.bf16 %v3889, %v3886
        %v3966 = vpack.c.bf16 %v3897, %v3894
        %v3967 = vpack.c.bf16 %v3905, %v3902
        %v3968 = vpack.c.bf16 %v3913, %v3910
        %v3969 = vpack.c.bf16 %v3921, %v3918
        %v3970 = vpack.c.bf16 %v3929, %v3926
        %v3971 = vpack.c.bf16 %v3937, %v3934
        %v3972 = vpack.c.bf16 %v3945, %v3942
        %v3973 = vpack.c.bf16 %v3953, %v3950
        %v3992 = vunpack.c.l.b16 %v3956
        %v3993 = vunpack.c.h.b16 %v3956
        %v3994 = vunpack.c.l.b16 %v3957
        %v3995 = vunpack.c.h.b16 %v3957
        %v3996 = vunpack.c.l.b16 %v3958
        %v3997 = vunpack.c.h.b16 %v3958
        %v3998 = vunpack.c.l.b16 %v3959
        %v3999 = vunpack.c.h.b16 %v3959
        %v4000 = vunpack.c.l.b16 %v3960
        %v4001 = vunpack.c.h.b16 %v3960
        %v4002 = vunpack.c.l.b16 %v3961
        %v4003 = vunpack.c.h.b16 %v3961
        %v4004 = vunpack.c.l.b16 %v3962
        %v4005 = vunpack.c.h.b16 %v3962
        %v4006 = vunpack.c.l.b16 %v3963
        %v4007 = vunpack.c.h.b16 %v3963
        %v4008 = vunpack.c.l.b16 %v3964
        %v4009 = vunpack.c.h.b16 %v3964
        %v4010 = vunpack.c.l.b16 %v3965
        %v4011 = vunpack.c.h.b16 %v3965
        %v4012 = vunpack.c.l.b16 %v3966
        %v4013 = vunpack.c.h.b16 %v3966
        %v4014 = vunpack.c.l.b16 %v3967
        %v4015 = vunpack.c.h.b16 %v3967
        %v4016 = vunpack.c.l.b16 %v3968
        %v4017 = vunpack.c.h.b16 %v3968
        %v4018 = vunpack.c.l.b16 %v3969
        %v4019 = vunpack.c.h.b16 %v3969
        %v4020 = vunpack.c.l.b16 %v3970
        %v4021 = vunpack.c.h.b16 %v3970
        %v4022 = vunpack.c.l.b16 %v3971
        %v4023 = vunpack.c.h.b16 %v3971
        %v4024 = vunpack.c.l.b16 %v3972
        %v4025 = vunpack.c.h.b16 %v3972
        %v4026 = vunpack.c.l.b16 %v3973
        %v4027 = vunpack.c.h.b16 %v3973
        %v4028 = vpack.c.b16 %v3992, %v3992
        %v4029 = vpack.c.b16 %v3993, %v3993
        %v4030 = vpack.c.b16 %v3994, %v3994
        %v4031 = vpack.c.b16 %v3995, %v3995
        %v4032 = vpack.c.b16 %v3996, %v3996
        %v4033 = vpack.c.b16 %v3997, %v3997
        %v4034 = vpack.c.b16 %v3998, %v3998
        %v4035 = vpack.c.b16 %v3999, %v3999
        %v4036 = vpack.c.b16 %v4000, %v4000
        %v4037 = vpack.c.b16 %v4001, %v4001
        %v4038 = vpack.c.b16 %v4002, %v4002
        %v4039 = vpack.c.b16 %v4003, %v4003
        %v4040 = vpack.c.b16 %v4004, %v4004
        %v4041 = vpack.c.b16 %v4005, %v4005
        %v4042 = vpack.c.b16 %v4006, %v4006
        %v4043 = vpack.c.b16 %v4007, %v4007
        %v4044 = vpack.c.b16 %v4008, %v4008
        %v4045 = vpack.c.b16 %v4009, %v4009
        %v4046 = vpack.c.b16 %v4010, %v4010
        %v4047 = vpack.c.b16 %v4011, %v4011
        %v4048 = vpack.c.b16 %v4012, %v4012
        %v4049 = vpack.c.b16 %v4013, %v4013
        %v4050 = vpack.c.b16 %v4014, %v4014
        %v4051 = vpack.c.b16 %v4015, %v4015
        %v4052 = vpack.c.b16 %v4016, %v4016
        %v4053 = vpack.c.b16 %v4017, %v4017
        %v4054 = vpack.c.b16 %v4018, %v4018
        %v4055 = vpack.c.b16 %v4019, %v4019
        %v4056 = vpack.c.b16 %v4020, %v4020
        %v4057 = vpack.c.b16 %v4021, %v4021
        %v4058 = vpack.c.b16 %v4022, %v4022
        %v4059 = vpack.c.b16 %v4023, %v4023
        %v4060 = vpack.c.b16 %v4024, %v4024
        %v4061 = vpack.c.b16 %v4025, %v4025
        %v4062 = vpack.c.b16 %v4026, %v4026
        %v4063 = vpack.c.b16 %v4027, %v4027
        %4100 = vst [vmem:[%s179] sm:$0xf] %v4028
        %4101 = vst [vmem:[%s179 + $0x4] sm:$0xf] %v4029
        %4102 = vst [vmem:[%s179 + $0x8] sm:$0xf] %v4030
        %4103 = vst [vmem:[%s179 + $0xc] sm:$0xf] %v4031
        %4104 = vst [vmem:[%s179 + $0x10] sm:$0xf] %v4032
        %4105 = vst [vmem:[%s179 + $0x14] sm:$0xf] %v4033
        %4106 = vst [vmem:[%s179 + $0x18] sm:$0xf] %v4034
        %4107 = vst [vmem:[%s179 + $0x1c] sm:$0xf] %v4035
        %4108 = vst [vmem:[%s179 + $0x20] sm:$0xf] %v4036
        %4109 = vst [vmem:[%s179 + $0x24] sm:$0xf] %v4037
        %4110 = vst [vmem:[%s179 + $0x28] sm:$0xf] %v4038
        %4111 = vst [vmem:[%s179 + $0x2c] sm:$0xf] %v4039
        %4112 = vst [vmem:[%s179 + $0x30] sm:$0xf] %v4040
        %4113 = vst [vmem:[%s179 + $0x34] sm:$0xf] %v4041
        %4114 = vst [vmem:[%s179 + $0x38] sm:$0xf] %v4042
        %4115 = vst [vmem:[%s179 + $0x3c] sm:$0xf] %v4043
        %4116 = vst [vmem:[%s179 + $0x40] sm:$0xf] %v4044
        %4117 = vst [vmem:[%s179 + $0x44] sm:$0xf] %v4045
        %4118 = vst [vmem:[%s179 + $0x48] sm:$0xf] %v4046
        %4119 = vst [vmem:[%s179 + $0x4c] sm:$0xf] %v4047
        %4120 = vst [vmem:[%s179 + $0x50] sm:$0xf] %v4048
        %4121 = vst [vmem:[%s179 + $0x54] sm:$0xf] %v4049
        %4122 = vst [vmem:[%s179 + $0x58] sm:$0xf] %v4050
        %4123 = vst [vmem:[%s179 + $0x5c] sm:$0xf] %v4051
        %4124 = vst [vmem:[%s179 + $0x60] sm:$0xf] %v4052
        %4125 = vst [vmem:[%s179 + $0x64] sm:$0xf] %v4053
        %4126 = vst [vmem:[%s179 + $0x68] sm:$0xf] %v4054
        %4127 = vst [vmem:[%s179 + $0x6c] sm:$0xf] %v4055
        %4128 = vst [vmem:[%s179 + $0x70] sm:$0xf] %v4056
        %4129 = vst [vmem:[%s179 + $0x74] sm:$0xf] %v4057
        %4130 = vst [vmem:[%s179 + $0x78] sm:$0xf] %v4058
        %4131 = vst [vmem:[%s179 + $0x7c] sm:$0xf] %v4059
        %4132 = vst [vmem:[%s179 + $0x80] sm:$0xf] %v4060
        %4133 = vst [vmem:[%s179 + $0x84] sm:$0xf] %v4061
        %4134 = vst [vmem:[%s179 + $0x88] sm:$0xf] %v4062
        %4135 = vst [vmem:[%s179 + $0x8c] sm:$0xf] %v4063
        %v4136 = vlaneseq
        %v4137 = vshrl.u32 %v4136, 7
        %v4138 = vadd.s32 %v4137, 8
        %v4139 = vadd.s32 %v4137, 16
        %v4140 = vadd.s32 %v4137, 24
        %v4141 = vadd.s32 %v4137, 32
        %v4142 = vadd.s32 %v4137, 40
        %v4143 = vadd.s32 %v4137, 48
        %v4144 = vadd.s32 %v4137, 56
        %v4145 = vadd.s32 %v4137, 64
        %v4146 = vadd.s32 %v4137, 72
        %v4147 = vadd.s32 %v4137, 80
        %v4148 = vadd.s32 %v4137, 88
        %v4149 = vadd.s32 %v4137, 96
        %v4150 = vadd.s32 %v4137, 104
        %v4151 = vadd.s32 %v4137, 112
        %v4152 = vadd.s32 %v4137, 120
        %v4153 = vadd.s32 %v4137, 128
        %v4154 = vadd.s32 %v4137, 136
        %v4155 = vadd.s32 %v4137, 144
        %v4156 = vadd.s32 %v4137, 152
        %v4157 = vadd.s32 %v4137, 160
        %v4158 = vadd.s32 %v4137, 168
        %v4159 = vadd.s32 %v4137, 176
        %v4160 = vadd.s32 %v4137, 184
        %v4161 = vadd.s32 %v4137, 192
        %v4162 = vadd.s32 %v4137, 200
        %v4163 = vadd.s32 %v4137, 208
        %v4164 = vadd.s32 %v4137, 216
        %v4165 = vadd.s32 %v4137, 224
        %v4166 = vadd.s32 %v4137, 232
        %v4167 = vadd.s32 %v4137, 240
        %v4168 = vadd.s32 %v4137, 248
        %v4169 = vadd.s32 %v4137, 256
        %v4170 = vadd.s32 %v4137, 264
        %v4171 = vadd.s32 %v4137, 272
        %v4172 = vadd.s32 %v4137, 280
        %vm4173 = vcmp.lt.s32.totalorder %v4137, 0
        %v4174 = vsub.s32 0, %v4137
        %v4175 = vsel %vm4173, %v4174, %v4137
        %v4176 = vmul.u32.u64.compose %v4175, 3817748708
        %v4177 = vextract.low.u32 %v4176
        %v4178 = vextract.high.u32 %v4176
        %v4179 = vshrl.u32 %v4178, 4
        %v4180 = vmul.u32 %v4179, 18
        %v4181 = vsub.s32 %v4175, %v4180
        %v4182 = vsub.s32 0, %v4181
        %v4183 = vsel %vm4173, %v4182, %v4181
        %vm4184 = vcmp.lt.s32.totalorder %v4138, 0
        %v4185 = vsub.s32 0, %v4138
        %v4186 = vsel %vm4184, %v4185, %v4138
        %v4187 = vmul.u32.u64.compose %v4186, 3817748708
        %v4188 = vextract.low.u32 %v4187
        %v4189 = vextract.high.u32 %v4187
        %v4190 = vshrl.u32 %v4189, 4
        %v4191 = vmul.u32 %v4190, 18
        %v4192 = vsub.s32 %v4186, %v4191
        %v4193 = vsub.s32 0, %v4192
        %v4194 = vsel %vm4184, %v4193, %v4192
        %vm4195 = vcmp.lt.s32.totalorder %v4139, 0
        %v4196 = vsub.s32 0, %v4139
        %v4197 = vsel %vm4195, %v4196, %v4139
        %v4198 = vmul.u32.u64.compose %v4197, 3817748708
        %v4199 = vextract.low.u32 %v4198
        %v4200 = vextract.high.u32 %v4198
        %v4201 = vshrl.u32 %v4200, 4
        %v4202 = vmul.u32 %v4201, 18
        %v4203 = vsub.s32 %v4197, %v4202
        %v4204 = vsub.s32 0, %v4203
        %v4205 = vsel %vm4195, %v4204, %v4203
        %vm4206 = vcmp.lt.s32.totalorder %v4140, 0
        %v4207 = vsub.s32 0, %v4140
        %v4208 = vsel %vm4206, %v4207, %v4140
        %v4209 = vmul.u32.u64.compose %v4208, 3817748708
        %v4210 = vextract.low.u32 %v4209
        %v4211 = vextract.high.u32 %v4209
        %v4212 = vshrl.u32 %v4211, 4
        %v4213 = vmul.u32 %v4212, 18
        %v4214 = vsub.s32 %v4208, %v4213
        %v4215 = vsub.s32 0, %v4214
        %v4216 = vsel %vm4206, %v4215, %v4214
        %vm4217 = vcmp.lt.s32.totalorder %v4141, 0
        %v4218 = vsub.s32 0, %v4141
        %v4219 = vsel %vm4217, %v4218, %v4141
        %v4220 = vmul.u32.u64.compose %v4219, 3817748708
        %v4221 = vextract.low.u32 %v4220
        %v4222 = vextract.high.u32 %v4220
        %v4223 = vshrl.u32 %v4222, 4
        %v4224 = vmul.u32 %v4223, 18
        %v4225 = vsub.s32 %v4219, %v4224
        %v4226 = vsub.s32 0, %v4225
        %v4227 = vsel %vm4217, %v4226, %v4225
        %vm4228 = vcmp.lt.s32.totalorder %v4142, 0
        %v4229 = vsub.s32 0, %v4142
        %v4230 = vsel %vm4228, %v4229, %v4142
        %v4231 = vmul.u32.u64.compose %v4230, 3817748708
        %v4232 = vextract.low.u32 %v4231
        %v4233 = vextract.high.u32 %v4231
        %v4234 = vshrl.u32 %v4233, 4
        %v4235 = vmul.u32 %v4234, 18
        %v4236 = vsub.s32 %v4230, %v4235
        %v4237 = vsub.s32 0, %v4236
        %v4238 = vsel %vm4228, %v4237, %v4236
        %vm4239 = vcmp.lt.s32.totalorder %v4143, 0
        %v4240 = vsub.s32 0, %v4143
        %v4241 = vsel %vm4239, %v4240, %v4143
        %v4242 = vmul.u32.u64.compose %v4241, 3817748708
        %v4243 = vextract.low.u32 %v4242
        %v4244 = vextract.high.u32 %v4242
        %v4245 = vshrl.u32 %v4244, 4
        %v4246 = vmul.u32 %v4245, 18
        %v4247 = vsub.s32 %v4241, %v4246
        %v4248 = vsub.s32 0, %v4247
        %v4249 = vsel %vm4239, %v4248, %v4247
        %vm4250 = vcmp.lt.s32.totalorder %v4144, 0
        %v4251 = vsub.s32 0, %v4144
        %v4252 = vsel %vm4250, %v4251, %v4144
        %v4253 = vmul.u32.u64.compose %v4252, 3817748708
        %v4254 = vextract.low.u32 %v4253
        %v4255 = vextract.high.u32 %v4253
        %v4256 = vshrl.u32 %v4255, 4
        %v4257 = vmul.u32 %v4256, 18
        %v4258 = vsub.s32 %v4252, %v4257
        %v4259 = vsub.s32 0, %v4258
        %v4260 = vsel %vm4250, %v4259, %v4258
        %vm4261 = vcmp.lt.s32.totalorder %v4145, 0
        %v4262 = vsub.s32 0, %v4145
        %v4263 = vsel %vm4261, %v4262, %v4145
        %v4264 = vmul.u32.u64.compose %v4263, 3817748708
        %v4265 = vextract.low.u32 %v4264
        %v4266 = vextract.high.u32 %v4264
        %v4267 = vshrl.u32 %v4266, 4
        %v4268 = vmul.u32 %v4267, 18
        %v4269 = vsub.s32 %v4263, %v4268
        %v4270 = vsub.s32 0, %v4269
        %v4271 = vsel %vm4261, %v4270, %v4269
        %vm4272 = vcmp.lt.s32.totalorder %v4146, 0
        %v4273 = vsub.s32 0, %v4146
        %v4274 = vsel %vm4272, %v4273, %v4146
        %v4275 = vmul.u32.u64.compose %v4274, 3817748708
        %v4276 = vextract.low.u32 %v4275
        %v4277 = vextract.high.u32 %v4275
        %v4278 = vshrl.u32 %v4277, 4
        %v4279 = vmul.u32 %v4278, 18
        %v4280 = vsub.s32 %v4274, %v4279
        %v4281 = vsub.s32 0, %v4280
        %v4282 = vsel %vm4272, %v4281, %v4280
        %vm4283 = vcmp.lt.s32.totalorder %v4147, 0
        %v4284 = vsub.s32 0, %v4147
        %v4285 = vsel %vm4283, %v4284, %v4147
        %v4286 = vmul.u32.u64.compose %v4285, 3817748708
        %v4287 = vextract.low.u32 %v4286
        %v4288 = vextract.high.u32 %v4286
        %v4289 = vshrl.u32 %v4288, 4
        %v4290 = vmul.u32 %v4289, 18
        %v4291 = vsub.s32 %v4285, %v4290
        %v4292 = vsub.s32 0, %v4291
        %v4293 = vsel %vm4283, %v4292, %v4291
        %vm4294 = vcmp.lt.s32.totalorder %v4148, 0
        %v4295 = vsub.s32 0, %v4148
        %v4296 = vsel %vm4294, %v4295, %v4148
        %v4297 = vmul.u32.u64.compose %v4296, 3817748708
        %v4298 = vextract.low.u32 %v4297
        %v4299 = vextract.high.u32 %v4297
        %v4300 = vshrl.u32 %v4299, 4
        %v4301 = vmul.u32 %v4300, 18
        %v4302 = vsub.s32 %v4296, %v4301
        %v4303 = vsub.s32 0, %v4302
        %v4304 = vsel %vm4294, %v4303, %v4302
        %vm4305 = vcmp.lt.s32.totalorder %v4149, 0
        %v4306 = vsub.s32 0, %v4149
        %v4307 = vsel %vm4305, %v4306, %v4149
        %v4308 = vmul.u32.u64.compose %v4307, 3817748708
        %v4309 = vextract.low.u32 %v4308
        %v4310 = vextract.high.u32 %v4308
        %v4311 = vshrl.u32 %v4310, 4
        %v4312 = vmul.u32 %v4311, 18
        %v4313 = vsub.s32 %v4307, %v4312
        %v4314 = vsub.s32 0, %v4313
        %v4315 = vsel %vm4305, %v4314, %v4313
        %vm4316 = vcmp.lt.s32.totalorder %v4150, 0
        %v4317 = vsub.s32 0, %v4150
        %v4318 = vsel %vm4316, %v4317, %v4150
        %v4319 = vmul.u32.u64.compose %v4318, 3817748708
        %v4320 = vextract.low.u32 %v4319
        %v4321 = vextract.high.u32 %v4319
        %v4322 = vshrl.u32 %v4321, 4
        %v4323 = vmul.u32 %v4322, 18
        %v4324 = vsub.s32 %v4318, %v4323
        %v4325 = vsub.s32 0, %v4324
        %v4326 = vsel %vm4316, %v4325, %v4324
        %vm4327 = vcmp.lt.s32.totalorder %v4151, 0
        %v4328 = vsub.s32 0, %v4151
        %v4329 = vsel %vm4327, %v4328, %v4151
        %v4330 = vmul.u32.u64.compose %v4329, 3817748708
        %v4331 = vextract.low.u32 %v4330
        %v4332 = vextract.high.u32 %v4330
        %v4333 = vshrl.u32 %v4332, 4
        %v4334 = vmul.u32 %v4333, 18
        %v4335 = vsub.s32 %v4329, %v4334
        %v4336 = vsub.s32 0, %v4335
        %v4337 = vsel %vm4327, %v4336, %v4335
        %vm4338 = vcmp.lt.s32.totalorder %v4152, 0
        %v4339 = vsub.s32 0, %v4152
        %v4340 = vsel %vm4338, %v4339, %v4152
        %v4341 = vmul.u32.u64.compose %v4340, 3817748708
        %v4342 = vextract.low.u32 %v4341
        %v4343 = vextract.high.u32 %v4341
        %v4344 = vshrl.u32 %v4343, 4
        %v4345 = vmul.u32 %v4344, 18
        %v4346 = vsub.s32 %v4340, %v4345
        %v4347 = vsub.s32 0, %v4346
        %v4348 = vsel %vm4338, %v4347, %v4346
        %vm4349 = vcmp.lt.s32.totalorder %v4153, 0
        %v4350 = vsub.s32 0, %v4153
        %v4351 = vsel %vm4349, %v4350, %v4153
        %v4352 = vmul.u32.u64.compose %v4351, 3817748708
        %v4353 = vextract.low.u32 %v4352
        %v4354 = vextract.high.u32 %v4352
        %v4355 = vshrl.u32 %v4354, 4
        %v4356 = vmul.u32 %v4355, 18
        %v4357 = vsub.s32 %v4351, %v4356
        %v4358 = vsub.s32 0, %v4357
        %v4359 = vsel %vm4349, %v4358, %v4357
        %vm4360 = vcmp.lt.s32.totalorder %v4154, 0
        %v4361 = vsub.s32 0, %v4154
        %v4362 = vsel %vm4360, %v4361, %v4154
        %v4363 = vmul.u32.u64.compose %v4362, 3817748708
        %v4364 = vextract.low.u32 %v4363
        %v4365 = vextract.high.u32 %v4363
        %v4366 = vshrl.u32 %v4365, 4
        %v4367 = vmul.u32 %v4366, 18
        %v4368 = vsub.s32 %v4362, %v4367
        %v4369 = vsub.s32 0, %v4368
        %v4370 = vsel %vm4360, %v4369, %v4368
        %vm4371 = vcmp.lt.s32.totalorder %v4155, 0
        %v4372 = vsub.s32 0, %v4155
        %v4373 = vsel %vm4371, %v4372, %v4155
        %v4374 = vmul.u32.u64.compose %v4373, 3817748708
        %v4375 = vextract.low.u32 %v4374
        %v4376 = vextract.high.u32 %v4374
        %v4377 = vshrl.u32 %v4376, 4
        %v4378 = vmul.u32 %v4377, 18
        %v4379 = vsub.s32 %v4373, %v4378
        %v4380 = vsub.s32 0, %v4379
        %v4381 = vsel %vm4371, %v4380, %v4379
        %vm4382 = vcmp.lt.s32.totalorder %v4156, 0
        %v4383 = vsub.s32 0, %v4156
        %v4384 = vsel %vm4382, %v4383, %v4156
        %v4385 = vmul.u32.u64.compose %v4384, 3817748708
        %v4386 = vextract.low.u32 %v4385
        %v4387 = vextract.high.u32 %v4385
        %v4388 = vshrl.u32 %v4387, 4
        %v4389 = vmul.u32 %v4388, 18
        %v4390 = vsub.s32 %v4384, %v4389
        %v4391 = vsub.s32 0, %v4390
        %v4392 = vsel %vm4382, %v4391, %v4390
        %vm4393 = vcmp.lt.s32.totalorder %v4157, 0
        %v4394 = vsub.s32 0, %v4157
        %v4395 = vsel %vm4393, %v4394, %v4157
        %v4396 = vmul.u32.u64.compose %v4395, 3817748708
        %v4397 = vextract.low.u32 %v4396
        %v4398 = vextract.high.u32 %v4396
        %v4399 = vshrl.u32 %v4398, 4
        %v4400 = vmul.u32 %v4399, 18
        %v4401 = vsub.s32 %v4395, %v4400
        %v4402 = vsub.s32 0, %v4401
        %v4403 = vsel %vm4393, %v4402, %v4401
        %vm4404 = vcmp.lt.s32.totalorder %v4158, 0
        %v4405 = vsub.s32 0, %v4158
        %v4406 = vsel %vm4404, %v4405, %v4158
        %v4407 = vmul.u32.u64.compose %v4406, 3817748708
        %v4408 = vextract.low.u32 %v4407
        %v4409 = vextract.high.u32 %v4407
        %v4410 = vshrl.u32 %v4409, 4
        %v4411 = vmul.u32 %v4410, 18
        %v4412 = vsub.s32 %v4406, %v4411
        %v4413 = vsub.s32 0, %v4412
        %v4414 = vsel %vm4404, %v4413, %v4412
        %vm4415 = vcmp.lt.s32.totalorder %v4159, 0
        %v4416 = vsub.s32 0, %v4159
        %v4417 = vsel %vm4415, %v4416, %v4159
        %v4418 = vmul.u32.u64.compose %v4417, 3817748708
        %v4419 = vextract.low.u32 %v4418
        %v4420 = vextract.high.u32 %v4418
        %v4421 = vshrl.u32 %v4420, 4
        %v4422 = vmul.u32 %v4421, 18
        %v4423 = vsub.s32 %v4417, %v4422
        %v4424 = vsub.s32 0, %v4423
        %v4425 = vsel %vm4415, %v4424, %v4423
        %vm4426 = vcmp.lt.s32.totalorder %v4160, 0
        %v4427 = vsub.s32 0, %v4160
        %v4428 = vsel %vm4426, %v4427, %v4160
        %v4429 = vmul.u32.u64.compose %v4428, 3817748708
        %v4430 = vextract.low.u32 %v4429
        %v4431 = vextract.high.u32 %v4429
        %v4432 = vshrl.u32 %v4431, 4
        %v4433 = vmul.u32 %v4432, 18
        %v4434 = vsub.s32 %v4428, %v4433
        %v4435 = vsub.s32 0, %v4434
        %v4436 = vsel %vm4426, %v4435, %v4434
        %vm4437 = vcmp.lt.s32.totalorder %v4161, 0
        %v4438 = vsub.s32 0, %v4161
        %v4439 = vsel %vm4437, %v4438, %v4161
        %v4440 = vmul.u32.u64.compose %v4439, 3817748708
        %v4441 = vextract.low.u32 %v4440
        %v4442 = vextract.high.u32 %v4440
        %v4443 = vshrl.u32 %v4442, 4
        %v4444 = vmul.u32 %v4443, 18
        %v4445 = vsub.s32 %v4439, %v4444
        %v4446 = vsub.s32 0, %v4445
        %v4447 = vsel %vm4437, %v4446, %v4445
        %vm4448 = vcmp.lt.s32.totalorder %v4162, 0
        %v4449 = vsub.s32 0, %v4162
        %v4450 = vsel %vm4448, %v4449, %v4162
        %v4451 = vmul.u32.u64.compose %v4450, 3817748708
        %v4452 = vextract.low.u32 %v4451
        %v4453 = vextract.high.u32 %v4451
        %v4454 = vshrl.u32 %v4453, 4
        %v4455 = vmul.u32 %v4454, 18
        %v4456 = vsub.s32 %v4450, %v4455
        %v4457 = vsub.s32 0, %v4456
        %v4458 = vsel %vm4448, %v4457, %v4456
        %vm4459 = vcmp.lt.s32.totalorder %v4163, 0
        %v4460 = vsub.s32 0, %v4163
        %v4461 = vsel %vm4459, %v4460, %v4163
        %v4462 = vmul.u32.u64.compose %v4461, 3817748708
        %v4463 = vextract.low.u32 %v4462
        %v4464 = vextract.high.u32 %v4462
        %v4465 = vshrl.u32 %v4464, 4
        %v4466 = vmul.u32 %v4465, 18
        %v4467 = vsub.s32 %v4461, %v4466
        %v4468 = vsub.s32 0, %v4467
        %v4469 = vsel %vm4459, %v4468, %v4467
        %vm4470 = vcmp.lt.s32.totalorder %v4164, 0
        %v4471 = vsub.s32 0, %v4164
        %v4472 = vsel %vm4470, %v4471, %v4164
        %v4473 = vmul.u32.u64.compose %v4472, 3817748708
        %v4474 = vextract.low.u32 %v4473
        %v4475 = vextract.high.u32 %v4473
        %v4476 = vshrl.u32 %v4475, 4
        %v4477 = vmul.u32 %v4476, 18
        %v4478 = vsub.s32 %v4472, %v4477
        %v4479 = vsub.s32 0, %v4478
        %v4480 = vsel %vm4470, %v4479, %v4478
        %vm4481 = vcmp.lt.s32.totalorder %v4165, 0
        %v4482 = vsub.s32 0, %v4165
        %v4483 = vsel %vm4481, %v4482, %v4165
        %v4484 = vmul.u32.u64.compose %v4483, 3817748708
        %v4485 = vextract.low.u32 %v4484
        %v4486 = vextract.high.u32 %v4484
        %v4487 = vshrl.u32 %v4486, 4
        %v4488 = vmul.u32 %v4487, 18
        %v4489 = vsub.s32 %v4483, %v4488
        %v4490 = vsub.s32 0, %v4489
        %v4491 = vsel %vm4481, %v4490, %v4489
        %vm4492 = vcmp.lt.s32.totalorder %v4166, 0
        %v4493 = vsub.s32 0, %v4166
        %v4494 = vsel %vm4492, %v4493, %v4166
        %v4495 = vmul.u32.u64.compose %v4494, 3817748708
        %v4496 = vextract.low.u32 %v4495
        %v4497 = vextract.high.u32 %v4495
        %v4498 = vshrl.u32 %v4497, 4
        %v4499 = vmul.u32 %v4498, 18
        %v4500 = vsub.s32 %v4494, %v4499
        %v4501 = vsub.s32 0, %v4500
        %v4502 = vsel %vm4492, %v4501, %v4500
        %vm4503 = vcmp.lt.s32.totalorder %v4167, 0
        %v4504 = vsub.s32 0, %v4167
        %v4505 = vsel %vm4503, %v4504, %v4167
        %v4506 = vmul.u32.u64.compose %v4505, 3817748708
        %v4507 = vextract.low.u32 %v4506
        %v4508 = vextract.high.u32 %v4506
        %v4509 = vshrl.u32 %v4508, 4
        %v4510 = vmul.u32 %v4509, 18
        %v4511 = vsub.s32 %v4505, %v4510
        %v4512 = vsub.s32 0, %v4511
        %v4513 = vsel %vm4503, %v4512, %v4511
        %vm4514 = vcmp.lt.s32.totalorder %v4168, 0
        %v4515 = vsub.s32 0, %v4168
        %v4516 = vsel %vm4514, %v4515, %v4168
        %v4517 = vmul.u32.u64.compose %v4516, 3817748708
        %v4518 = vextract.low.u32 %v4517
        %v4519 = vextract.high.u32 %v4517
        %v4520 = vshrl.u32 %v4519, 4
        %v4521 = vmul.u32 %v4520, 18
        %v4522 = vsub.s32 %v4516, %v4521
        %v4523 = vsub.s32 0, %v4522
        %v4524 = vsel %vm4514, %v4523, %v4522
        %vm4525 = vcmp.lt.s32.totalorder %v4169, 0
        %v4526 = vsub.s32 0, %v4169
        %v4527 = vsel %vm4525, %v4526, %v4169
        %v4528 = vmul.u32.u64.compose %v4527, 3817748708
        %v4529 = vextract.low.u32 %v4528
        %v4530 = vextract.high.u32 %v4528
        %v4531 = vshrl.u32 %v4530, 4
        %v4532 = vmul.u32 %v4531, 18
        %v4533 = vsub.s32 %v4527, %v4532
        %v4534 = vsub.s32 0, %v4533
        %v4535 = vsel %vm4525, %v4534, %v4533
        %vm4536 = vcmp.lt.s32.totalorder %v4170, 0
        %v4537 = vsub.s32 0, %v4170
        %v4538 = vsel %vm4536, %v4537, %v4170
        %v4539 = vmul.u32.u64.compose %v4538, 3817748708
        %v4540 = vextract.low.u32 %v4539
        %v4541 = vextract.high.u32 %v4539
        %v4542 = vshrl.u32 %v4541, 4
        %v4543 = vmul.u32 %v4542, 18
        %v4544 = vsub.s32 %v4538, %v4543
        %v4545 = vsub.s32 0, %v4544
        %v4546 = vsel %vm4536, %v4545, %v4544
        %vm4547 = vcmp.lt.s32.totalorder %v4171, 0
        %v4548 = vsub.s32 0, %v4171
        %v4549 = vsel %vm4547, %v4548, %v4171
        %v4550 = vmul.u32.u64.compose %v4549, 3817748708
        %v4551 = vextract.low.u32 %v4550
        %v4552 = vextract.high.u32 %v4550
        %v4553 = vshrl.u32 %v4552, 4
        %v4554 = vmul.u32 %v4553, 18
        %v4555 = vsub.s32 %v4549, %v4554
        %v4556 = vsub.s32 0, %v4555
        %v4557 = vsel %vm4547, %v4556, %v4555
        %vm4558 = vcmp.lt.s32.totalorder %v4172, 0
        %v4559 = vsub.s32 0, %v4172
        %v4560 = vsel %vm4558, %v4559, %v4172
        %v4561 = vmul.u32.u64.compose %v4560, 3817748708
        %v4562 = vextract.low.u32 %v4561
        %v4563 = vextract.high.u32 %v4561
        %v4564 = vshrl.u32 %v4563, 4
        %v4565 = vmul.u32 %v4564, 18
        %v4566 = vsub.s32 %v4560, %v4565
        %v4567 = vsub.s32 0, %v4566
        %v4568 = vsel %vm4558, %v4567, %v4566
        %vm4569 = vcmp.ne.s32.totalorder %v4183, 0
        %vm4570 = vcmp.ne.s32.totalorder %v4194, 0
        %vm4571 = vcmp.ne.s32.totalorder %v4205, 0
        %vm4572 = vcmp.ne.s32.totalorder %v4216, 0
        %vm4573 = vcmp.ne.s32.totalorder %v4227, 0
        %vm4574 = vcmp.ne.s32.totalorder %v4238, 0
        %vm4575 = vcmp.ne.s32.totalorder %v4249, 0
        %vm4576 = vcmp.ne.s32.totalorder %v4260, 0
        %vm4577 = vcmp.ne.s32.totalorder %v4271, 0
        %vm4578 = vcmp.ne.s32.totalorder %v4282, 0
        %vm4579 = vcmp.ne.s32.totalorder %v4293, 0
        %vm4580 = vcmp.ne.s32.totalorder %v4304, 0
        %vm4581 = vcmp.ne.s32.totalorder %v4315, 0
        %vm4582 = vcmp.ne.s32.totalorder %v4326, 0
        %vm4583 = vcmp.ne.s32.totalorder %v4337, 0
        %vm4584 = vcmp.ne.s32.totalorder %v4348, 0
        %vm4585 = vcmp.ne.s32.totalorder %v4359, 0
        %vm4586 = vcmp.ne.s32.totalorder %v4370, 0
        %vm4587 = vcmp.ne.s32.totalorder %v4381, 0
        %vm4588 = vcmp.ne.s32.totalorder %v4392, 0
        %vm4589 = vcmp.ne.s32.totalorder %v4403, 0
        %vm4590 = vcmp.ne.s32.totalorder %v4414, 0
        %vm4591 = vcmp.ne.s32.totalorder %v4425, 0
        %vm4592 = vcmp.ne.s32.totalorder %v4436, 0
        %vm4593 = vcmp.ne.s32.totalorder %v4447, 0
        %vm4594 = vcmp.ne.s32.totalorder %v4458, 0
        %vm4595 = vcmp.ne.s32.totalorder %v4469, 0
        %vm4596 = vcmp.ne.s32.totalorder %v4480, 0
        %vm4597 = vcmp.ne.s32.totalorder %v4491, 0
        %vm4598 = vcmp.ne.s32.totalorder %v4502, 0
        %vm4599 = vcmp.ne.s32.totalorder %v4513, 0
        %vm4600 = vcmp.ne.s32.totalorder %v4524, 0
        %vm4601 = vcmp.ne.s32.totalorder %v4535, 0
        %vm4602 = vcmp.ne.s32.totalorder %v4546, 0
        %vm4603 = vcmp.ne.s32.totalorder %v4557, 0
        %vm4604 = vcmp.ne.s32.totalorder %v4568, 0
        %vm4605 = vcmp.lt.s32.totalorder %v4183, 0
        %vm4606 = vcmp.lt.s32.totalorder %v4194, 0
        %vm4607 = vcmp.lt.s32.totalorder %v4205, 0
        %vm4608 = vcmp.lt.s32.totalorder %v4216, 0
        %vm4609 = vcmp.lt.s32.totalorder %v4227, 0
        %vm4610 = vcmp.lt.s32.totalorder %v4238, 0
        %vm4611 = vcmp.lt.s32.totalorder %v4249, 0
        %vm4612 = vcmp.lt.s32.totalorder %v4260, 0
        %vm4613 = vcmp.lt.s32.totalorder %v4271, 0
        %vm4614 = vcmp.lt.s32.totalorder %v4282, 0
        %vm4615 = vcmp.lt.s32.totalorder %v4293, 0
        %vm4616 = vcmp.lt.s32.totalorder %v4304, 0
        %vm4617 = vcmp.lt.s32.totalorder %v4315, 0
        %vm4618 = vcmp.lt.s32.totalorder %v4326, 0
        %vm4619 = vcmp.lt.s32.totalorder %v4337, 0
        %vm4620 = vcmp.lt.s32.totalorder %v4348, 0
        %vm4621 = vcmp.lt.s32.totalorder %v4359, 0
        %vm4622 = vcmp.lt.s32.totalorder %v4370, 0
        %vm4623 = vcmp.lt.s32.totalorder %v4381, 0
        %vm4624 = vcmp.lt.s32.totalorder %v4392, 0
        %vm4625 = vcmp.lt.s32.totalorder %v4403, 0
        %vm4626 = vcmp.lt.s32.totalorder %v4414, 0
        %vm4627 = vcmp.lt.s32.totalorder %v4425, 0
        %vm4628 = vcmp.lt.s32.totalorder %v4436, 0
        %vm4629 = vcmp.lt.s32.totalorder %v4447, 0
        %vm4630 = vcmp.lt.s32.totalorder %v4458, 0
        %vm4631 = vcmp.lt.s32.totalorder %v4469, 0
        %vm4632 = vcmp.lt.s32.totalorder %v4480, 0
        %vm4633 = vcmp.lt.s32.totalorder %v4491, 0
        %vm4634 = vcmp.lt.s32.totalorder %v4502, 0
        %vm4635 = vcmp.lt.s32.totalorder %v4513, 0
        %vm4636 = vcmp.lt.s32.totalorder %v4524, 0
        %vm4637 = vcmp.lt.s32.totalorder %v4535, 0
        %vm4638 = vcmp.lt.s32.totalorder %v4546, 0
        %vm4639 = vcmp.lt.s32.totalorder %v4557, 0
        %vm4640 = vcmp.lt.s32.totalorder %v4568, 0
        %vm4641 = vmand %vm4605, %vm4569
        %vm4642 = vmand %vm4606, %vm4570
        %vm4643 = vmand %vm4607, %vm4571
        %vm4644 = vmand %vm4608, %vm4572
        %vm4645 = vmand %vm4609, %vm4573
        %vm4646 = vmand %vm4610, %vm4574
        %vm4647 = vmand %vm4611, %vm4575
        %vm4648 = vmand %vm4612, %vm4576
        %vm4649 = vmand %vm4613, %vm4577
        %vm4650 = vmand %vm4614, %vm4578
        %vm4651 = vmand %vm4615, %vm4579
        %vm4652 = vmand %vm4616, %vm4580
        %vm4653 = vmand %vm4617, %vm4581
        %vm4654 = vmand %vm4618, %vm4582
        %vm4655 = vmand %vm4619, %vm4583
        %vm4656 = vmand %vm4620, %vm4584
        %vm4657 = vmand %vm4621, %vm4585
        %vm4658 = vmand %vm4622, %vm4586
        %vm4659 = vmand %vm4623, %vm4587
        %vm4660 = vmand %vm4624, %vm4588
        %vm4661 = vmand %vm4625, %vm4589
        %vm4662 = vmand %vm4626, %vm4590
        %vm4663 = vmand %vm4627, %vm4591
        %vm4664 = vmand %vm4628, %vm4592
        %vm4665 = vmand %vm4629, %vm4593
        %vm4666 = vmand %vm4630, %vm4594
        %vm4667 = vmand %vm4631, %vm4595
        %vm4668 = vmand %vm4632, %vm4596
        %vm4669 = vmand %vm4633, %vm4597
        %vm4670 = vmand %vm4634, %vm4598
        %vm4671 = vmand %vm4635, %vm4599
        %vm4672 = vmand %vm4636, %vm4600
        %vm4673 = vmand %vm4637, %vm4601
        %vm4674 = vmand %vm4638, %vm4602
        %vm4675 = vmand %vm4639, %vm4603
        %vm4676 = vmand %vm4640, %vm4604
        %v4677 = vadd.s32 %v4183, 18
        %v4678 = vadd.s32 %v4194, 18
        %v4679 = vadd.s32 %v4205, 18
        %v4680 = vadd.s32 %v4216, 18
        %v4681 = vadd.s32 %v4227, 18
        %v4682 = vadd.s32 %v4238, 18
        %v4683 = vadd.s32 %v4249, 18
        %v4684 = vadd.s32 %v4260, 18
        %v4685 = vadd.s32 %v4271, 18
        %v4686 = vadd.s32 %v4282, 18
        %v4687 = vadd.s32 %v4293, 18
        %v4688 = vadd.s32 %v4304, 18
        %v4689 = vadd.s32 %v4315, 18
        %v4690 = vadd.s32 %v4326, 18
        %v4691 = vadd.s32 %v4337, 18
        %v4692 = vadd.s32 %v4348, 18
        %v4693 = vadd.s32 %v4359, 18
        %v4694 = vadd.s32 %v4370, 18
        %v4695 = vadd.s32 %v4381, 18
        %v4696 = vadd.s32 %v4392, 18
        %v4697 = vadd.s32 %v4403, 18
        %v4698 = vadd.s32 %v4414, 18
        %v4699 = vadd.s32 %v4425, 18
        %v4700 = vadd.s32 %v4436, 18
        %v4701 = vadd.s32 %v4447, 18
        %v4702 = vadd.s32 %v4458, 18
        %v4703 = vadd.s32 %v4469, 18
        %v4704 = vadd.s32 %v4480, 18
        %v4705 = vadd.s32 %v4491, 18
        %v4706 = vadd.s32 %v4502, 18
        %v4707 = vadd.s32 %v4513, 18
        %v4708 = vadd.s32 %v4524, 18
        %v4709 = vadd.s32 %v4535, 18
        %v4710 = vadd.s32 %v4546, 18
        %v4711 = vadd.s32 %v4557, 18
        %v4712 = vadd.s32 %v4568, 18
        %v4713 = vsel %vm4641, %v4677, %v4183
        %v4714 = vsel %vm4642, %v4678, %v4194
        %v4715 = vsel %vm4643, %v4679, %v4205
        %v4716 = vsel %vm4644, %v4680, %v4216
        %v4717 = vsel %vm4645, %v4681, %v4227
        %v4718 = vsel %vm4646, %v4682, %v4238
        %v4719 = vsel %vm4647, %v4683, %v4249
        %v4720 = vsel %vm4648, %v4684, %v4260
        %v4721 = vsel %vm4649, %v4685, %v4271
        %v4722 = vsel %vm4650, %v4686, %v4282
        %v4723 = vsel %vm4651, %v4687, %v4293
        %v4724 = vsel %vm4652, %v4688, %v4304
        %v4725 = vsel %vm4653, %v4689, %v4315
        %v4726 = vsel %vm4654, %v4690, %v4326
        %v4727 = vsel %vm4655, %v4691, %v4337
        %v4728 = vsel %vm4656, %v4692, %v4348
        %v4729 = vsel %vm4657, %v4693, %v4359
        %v4730 = vsel %vm4658, %v4694, %v4370
        %v4731 = vsel %vm4659, %v4695, %v4381
        %v4732 = vsel %vm4660, %v4696, %v4392
        %v4733 = vsel %vm4661, %v4697, %v4403
        %v4734 = vsel %vm4662, %v4698, %v4414
        %v4735 = vsel %vm4663, %v4699, %v4425
        %v4736 = vsel %vm4664, %v4700, %v4436
        %v4737 = vsel %vm4665, %v4701, %v4447
        %v4738 = vsel %vm4666, %v4702, %v4458
        %v4739 = vsel %vm4667, %v4703, %v4469
        %v4740 = vsel %vm4668, %v4704, %v4480
        %v4741 = vsel %vm4669, %v4705, %v4491
        %v4742 = vsel %vm4670, %v4706, %v4502
        %v4743 = vsel %vm4671, %v4707, %v4513
        %v4744 = vsel %vm4672, %v4708, %v4524
        %v4745 = vsel %vm4673, %v4709, %v4535
        %v4746 = vsel %vm4674, %v4710, %v4546
        %v4747 = vsel %vm4675, %v4711, %v4557
        %v4748 = vsel %vm4676, %v4712, %v4568
        %vm4749 = vcmp.lt.s32.totalorder %v4713, 16
        %vm4750 = vcmp.lt.s32.totalorder %v4714, 16
        %vm4751 = vcmp.lt.s32.totalorder %v4715, 16
        %vm4752 = vcmp.lt.s32.totalorder %v4716, 16
        %vm4753 = vcmp.lt.s32.totalorder %v4717, 16
        %vm4754 = vcmp.lt.s32.totalorder %v4718, 16
        %vm4755 = vcmp.lt.s32.totalorder %v4719, 16
        %vm4756 = vcmp.lt.s32.totalorder %v4720, 16
        %vm4757 = vcmp.lt.s32.totalorder %v4721, 16
        %vm4758 = vcmp.lt.s32.totalorder %v4722, 16
        %vm4759 = vcmp.lt.s32.totalorder %v4723, 16
        %vm4760 = vcmp.lt.s32.totalorder %v4724, 16
        %vm4761 = vcmp.lt.s32.totalorder %v4725, 16
        %vm4762 = vcmp.lt.s32.totalorder %v4726, 16
        %vm4763 = vcmp.lt.s32.totalorder %v4727, 16
        %vm4764 = vcmp.lt.s32.totalorder %v4728, 16
        %vm4765 = vcmp.lt.s32.totalorder %v4729, 16
        %vm4766 = vcmp.lt.s32.totalorder %v4730, 16
        %vm4767 = vcmp.lt.s32.totalorder %v4731, 16
        %vm4768 = vcmp.lt.s32.totalorder %v4732, 16
        %vm4769 = vcmp.lt.s32.totalorder %v4733, 16
        %vm4770 = vcmp.lt.s32.totalorder %v4734, 16
        %vm4771 = vcmp.lt.s32.totalorder %v4735, 16
        %vm4772 = vcmp.lt.s32.totalorder %v4736, 16
        %vm4773 = vcmp.lt.s32.totalorder %v4737, 16
        %vm4774 = vcmp.lt.s32.totalorder %v4738, 16
        %vm4775 = vcmp.lt.s32.totalorder %v4739, 16
        %vm4776 = vcmp.lt.s32.totalorder %v4740, 16
        %vm4777 = vcmp.lt.s32.totalorder %v4741, 16
        %vm4778 = vcmp.lt.s32.totalorder %v4742, 16
        %vm4779 = vcmp.lt.s32.totalorder %v4743, 16
        %vm4780 = vcmp.lt.s32.totalorder %v4744, 16
        %vm4781 = vcmp.lt.s32.totalorder %v4745, 16
        %vm4782 = vcmp.lt.s32.totalorder %v4746, 16
        %vm4783 = vcmp.lt.s32.totalorder %v4747, 16
        %vm4784 = vcmp.lt.s32.totalorder %v4748, 16
        %v4785 = vsel %vm4749, 1, 0
        %v4786 = vsel %vm4750, 1, 0
        %v4787 = vsel %vm4751, 1, 0
        %v4788 = vsel %vm4752, 1, 0
        %v4789 = vsel %vm4753, 1, 0
        %v4790 = vsel %vm4754, 1, 0
        %v4791 = vsel %vm4755, 1, 0
        %v4792 = vsel %vm4756, 1, 0
        %v4793 = vsel %vm4757, 1, 0
        %v4794 = vsel %vm4758, 1, 0
        %v4795 = vsel %vm4759, 1, 0
        %v4796 = vsel %vm4760, 1, 0
        %v4797 = vsel %vm4761, 1, 0
        %v4798 = vsel %vm4762, 1, 0
        %v4799 = vsel %vm4763, 1, 0
        %v4800 = vsel %vm4764, 1, 0
        %v4801 = vsel %vm4765, 1, 0
        %v4802 = vsel %vm4766, 1, 0
        %v4803 = vsel %vm4767, 1, 0
        %v4804 = vsel %vm4768, 1, 0
        %v4805 = vsel %vm4769, 1, 0
        %v4806 = vsel %vm4770, 1, 0
        %v4807 = vsel %vm4771, 1, 0
        %v4808 = vsel %vm4772, 1, 0
        %v4809 = vsel %vm4773, 1, 0
        %v4810 = vsel %vm4774, 1, 0
        %v4811 = vsel %vm4775, 1, 0
        %v4812 = vsel %vm4776, 1, 0
        %v4813 = vsel %vm4777, 1, 0
        %v4814 = vsel %vm4778, 1, 0
        %v4815 = vsel %vm4779, 1, 0
        %v4816 = vsel %vm4780, 1, 0
        %v4817 = vsel %vm4781, 1, 0
        %v4818 = vsel %vm4782, 1, 0
        %v4819 = vsel %vm4783, 1, 0
        %v4820 = vsel %vm4784, 1, 0
        %v4821 = vcvt.s32.f32 %v4785
        %v4822 = vcvt.s32.f32 %v4786
        %v4823 = vcvt.s32.f32 %v4787
        %v4824 = vcvt.s32.f32 %v4788
        %v4825 = vcvt.s32.f32 %v4789
        %v4826 = vcvt.s32.f32 %v4790
        %v4827 = vcvt.s32.f32 %v4791
        %v4828 = vcvt.s32.f32 %v4792
        %v4829 = vcvt.s32.f32 %v4793
        %v4830 = vcvt.s32.f32 %v4794
        %v4831 = vcvt.s32.f32 %v4795
        %v4832 = vcvt.s32.f32 %v4796
        %v4833 = vcvt.s32.f32 %v4797
        %v4834 = vcvt.s32.f32 %v4798
        %v4835 = vcvt.s32.f32 %v4799
        %v4836 = vcvt.s32.f32 %v4800
        %v4837 = vcvt.s32.f32 %v4801
        %v4838 = vcvt.s32.f32 %v4802
        %v4839 = vcvt.s32.f32 %v4803
        %v4840 = vcvt.s32.f32 %v4804
        %v4841 = vcvt.s32.f32 %v4805
        %v4842 = vcvt.s32.f32 %v4806
        %v4843 = vcvt.s32.f32 %v4807
        %v4844 = vcvt.s32.f32 %v4808
        %v4845 = vcvt.s32.f32 %v4809
        %v4846 = vcvt.s32.f32 %v4810
        %v4847 = vcvt.s32.f32 %v4811
        %v4848 = vcvt.s32.f32 %v4812
        %v4849 = vcvt.s32.f32 %v4813
        %v4850 = vcvt.s32.f32 %v4814
        %v4851 = vcvt.s32.f32 %v4815
        %v4852 = vcvt.s32.f32 %v4816
        %v4853 = vcvt.s32.f32 %v4817
        %v4854 = vcvt.s32.f32 %v4818
        %v4855 = vcvt.s32.f32 %v4819
        %v4856 = vcvt.s32.f32 %v4820
        %v4857 = vmul.f32 %v3814, %v4821
        %v4858 = vmul.f32 %v3817, %v4822
        %v4859 = vmul.f32 %v3822, %v4823
        %v4860 = vmul.f32 %v3825, %v4824
        %v4861 = vmul.f32 %v3830, %v4825
        %v4862 = vmul.f32 %v3833, %v4826
        %v4863 = vmul.f32 %v3838, %v4827
        %v4864 = vmul.f32 %v3841, %v4828
        %v4865 = vmul.f32 %v3846, %v4829
        %v4866 = vmul.f32 %v3849, %v4830
        %v4867 = vmul.f32 %v3854, %v4831
        %v4868 = vmul.f32 %v3857, %v4832
        %v4869 = vmul.f32 %v3862, %v4833
        %v4870 = vmul.f32 %v3865, %v4834
        %v4871 = vmul.f32 %v3870, %v4835
        %v4872 = vmul.f32 %v3873, %v4836
        %v4873 = vmul.f32 %v3878, %v4837
        %v4874 = vmul.f32 %v3881, %v4838
        %v4875 = vmul.f32 %v3886, %v4839
        %v4876 = vmul.f32 %v3889, %v4840
        %v4877 = vmul.f32 %v3894, %v4841
        %v4878 = vmul.f32 %v3897, %v4842
        %v4879 = vmul.f32 %v3902, %v4843
        %v4880 = vmul.f32 %v3905, %v4844
        %v4881 = vmul.f32 %v3910, %v4845
        %v4882 = vmul.f32 %v3913, %v4846
        %v4883 = vmul.f32 %v3918, %v4847
        %v4884 = vmul.f32 %v3921, %v4848
        %v4885 = vmul.f32 %v3926, %v4849
        %v4886 = vmul.f32 %v3929, %v4850
        %v4887 = vmul.f32 %v3934, %v4851
        %v4888 = vmul.f32 %v3937, %v4852
        %v4889 = vmul.f32 %v3942, %v4853
        %v4890 = vmul.f32 %v3945, %v4854
        %v4891 = vmul.f32 %v3950, %v4855
        %v4892 = vmul.f32 %v3953, %v4856
        %v4893 = vld [vmem:[#allocation3] sm:$0x1]
        %v4894 = vadd.f32 %v4857, %v4858
        %v4895 = vadd.f32 %v4894, %v4859
        %v4896 = vadd.f32 %v4895, %v4860
        %v4897 = vadd.f32 %v4896, %v4861
        %v4898 = vadd.f32 %v4897, %v4862
        %v4899 = vadd.f32 %v4898, %v4863
        %v4900 = vadd.f32 %v4899, %v4864
        %v4901 = vadd.f32 %v4900, %v4865
        %v4902 = vadd.f32 %v4901, %v4866
        %v4903 = vadd.f32 %v4902, %v4867
        %v4904 = vadd.f32 %v4903, %v4868
        %v4905 = vadd.f32 %v4904, %v4869
        %v4906 = vadd.f32 %v4905, %v4870
        %v4907 = vadd.f32 %v4906, %v4871
        %v4908 = vadd.f32 %v4907, %v4872
        %v4909 = vadd.f32 %v4908, %v4873
        %v4910 = vadd.f32 %v4909, %v4874
        %v4911 = vadd.f32 %v4910, %v4875
        %v4912 = vadd.f32 %v4911, %v4876
        %v4913 = vadd.f32 %v4912, %v4877
        %v4914 = vadd.f32 %v4913, %v4878
        %v4915 = vadd.f32 %v4914, %v4879
        %v4916 = vadd.f32 %v4915, %v4880
        %v4917 = vadd.f32 %v4916, %v4881
        %v4918 = vadd.f32 %v4917, %v4882
        %v4919 = vadd.f32 %v4918, %v4883
        %v4920 = vadd.f32 %v4919, %v4884
        %v4921 = vadd.f32 %v4920, %v4885
        %v4922 = vadd.f32 %v4921, %v4886
        %v4923 = vadd.f32 %v4922, %v4887
        %v4924 = vadd.f32 %v4923, %v4888
        %v4925 = vadd.f32 %v4924, %v4889
        %v4926 = vadd.f32 %v4925, %v4890
        %v4927 = vadd.f32 %v4926, %v4891
        %v4928 = vadd.f32 %v4927, %v4892
        %v4929 = vrot.slane %v4928, 4
        %v4930 = vadd.f32 %v4928, %v4929
        %v4931 = vrot.slane %v4930, 2
        %v4932 = vadd.f32 %v4930, %v4931
        %v4933 = vrot.slane %v4932, 1
        %v4934 = vadd.f32 %v4932, %v4933
        %v4935 = vadd.f32 %v4893, %v4934
        %4936 = vst [vmem:[#allocation3] sm:$0x1] %v4935
        %v4937 = vld [vmem:[#allocation3 + $0x1] sm:$0x1]
        %v4938 = vmul.f32 %v4857, %v3814
        %v4939 = vmul.f32 %v4858, %v3817
        %v4940 = vmul.f32 %v4859, %v3822
        %v4941 = vmul.f32 %v4860, %v3825
        %v4942 = vmul.f32 %v4861, %v3830
        %v4943 = vmul.f32 %v4862, %v3833
        %v4944 = vmul.f32 %v4863, %v3838
        %v4945 = vmul.f32 %v4864, %v3841
        %v4946 = vmul.f32 %v4865, %v3846
        %v4947 = vmul.f32 %v4866, %v3849
        %v4948 = vmul.f32 %v4867, %v3854
        %v4949 = vmul.f32 %v4868, %v3857
        %v4950 = vmul.f32 %v4869, %v3862
        %v4951 = vmul.f32 %v4870, %v3865
        %v4952 = vmul.f32 %v4871, %v3870
        %v4953 = vmul.f32 %v4872, %v3873
        %v4954 = vmul.f32 %v4873, %v3878
        %v4955 = vmul.f32 %v4874, %v3881
        %v4956 = vmul.f32 %v4875, %v3886
        %v4957 = vmul.f32 %v4876, %v3889
        %v4958 = vmul.f32 %v4877, %v3894
        %v4959 = vmul.f32 %v4878, %v3897
        %v4960 = vmul.f32 %v4879, %v3902
        %v4961 = vmul.f32 %v4880, %v3905
        %v4962 = vmul.f32 %v4881, %v3910
        %v4963 = vmul.f32 %v4882, %v3913
        %v4964 = vmul.f32 %v4883, %v3918
        %v4965 = vmul.f32 %v4884, %v3921
        %v4966 = vmul.f32 %v4885, %v3926
        %v4967 = vmul.f32 %v4886, %v3929
        %v4968 = vmul.f32 %v4887, %v3934
        %v4969 = vmul.f32 %v4888, %v3937
        %v4970 = vmul.f32 %v4889, %v3942
        %v4971 = vmul.f32 %v4890, %v3945
        %v4972 = vmul.f32 %v4891, %v3950
        %v4973 = vmul.f32 %v4892, %v3953
        %v4974 = vadd.f32 %v4938, %v4939
        %v4975 = vadd.f32 %v4974, %v4940
        %v4976 = vadd.f32 %v4975, %v4941
        %v4977 = vadd.f32 %v4976, %v4942
        %v4978 = vadd.f32 %v4977, %v4943
        %v4979 = vadd.f32 %v4978, %v4944
        %v4980 = vadd.f32 %v4979, %v4945
        %v4981 = vadd.f32 %v4980, %v4946
        %v4982 = vadd.f32 %v4981, %v4947
        %v4983 = vadd.f32 %v4982, %v4948
        %v4984 = vadd.f32 %v4983, %v4949
        %v4985 = vadd.f32 %v4984, %v4950
        %v4986 = vadd.f32 %v4985, %v4951
        %v4987 = vadd.f32 %v4986, %v4952
        %v4988 = vadd.f32 %v4987, %v4953
        %v4989 = vadd.f32 %v4988, %v4954
        %v4990 = vadd.f32 %v4989, %v4955
        %v4991 = vadd.f32 %v4990, %v4956
        %v4992 = vadd.f32 %v4991, %v4957
        %v4993 = vadd.f32 %v4992, %v4958
        %v4994 = vadd.f32 %v4993, %v4959
        %v4995 = vadd.f32 %v4994, %v4960
        %v4996 = vadd.f32 %v4995, %v4961
        %v4997 = vadd.f32 %v4996, %v4962
        %v4998 = vadd.f32 %v4997, %v4963
        %v4999 = vadd.f32 %v4998, %v4964
        %v5000 = vadd.f32 %v4999, %v4965
        %v5001 = vadd.f32 %v5000, %v4966
        %v5002 = vadd.f32 %v5001, %v4967
        %v5003 = vadd.f32 %v5002, %v4968
        %v5004 = vadd.f32 %v5003, %v4969
        %v5005 = vadd.f32 %v5004, %v4970
        %v5006 = vadd.f32 %v5005, %v4971
        %v5007 = vadd.f32 %v5006, %v4972
        %v5008 = vadd.f32 %v5007, %v4973
        %v5009 = vrot.slane %v5008, 4
        %v5010 = vadd.f32 %v5008, %v5009
        %v5011 = vrot.slane %v5010, 2
        %v5012 = vadd.f32 %v5010, %v5011
        %v5013 = vrot.slane %v5012, 1
        %v5014 = vadd.f32 %v5012, %v5013
        %v5015 = vadd.f32 %v4937, %v5014
        %5016 = vst [vmem:[#allocation3 + $0x1] sm:$0x1] %v5015
        // Predicated region
        $region33: #{tpu_custom_call.1} parent=27 // pred_check
          %p5017 = pneg %p192
        $region34: #{tpu_custom_call.1} parent=27 // pred_check_branch
          %5019 = sbr.rel (%p5017) target = $region36
        $region35: #{tpu_custom_call.1} parent=27 // pred_region
          %v5020 = vld [vmem:[#allocation3] sm:$0x1]
          %v5021 = vmul.f32 %v5020, 0.00390625
          %v5022 = vld [vmem:[#allocation3 + $0x1] sm:$0x1]
          %v5023 = vmul.f32 %v5022, 0.00390625
          %v5024 = vmul.f32 %v5021, %v5021
          %v5025 = vsub.f32 %v5023, %v5024
          %v5026 = vadd.f32 %v5025, 1e-05
          %v5027 = vrsqrt.pop %v5026
          %v5028 = vld [vmem:[%s179] sm:$0xf]
          %v5029 = vld [vmem:[%s179 + $0x4] sm:$0xf]
          %v5030 = vld [vmem:[%s179 + $0x8] sm:$0xf]
          %v5031 = vld [vmem:[%s179 + $0xc] sm:$0xf]
          %v5032 = vld [vmem:[%s179 + $0x10] sm:$0xf]
          %v5033 = vld [vmem:[%s179 + $0x14] sm:$0xf]
          %v5034 = vld [vmem:[%s179 + $0x18] sm:$0xf]
          %v5035 = vld [vmem:[%s179 + $0x1c] sm:$0xf]
          %v5036 = vld [vmem:[%s179 + $0x20] sm:$0xf]
          %v5037 = vld [vmem:[%s179 + $0x24] sm:$0xf]
          %v5038 = vld [vmem:[%s179 + $0x28] sm:$0xf]
          %v5039 = vld [vmem:[%s179 + $0x2c] sm:$0xf]
          %v5040 = vld [vmem:[%s179 + $0x30] sm:$0xf]
          %v5041 = vld [vmem:[%s179 + $0x34] sm:$0xf]
          %v5042 = vld [vmem:[%s179 + $0x38] sm:$0xf]
          %v5043 = vld [vmem:[%s179 + $0x3c] sm:$0xf]
          %v5044 = vld [vmem:[%s179 + $0x40] sm:$0xf]
          %v5045 = vld [vmem:[%s179 + $0x44] sm:$0xf]
          %v5046 = vld [vmem:[%s179 + $0x48] sm:$0xf]
          %v5047 = vld [vmem:[%s179 + $0x4c] sm:$0xf]
          %v5048 = vld [vmem:[%s179 + $0x50] sm:$0xf]
          %v5049 = vld [vmem:[%s179 + $0x54] sm:$0xf]
          %v5050 = vld [vmem:[%s179 + $0x58] sm:$0xf]
          %v5051 = vld [vmem:[%s179 + $0x5c] sm:$0xf]
          %v5052 = vld [vmem:[%s179 + $0x60] sm:$0xf]
          %v5053 = vld [vmem:[%s179 + $0x64] sm:$0xf]
          %v5054 = vld [vmem:[%s179 + $0x68] sm:$0xf]
          %v5055 = vld [vmem:[%s179 + $0x6c] sm:$0xf]
          %v5056 = vld [vmem:[%s179 + $0x70] sm:$0xf]
          %v5057 = vld [vmem:[%s179 + $0x74] sm:$0xf]
          %v5058 = vld [vmem:[%s179 + $0x78] sm:$0xf]
          %v5059 = vld [vmem:[%s179 + $0x7c] sm:$0xf]
          %v5060 = vld [vmem:[%s179 + $0x80] sm:$0xf]
          %v5061 = vld [vmem:[%s179 + $0x84] sm:$0xf]
          %v5062 = vld [vmem:[%s179 + $0x88] sm:$0xf]
          %v5063 = vld [vmem:[%s179 + $0x8c] sm:$0xf]
          %v5064 = vunpack.c.l.bf16 %v5028
          %v5065 = vunpack.c.l.bf16 %v5029
          %v5066 = vunpack.c.l.bf16 %v5030
          %v5067 = vunpack.c.l.bf16 %v5031
          %v5068 = vunpack.c.l.bf16 %v5032
          %v5069 = vunpack.c.l.bf16 %v5033
          %v5070 = vunpack.c.l.bf16 %v5034
          %v5071 = vunpack.c.l.bf16 %v5035
          %v5072 = vunpack.c.l.bf16 %v5036
          %v5073 = vunpack.c.l.bf16 %v5037
          %v5074 = vunpack.c.l.bf16 %v5038
          %v5075 = vunpack.c.l.bf16 %v5039
          %v5076 = vunpack.c.l.bf16 %v5040
          %v5077 = vunpack.c.l.bf16 %v5041
          %v5078 = vunpack.c.l.bf16 %v5042
          %v5079 = vunpack.c.l.bf16 %v5043
          %v5080 = vunpack.c.l.bf16 %v5044
          %v5081 = vunpack.c.l.bf16 %v5045
          %v5082 = vunpack.c.l.bf16 %v5046
          %v5083 = vunpack.c.l.bf16 %v5047
          %v5084 = vunpack.c.l.bf16 %v5048
          %v5085 = vunpack.c.l.bf16 %v5049
          %v5086 = vunpack.c.l.bf16 %v5050
          %v5087 = vunpack.c.l.bf16 %v5051
          %v5088 = vunpack.c.l.bf16 %v5052
          %v5089 = vunpack.c.l.bf16 %v5053
          %v5090 = vunpack.c.l.bf16 %v5054
          %v5091 = vunpack.c.l.bf16 %v5055
          %v5092 = vunpack.c.l.bf16 %v5056
          %v5093 = vunpack.c.l.bf16 %v5057
          %v5094 = vunpack.c.l.bf16 %v5058
          %v5095 = vunpack.c.l.bf16 %v5059
          %v5096 = vunpack.c.l.bf16 %v5060
          %v5097 = vunpack.c.l.bf16 %v5061
          %v5098 = vunpack.c.l.bf16 %v5062
          %v5099 = vunpack.c.l.bf16 %v5063
          %v5100 = vlaneseq
          %v5101 = vshrl.u32 %v5100, 7
          %v5102 = vsub.s32 0, %v5101
          %v5103 = vrot.slane %v5021, %v5102
          %v5104 = vsub.f32 %v5064, %v5103
          %v5105 = vsub.f32 %v5065, %v5103
          %v5106 = vsub.f32 %v5066, %v5103
          %v5107 = vsub.f32 %v5067, %v5103
          %v5108 = vsub.f32 %v5068, %v5103
          %v5109 = vsub.f32 %v5069, %v5103
          %v5110 = vsub.f32 %v5070, %v5103
          %v5111 = vsub.f32 %v5071, %v5103
          %v5112 = vsub.f32 %v5072, %v5103
          %v5113 = vsub.f32 %v5073, %v5103
          %v5114 = vsub.f32 %v5074, %v5103
          %v5115 = vsub.f32 %v5075, %v5103
          %v5116 = vsub.f32 %v5076, %v5103
          %v5117 = vsub.f32 %v5077, %v5103
          %v5118 = vsub.f32 %v5078, %v5103
          %v5119 = vsub.f32 %v5079, %v5103
          %v5120 = vsub.f32 %v5080, %v5103
          %v5121 = vsub.f32 %v5081, %v5103
          %v5122 = vsub.f32 %v5082, %v5103
          %v5123 = vsub.f32 %v5083, %v5103
          %v5124 = vsub.f32 %v5084, %v5103
          %v5125 = vsub.f32 %v5085, %v5103
          %v5126 = vsub.f32 %v5086, %v5103
          %v5127 = vsub.f32 %v5087, %v5103
          %v5128 = vsub.f32 %v5088, %v5103
          %v5129 = vsub.f32 %v5089, %v5103
          %v5130 = vsub.f32 %v5090, %v5103
          %v5131 = vsub.f32 %v5091, %v5103
          %v5132 = vsub.f32 %v5092, %v5103
          %v5133 = vsub.f32 %v5093, %v5103
          %v5134 = vsub.f32 %v5094, %v5103
          %v5135 = vsub.f32 %v5095, %v5103
          %v5136 = vsub.f32 %v5096, %v5103
          %v5137 = vsub.f32 %v5097, %v5103
          %v5138 = vsub.f32 %v5098, %v5103
          %v5139 = vsub.f32 %v5099, %v5103
          %v5140 = vlaneseq
          %v5141 = vshrl.u32 %v5140, 7
          %v5142 = vsub.s32 0, %v5141
          %v5143 = vrot.slane %v5027, %v5142
          %v5144 = vmul.f32 %v5104, %v5143
          %v5145 = vmul.f32 %v5105, %v5143
          %v5146 = vmul.f32 %v5106, %v5143
          %v5147 = vmul.f32 %v5107, %v5143
          %v5148 = vmul.f32 %v5108, %v5143
          %v5149 = vmul.f32 %v5109, %v5143
          %v5150 = vmul.f32 %v5110, %v5143
          %v5151 = vmul.f32 %v5111, %v5143
          %v5152 = vmul.f32 %v5112, %v5143
          %v5153 = vmul.f32 %v5113, %v5143
          %v5154 = vmul.f32 %v5114, %v5143
          %v5155 = vmul.f32 %v5115, %v5143
          %v5156 = vmul.f32 %v5116, %v5143
          %v5157 = vmul.f32 %v5117, %v5143
          %v5158 = vmul.f32 %v5118, %v5143
          %v5159 = vmul.f32 %v5119, %v5143
          %v5160 = vmul.f32 %v5120, %v5143
          %v5161 = vmul.f32 %v5121, %v5143
          %v5162 = vmul.f32 %v5122, %v5143
          %v5163 = vmul.f32 %v5123, %v5143
          %v5164 = vmul.f32 %v5124, %v5143
          %v5165 = vmul.f32 %v5125, %v5143
          %v5166 = vmul.f32 %v5126, %v5143
          %v5167 = vmul.f32 %v5127, %v5143
          %v5168 = vmul.f32 %v5128, %v5143
          %v5169 = vmul.f32 %v5129, %v5143
          %v5170 = vmul.f32 %v5130, %v5143
          %v5171 = vmul.f32 %v5131, %v5143
          %v5172 = vmul.f32 %v5132, %v5143
          %v5173 = vmul.f32 %v5133, %v5143
          %v5174 = vmul.f32 %v5134, %v5143
          %v5175 = vmul.f32 %v5135, %v5143
          %v5176 = vmul.f32 %v5136, %v5143
          %v5177 = vmul.f32 %v5137, %v5143
          %v5178 = vmul.f32 %v5138, %v5143
          %v5179 = vmul.f32 %v5139, %v5143
          %vm5180 = vcmp.ge.f32.partialorder %v5144, 0.0
          %vm5181 = vcmp.ge.f32.partialorder %v5145, 0.0
          %vm5182 = vcmp.ge.f32.partialorder %v5146, 0.0
          %vm5183 = vcmp.ge.f32.partialorder %v5147, 0.0
          %vm5184 = vcmp.ge.f32.partialorder %v5148, 0.0
          %vm5185 = vcmp.ge.f32.partialorder %v5149, 0.0
          %vm5186 = vcmp.ge.f32.partialorder %v5150, 0.0
          %vm5187 = vcmp.ge.f32.partialorder %v5151, 0.0
          %vm5188 = vcmp.ge.f32.partialorder %v5152, 0.0
          %vm5189 = vcmp.ge.f32.partialorder %v5153, 0.0
          %vm5190 = vcmp.ge.f32.partialorder %v5154, 0.0
          %vm5191 = vcmp.ge.f32.partialorder %v5155, 0.0
          %vm5192 = vcmp.ge.f32.partialorder %v5156, 0.0
          %vm5193 = vcmp.ge.f32.partialorder %v5157, 0.0
          %vm5194 = vcmp.ge.f32.partialorder %v5158, 0.0
          %vm5195 = vcmp.ge.f32.partialorder %v5159, 0.0
          %vm5196 = vcmp.ge.f32.partialorder %v5160, 0.0
          %vm5197 = vcmp.ge.f32.partialorder %v5161, 0.0
          %vm5198 = vcmp.ge.f32.partialorder %v5162, 0.0
          %vm5199 = vcmp.ge.f32.partialorder %v5163, 0.0
          %vm5200 = vcmp.ge.f32.partialorder %v5164, 0.0
          %vm5201 = vcmp.ge.f32.partialorder %v5165, 0.0
          %vm5202 = vcmp.ge.f32.partialorder %v5166, 0.0
          %vm5203 = vcmp.ge.f32.partialorder %v5167, 0.0
          %vm5204 = vcmp.ge.f32.partialorder %v5168, 0.0
          %vm5205 = vcmp.ge.f32.partialorder %v5169, 0.0
          %vm5206 = vcmp.ge.f32.partialorder %v5170, 0.0
          %vm5207 = vcmp.ge.f32.partialorder %v5171, 0.0
          %vm5208 = vcmp.ge.f32.partialorder %v5172, 0.0
          %vm5209 = vcmp.ge.f32.partialorder %v5173, 0.0
          %vm5210 = vcmp.ge.f32.partialorder %v5174, 0.0
          %vm5211 = vcmp.ge.f32.partialorder %v5175, 0.0
          %vm5212 = vcmp.ge.f32.partialorder %v5176, 0.0
          %vm5213 = vcmp.ge.f32.partialorder %v5177, 0.0
          %vm5214 = vcmp.ge.f32.partialorder %v5178, 0.0
          %vm5215 = vcmp.ge.f32.partialorder %v5179, 0.0
          %v5216 = vmul.f32 %v5144, 0.01
          %v5217 = vmul.f32 %v5145, 0.01
          %v5218 = vmul.f32 %v5146, 0.01
          %v5219 = vmul.f32 %v5147, 0.01
          %v5220 = vmul.f32 %v5148, 0.01
          %v5221 = vmul.f32 %v5149, 0.01
          %v5222 = vmul.f32 %v5150, 0.01
          %v5223 = vmul.f32 %v5151, 0.01
          %v5224 = vmul.f32 %v5152, 0.01
          %v5225 = vmul.f32 %v5153, 0.01
          %v5226 = vmul.f32 %v5154, 0.01
          %v5227 = vmul.f32 %v5155, 0.01
          %v5228 = vmul.f32 %v5156, 0.01
          %v5229 = vmul.f32 %v5157, 0.01
          %v5230 = vmul.f32 %v5158, 0.01
          %v5231 = vmul.f32 %v5159, 0.01
          %v5232 = vmul.f32 %v5160, 0.01
          %v5233 = vmul.f32 %v5161, 0.01
          %v5234 = vmul.f32 %v5162, 0.01
          %v5235 = vmul.f32 %v5163, 0.01
          %v5236 = vmul.f32 %v5164, 0.01
          %v5237 = vmul.f32 %v5165, 0.01
          %v5238 = vmul.f32 %v5166, 0.01
          %v5239 = vmul.f32 %v5167, 0.01
          %v5240 = vmul.f32 %v5168, 0.01
          %v5241 = vmul.f32 %v5169, 0.01
          %v5242 = vmul.f32 %v5170, 0.01
          %v5243 = vmul.f32 %v5171, 0.01
          %v5244 = vmul.f32 %v5172, 0.01
          %v5245 = vmul.f32 %v5173, 0.01
          %v5246 = vmul.f32 %v5174, 0.01
          %v5247 = vmul.f32 %v5175, 0.01
          %v5248 = vmul.f32 %v5176, 0.01
          %v5249 = vmul.f32 %v5177, 0.01
          %v5250 = vmul.f32 %v5178, 0.01
          %v5251 = vmul.f32 %v5179, 0.01
          %v5252 = vsel %vm5180, %v5144, %v5216
          %v5253 = vsel %vm5181, %v5145, %v5217
          %v5254 = vsel %vm5182, %v5146, %v5218
          %v5255 = vsel %vm5183, %v5147, %v5219
          %v5256 = vsel %vm5184, %v5148, %v5220
          %v5257 = vsel %vm5185, %v5149, %v5221
          %v5258 = vsel %vm5186, %v5150, %v5222
          %v5259 = vsel %vm5187, %v5151, %v5223
          %v5260 = vsel %vm5188, %v5152, %v5224
          %v5261 = vsel %vm5189, %v5153, %v5225
          %v5262 = vsel %vm5190, %v5154, %v5226
          %v5263 = vsel %vm5191, %v5155, %v5227
          %v5264 = vsel %vm5192, %v5156, %v5228
          %v5265 = vsel %vm5193, %v5157, %v5229
          %v5266 = vsel %vm5194, %v5158, %v5230
          %v5267 = vsel %vm5195, %v5159, %v5231
          %v5268 = vsel %vm5196, %v5160, %v5232
          %v5269 = vsel %vm5197, %v5161, %v5233
          %v5270 = vsel %vm5198, %v5162, %v5234
          %v5271 = vsel %vm5199, %v5163, %v5235
          %v5272 = vsel %vm5200, %v5164, %v5236
          %v5273 = vsel %vm5201, %v5165, %v5237
          %v5274 = vsel %vm5202, %v5166, %v5238
          %v5275 = vsel %vm5203, %v5167, %v5239
          %v5276 = vsel %vm5204, %v5168, %v5240
          %v5277 = vsel %vm5205, %v5169, %v5241
          %v5278 = vsel %vm5206, %v5170, %v5242
          %v5279 = vsel %vm5207, %v5171, %v5243
          %v5280 = vsel %vm5208, %v5172, %v5244
          %v5281 = vsel %vm5209, %v5173, %v5245
          %v5282 = vsel %vm5210, %v5174, %v5246
          %v5283 = vsel %vm5211, %v5175, %v5247
          %v5284 = vsel %vm5212, %v5176, %v5248
          %v5285 = vsel %vm5213, %v5177, %v5249
          %v5286 = vsel %vm5214, %v5178, %v5250
          %v5287 = vsel %vm5215, %v5179, %v5251
          %v5288 = vpack.c.bf16 %v5253, %v5252
          %v5289 = vpack.c.bf16 %v5255, %v5254
          %v5290 = vpack.c.bf16 %v5257, %v5256
          %v5291 = vpack.c.bf16 %v5259, %v5258
          %v5292 = vpack.c.bf16 %v5261, %v5260
          %v5293 = vpack.c.bf16 %v5263, %v5262
          %v5294 = vpack.c.bf16 %v5265, %v5264
          %v5295 = vpack.c.bf16 %v5267, %v5266
          %v5296 = vpack.c.bf16 %v5269, %v5268
          %v5297 = vpack.c.bf16 %v5271, %v5270
          %v5298 = vpack.c.bf16 %v5273, %v5272
          %v5299 = vpack.c.bf16 %v5275, %v5274
          %v5300 = vpack.c.bf16 %v5277, %v5276
          %v5301 = vpack.c.bf16 %v5279, %v5278
          %v5302 = vpack.c.bf16 %v5281, %v5280
          %v5303 = vpack.c.bf16 %v5283, %v5282
          %v5304 = vpack.c.bf16 %v5285, %v5284
          %v5305 = vpack.c.bf16 %v5287, %v5286
          %v5324 = vunpack.c.l.b16 %v5288
          %v5325 = vunpack.c.h.b16 %v5288
          %v5326 = vunpack.c.l.b16 %v5289
          %v5327 = vunpack.c.h.b16 %v5289
          %v5328 = vunpack.c.l.b16 %v5290
          %v5329 = vunpack.c.h.b16 %v5290
          %v5330 = vunpack.c.l.b16 %v5291
          %v5331 = vunpack.c.h.b16 %v5291
          %v5332 = vunpack.c.l.b16 %v5292
          %v5333 = vunpack.c.h.b16 %v5292
          %v5334 = vunpack.c.l.b16 %v5293
          %v5335 = vunpack.c.h.b16 %v5293
          %v5336 = vunpack.c.l.b16 %v5294
          %v5337 = vunpack.c.h.b16 %v5294
          %v5338 = vunpack.c.l.b16 %v5295
          %v5339 = vunpack.c.h.b16 %v5295
          %v5340 = vunpack.c.l.b16 %v5296
          %v5341 = vunpack.c.h.b16 %v5296
          %v5342 = vunpack.c.l.b16 %v5297
          %v5343 = vunpack.c.h.b16 %v5297
          %v5344 = vunpack.c.l.b16 %v5298
          %v5345 = vunpack.c.h.b16 %v5298
          %v5346 = vunpack.c.l.b16 %v5299
          %v5347 = vunpack.c.h.b16 %v5299
          %v5348 = vunpack.c.l.b16 %v5300
          %v5349 = vunpack.c.h.b16 %v5300
          %v5350 = vunpack.c.l.b16 %v5301
          %v5351 = vunpack.c.h.b16 %v5301
          %v5352 = vunpack.c.l.b16 %v5302
          %v5353 = vunpack.c.h.b16 %v5302
          %v5354 = vunpack.c.l.b16 %v5303
          %v5355 = vunpack.c.h.b16 %v5303
          %v5356 = vunpack.c.l.b16 %v5304
          %v5357 = vunpack.c.h.b16 %v5304
          %v5358 = vunpack.c.l.b16 %v5305
          %v5359 = vunpack.c.h.b16 %v5305
          %v5360 = vpack.c.b16 %v5324, %v5324
          %v5361 = vpack.c.b16 %v5325, %v5325
          %v5362 = vpack.c.b16 %v5326, %v5326
          %v5363 = vpack.c.b16 %v5327, %v5327
          %v5364 = vpack.c.b16 %v5328, %v5328
          %v5365 = vpack.c.b16 %v5329, %v5329
          %v5366 = vpack.c.b16 %v5330, %v5330
          %v5367 = vpack.c.b16 %v5331, %v5331
          %v5368 = vpack.c.b16 %v5332, %v5332
          %v5369 = vpack.c.b16 %v5333, %v5333
          %v5370 = vpack.c.b16 %v5334, %v5334
          %v5371 = vpack.c.b16 %v5335, %v5335
          %v5372 = vpack.c.b16 %v5336, %v5336
          %v5373 = vpack.c.b16 %v5337, %v5337
          %v5374 = vpack.c.b16 %v5338, %v5338
          %v5375 = vpack.c.b16 %v5339, %v5339
          %v5376 = vpack.c.b16 %v5340, %v5340
          %v5377 = vpack.c.b16 %v5341, %v5341
          %v5378 = vpack.c.b16 %v5342, %v5342
          %v5379 = vpack.c.b16 %v5343, %v5343
          %v5380 = vpack.c.b16 %v5344, %v5344
          %v5381 = vpack.c.b16 %v5345, %v5345
          %v5382 = vpack.c.b16 %v5346, %v5346
          %v5383 = vpack.c.b16 %v5347, %v5347
          %v5384 = vpack.c.b16 %v5348, %v5348
          %v5385 = vpack.c.b16 %v5349, %v5349
          %v5386 = vpack.c.b16 %v5350, %v5350
          %v5387 = vpack.c.b16 %v5351, %v5351
          %v5388 = vpack.c.b16 %v5352, %v5352
          %v5389 = vpack.c.b16 %v5353, %v5353
          %v5390 = vpack.c.b16 %v5354, %v5354
          %v5391 = vpack.c.b16 %v5355, %v5355
          %v5392 = vpack.c.b16 %v5356, %v5356
          %v5393 = vpack.c.b16 %v5357, %v5357
          %v5394 = vpack.c.b16 %v5358, %v5358
          %v5395 = vpack.c.b16 %v5359, %v5359
          %5432 = vst [vmem:[%s179] sm:$0xf] %v5360
          %5433 = vst [vmem:[%s179 + $0x4] sm:$0xf] %v5361
          %5434 = vst [vmem:[%s179 + $0x8] sm:$0xf] %v5362
          %5435 = vst [vmem:[%s179 + $0xc] sm:$0xf] %v5363
          %5436 = vst [vmem:[%s179 + $0x10] sm:$0xf] %v5364
          %5437 = vst [vmem:[%s179 + $0x14] sm:$0xf] %v5365
          %5438 = vst [vmem:[%s179 + $0x18] sm:$0xf] %v5366
          %5439 = vst [vmem:[%s179 + $0x1c] sm:$0xf] %v5367
          %5440 = vst [vmem:[%s179 + $0x20] sm:$0xf] %v5368
          %5441 = vst [vmem:[%s179 + $0x24] sm:$0xf] %v5369
          %5442 = vst [vmem:[%s179 + $0x28] sm:$0xf] %v5370
          %5443 = vst [vmem:[%s179 + $0x2c] sm:$0xf] %v5371
          %5444 = vst [vmem:[%s179 + $0x30] sm:$0xf] %v5372
          %5445 = vst [vmem:[%s179 + $0x34] sm:$0xf] %v5373
          %5446 = vst [vmem:[%s179 + $0x38] sm:$0xf] %v5374
          %5447 = vst [vmem:[%s179 + $0x3c] sm:$0xf] %v5375
          %5448 = vst [vmem:[%s179 + $0x40] sm:$0xf] %v5376
          %5449 = vst [vmem:[%s179 + $0x44] sm:$0xf] %v5377
          %5450 = vst [vmem:[%s179 + $0x48] sm:$0xf] %v5378
          %5451 = vst [vmem:[%s179 + $0x4c] sm:$0xf] %v5379
          %5452 = vst [vmem:[%s179 + $0x50] sm:$0xf] %v5380
          %5453 = vst [vmem:[%s179 + $0x54] sm:$0xf] %v5381
          %5454 = vst [vmem:[%s179 + $0x58] sm:$0xf] %v5382
          %5455 = vst [vmem:[%s179 + $0x5c] sm:$0xf] %v5383
          %5456 = vst [vmem:[%s179 + $0x60] sm:$0xf] %v5384
          %5457 = vst [vmem:[%s179 + $0x64] sm:$0xf] %v5385
          %5458 = vst [vmem:[%s179 + $0x68] sm:$0xf] %v5386
          %5459 = vst [vmem:[%s179 + $0x6c] sm:$0xf] %v5387
          %5460 = vst [vmem:[%s179 + $0x70] sm:$0xf] %v5388
          %5461 = vst [vmem:[%s179 + $0x74] sm:$0xf] %v5389
          %5462 = vst [vmem:[%s179 + $0x78] sm:$0xf] %v5390
          %5463 = vst [vmem:[%s179 + $0x7c] sm:$0xf] %v5391
          %5464 = vst [vmem:[%s179 + $0x80] sm:$0xf] %v5392
          %5465 = vst [vmem:[%s179 + $0x84] sm:$0xf] %v5393
          %5466 = vst [vmem:[%s179 + $0x88] sm:$0xf] %v5394
          %5467 = vst [vmem:[%s179 + $0x8c] sm:$0xf] %v5395
          %5469 = vset.pattern.permute.xlu0 0
          %5470 = vperm.xlu0 %5469, %v5252
          %v5471 = vpop.permute.xlu0 %5470
          %5474 = vset.pattern.permute.xlu0 0
          %5475 = vperm.xlu0 %5474, %v5253
          %v5476 = vpop.permute.xlu0 %5475
          %5479 = vset.pattern.permute.xlu0 0
          %5480 = vperm.xlu0 %5479, %v5254
          %v5481 = vpop.permute.xlu0 %5480
          %5484 = vset.pattern.permute.xlu0 0
          %5485 = vperm.xlu0 %5484, %v5255
          %v5486 = vpop.permute.xlu0 %5485
          %5489 = vset.pattern.permute.xlu0 0
          %5490 = vperm.xlu0 %5489, %v5256
          %v5491 = vpop.permute.xlu0 %5490
          %5494 = vset.pattern.permute.xlu0 0
          %5495 = vperm.xlu0 %5494, %v5257
          %v5496 = vpop.permute.xlu0 %5495
          %5499 = vset.pattern.permute.xlu0 0
          %5500 = vperm.xlu0 %5499, %v5258
          %v5501 = vpop.permute.xlu0 %5500
          %5504 = vset.pattern.permute.xlu0 0
          %5505 = vperm.xlu0 %5504, %v5259
          %v5506 = vpop.permute.xlu0 %5505
          %5509 = vset.pattern.permute.xlu0 0
          %5510 = vperm.xlu0 %5509, %v5260
          %v5511 = vpop.permute.xlu0 %5510
          %5514 = vset.pattern.permute.xlu0 0
          %5515 = vperm.xlu0 %5514, %v5261
          %v5516 = vpop.permute.xlu0 %5515
          %5519 = vset.pattern.permute.xlu0 0
          %5520 = vperm.xlu0 %5519, %v5262
          %v5521 = vpop.permute.xlu0 %5520
          %5524 = vset.pattern.permute.xlu0 0
          %5525 = vperm.xlu0 %5524, %v5263
          %v5526 = vpop.permute.xlu0 %5525
          %5529 = vset.pattern.permute.xlu0 0
          %5530 = vperm.xlu0 %5529, %v5264
          %v5531 = vpop.permute.xlu0 %5530
          %5534 = vset.pattern.permute.xlu0 0
          %5535 = vperm.xlu0 %5534, %v5265
          %v5536 = vpop.permute.xlu0 %5535
          %5539 = vset.pattern.permute.xlu0 0
          %5540 = vperm.xlu0 %5539, %v5266
          %v5541 = vpop.permute.xlu0 %5540
          %5544 = vset.pattern.permute.xlu0 0
          %5545 = vperm.xlu0 %5544, %v5267
          %v5546 = vpop.permute.xlu0 %5545
          %5549 = vset.pattern.permute.xlu0 0
          %5550 = vperm.xlu0 %5549, %v5268
          %v5551 = vpop.permute.xlu0 %5550
          %5554 = vset.pattern.permute.xlu0 0
          %5555 = vperm.xlu0 %5554, %v5269
          %v5556 = vpop.permute.xlu0 %5555
          %5559 = vset.pattern.permute.xlu0 0
          %5560 = vperm.xlu0 %5559, %v5270
          %v5561 = vpop.permute.xlu0 %5560
          %5564 = vset.pattern.permute.xlu0 0
          %5565 = vperm.xlu0 %5564, %v5271
          %v5566 = vpop.permute.xlu0 %5565
          %5569 = vset.pattern.permute.xlu0 0
          %5570 = vperm.xlu0 %5569, %v5272
          %v5571 = vpop.permute.xlu0 %5570
          %5574 = vset.pattern.permute.xlu0 0
          %5575 = vperm.xlu0 %5574, %v5273
          %v5576 = vpop.permute.xlu0 %5575
          %5579 = vset.pattern.permute.xlu0 0
          %5580 = vperm.xlu0 %5579, %v5274
          %v5581 = vpop.permute.xlu0 %5580
          %5584 = vset.pattern.permute.xlu0 0
          %5585 = vperm.xlu0 %5584, %v5275
          %v5586 = vpop.permute.xlu0 %5585
          %5589 = vset.pattern.permute.xlu0 0
          %5590 = vperm.xlu0 %5589, %v5276
          %v5591 = vpop.permute.xlu0 %5590
          %5594 = vset.pattern.permute.xlu0 0
          %5595 = vperm.xlu0 %5594, %v5277
          %v5596 = vpop.permute.xlu0 %5595
          %5599 = vset.pattern.permute.xlu0 0
          %5600 = vperm.xlu0 %5599, %v5278
          %v5601 = vpop.permute.xlu0 %5600
          %5604 = vset.pattern.permute.xlu0 0
          %5605 = vperm.xlu0 %5604, %v5279
          %v5606 = vpop.permute.xlu0 %5605
          %5609 = vset.pattern.permute.xlu0 0
          %5610 = vperm.xlu0 %5609, %v5280
          %v5611 = vpop.permute.xlu0 %5610
          %5614 = vset.pattern.permute.xlu0 0
          %5615 = vperm.xlu0 %5614, %v5281
          %v5616 = vpop.permute.xlu0 %5615
          %5619 = vset.pattern.permute.xlu0 0
          %5620 = vperm.xlu0 %5619, %v5282
          %v5621 = vpop.permute.xlu0 %5620
          %5624 = vset.pattern.permute.xlu0 0
          %5625 = vperm.xlu0 %5624, %v5283
          %v5626 = vpop.permute.xlu0 %5625
          %5629 = vset.pattern.permute.xlu0 0
          %5630 = vperm.xlu0 %5629, %v5284
          %v5631 = vpop.permute.xlu0 %5630
          %5634 = vset.pattern.permute.xlu0 0
          %5635 = vperm.xlu0 %5634, %v5285
          %v5636 = vpop.permute.xlu0 %5635
          %5639 = vset.pattern.permute.xlu0 0
          %5640 = vperm.xlu0 %5639, %v5286
          %v5641 = vpop.permute.xlu0 %5640
          %5644 = vset.pattern.permute.xlu0 0
          %5645 = vperm.xlu0 %5644, %v5287
          %v5646 = vpop.permute.xlu0 %5645
          %v5648 = vsub.f32 %v5252, %v5471
          %v5649 = vsub.f32 %v5253, %v5476
          %v5650 = vsub.f32 %v5254, %v5481
          %v5651 = vsub.f32 %v5255, %v5486
          %v5652 = vsub.f32 %v5256, %v5491
          %v5653 = vsub.f32 %v5257, %v5496
          %v5654 = vsub.f32 %v5258, %v5501
          %v5655 = vsub.f32 %v5259, %v5506
          %v5656 = vsub.f32 %v5260, %v5511
          %v5657 = vsub.f32 %v5261, %v5516
          %v5658 = vsub.f32 %v5262, %v5521
          %v5659 = vsub.f32 %v5263, %v5526
          %v5660 = vsub.f32 %v5264, %v5531
          %v5661 = vsub.f32 %v5265, %v5536
          %v5662 = vsub.f32 %v5266, %v5541
          %v5663 = vsub.f32 %v5267, %v5546
          %v5664 = vsub.f32 %v5268, %v5551
          %v5665 = vsub.f32 %v5269, %v5556
          %v5666 = vsub.f32 %v5270, %v5561
          %v5667 = vsub.f32 %v5271, %v5566
          %v5668 = vsub.f32 %v5272, %v5571
          %v5669 = vsub.f32 %v5273, %v5576
          %v5670 = vsub.f32 %v5274, %v5581
          %v5671 = vsub.f32 %v5275, %v5586
          %v5672 = vsub.f32 %v5276, %v5591
          %v5673 = vsub.f32 %v5277, %v5596
          %v5674 = vsub.f32 %v5278, %v5601
          %v5675 = vsub.f32 %v5279, %v5606
          %v5676 = vsub.f32 %v5280, %v5611
          %v5677 = vsub.f32 %v5281, %v5616
          %v5678 = vsub.f32 %v5282, %v5621
          %v5679 = vsub.f32 %v5283, %v5626
          %v5680 = vsub.f32 %v5284, %v5631
          %v5681 = vsub.f32 %v5285, %v5636
          %v5682 = vsub.f32 %v5286, %v5641
          %v5683 = vsub.f32 %v5287, %v5646
          %v5684 = vmul.f32 %v5648, %v4821
          %v5685 = vmul.f32 %v5649, %v4822
          %v5686 = vmul.f32 %v5650, %v4823
          %v5687 = vmul.f32 %v5651, %v4824
          %v5688 = vmul.f32 %v5652, %v4825
          %v5689 = vmul.f32 %v5653, %v4826
          %v5690 = vmul.f32 %v5654, %v4827
          %v5691 = vmul.f32 %v5655, %v4828
          %v5692 = vmul.f32 %v5656, %v4829
          %v5693 = vmul.f32 %v5657, %v4830
          %v5694 = vmul.f32 %v5658, %v4831
          %v5695 = vmul.f32 %v5659, %v4832
          %v5696 = vmul.f32 %v5660, %v4833
          %v5697 = vmul.f32 %v5661, %v4834
          %v5698 = vmul.f32 %v5662, %v4835
          %v5699 = vmul.f32 %v5663, %v4836
          %v5700 = vmul.f32 %v5664, %v4837
          %v5701 = vmul.f32 %v5665, %v4838
          %v5702 = vmul.f32 %v5666, %v4839
          %v5703 = vmul.f32 %v5667, %v4840
          %v5704 = vmul.f32 %v5668, %v4841
          %v5705 = vmul.f32 %v5669, %v4842
          %v5706 = vmul.f32 %v5670, %v4843
          %v5707 = vmul.f32 %v5671, %v4844
          %v5708 = vmul.f32 %v5672, %v4845
          %v5709 = vmul.f32 %v5673, %v4846
          %v5710 = vmul.f32 %v5674, %v4847
          %v5711 = vmul.f32 %v5675, %v4848
          %v5712 = vmul.f32 %v5676, %v4849
          %v5713 = vmul.f32 %v5677, %v4850
          %v5714 = vmul.f32 %v5678, %v4851
          %v5715 = vmul.f32 %v5679, %v4852
          %v5716 = vmul.f32 %v5680, %v4853
          %v5717 = vmul.f32 %v5681, %v4854
          %v5718 = vmul.f32 %v5682, %v4855
          %v5719 = vmul.f32 %v5683, %v4856
          %v5720 = vmul.f32 %v5684, %v5684
          %v5721 = vmul.f32 %v5685, %v5685
          %v5722 = vmul.f32 %v5686, %v5686
          %v5723 = vmul.f32 %v5687, %v5687
          %v5724 = vmul.f32 %v5688, %v5688
          %v5725 = vmul.f32 %v5689, %v5689
          %v5726 = vmul.f32 %v5690, %v5690
          %v5727 = vmul.f32 %v5691, %v5691
          %v5728 = vmul.f32 %v5692, %v5692
          %v5729 = vmul.f32 %v5693, %v5693
          %v5730 = vmul.f32 %v5694, %v5694
          %v5731 = vmul.f32 %v5695, %v5695
          %v5732 = vmul.f32 %v5696, %v5696
          %v5733 = vmul.f32 %v5697, %v5697
          %v5734 = vmul.f32 %v5698, %v5698
          %v5735 = vmul.f32 %v5699, %v5699
          %v5736 = vmul.f32 %v5700, %v5700
          %v5737 = vmul.f32 %v5701, %v5701
          %v5738 = vmul.f32 %v5702, %v5702
          %v5739 = vmul.f32 %v5703, %v5703
          %v5740 = vmul.f32 %v5704, %v5704
          %v5741 = vmul.f32 %v5705, %v5705
          %v5742 = vmul.f32 %v5706, %v5706
          %v5743 = vmul.f32 %v5707, %v5707
          %v5744 = vmul.f32 %v5708, %v5708
          %v5745 = vmul.f32 %v5709, %v5709
          %v5746 = vmul.f32 %v5710, %v5710
          %v5747 = vmul.f32 %v5711, %v5711
          %v5748 = vmul.f32 %v5712, %v5712
          %v5749 = vmul.f32 %v5713, %v5713
          %v5750 = vmul.f32 %v5714, %v5714
          %v5751 = vmul.f32 %v5715, %v5715
          %v5752 = vmul.f32 %v5716, %v5716
          %v5753 = vmul.f32 %v5717, %v5717
          %v5754 = vmul.f32 %v5718, %v5718
          %v5755 = vmul.f32 %v5719, %v5719
          %v5756 = vadd.f32 %v5720, %v5721
          %v5757 = vadd.f32 %v5756, %v5722
          %v5758 = vadd.f32 %v5757, %v5723
          %v5759 = vadd.f32 %v5758, %v5724
          %v5760 = vadd.f32 %v5759, %v5725
          %v5761 = vadd.f32 %v5760, %v5726
          %v5762 = vadd.f32 %v5761, %v5727
          %v5763 = vadd.f32 %v5762, %v5728
          %v5764 = vadd.f32 %v5763, %v5729
          %v5765 = vadd.f32 %v5764, %v5730
          %v5766 = vadd.f32 %v5765, %v5731
          %v5767 = vadd.f32 %v5766, %v5732
          %v5768 = vadd.f32 %v5767, %v5733
          %v5769 = vadd.f32 %v5768, %v5734
          %v5770 = vadd.f32 %v5769, %v5735
          %v5771 = vadd.f32 %v5770, %v5736
          %v5772 = vadd.f32 %v5771, %v5737
          %v5773 = vadd.f32 %v5772, %v5738
          %v5774 = vadd.f32 %v5773, %v5739
          %v5775 = vadd.f32 %v5774, %v5740
          %v5776 = vadd.f32 %v5775, %v5741
          %v5777 = vadd.f32 %v5776, %v5742
          %v5778 = vadd.f32 %v5777, %v5743
          %v5779 = vadd.f32 %v5778, %v5744
          %v5780 = vadd.f32 %v5779, %v5745
          %v5781 = vadd.f32 %v5780, %v5746
          %v5782 = vadd.f32 %v5781, %v5747
          %v5783 = vadd.f32 %v5782, %v5748
          %v5784 = vadd.f32 %v5783, %v5749
          %v5785 = vadd.f32 %v5784, %v5750
          %v5786 = vadd.f32 %v5785, %v5751
          %v5787 = vadd.f32 %v5786, %v5752
          %v5788 = vadd.f32 %v5787, %v5753
          %v5789 = vadd.f32 %v5788, %v5754
          %v5790 = vadd.f32 %v5789, %v5755
          %v5791 = vrot.slane %v5790, 4
          %v5792 = vadd.f32 %v5790, %v5791
          %v5793 = vrot.slane %v5792, 2
          %v5794 = vadd.f32 %v5792, %v5793
          %v5795 = vrot.slane %v5794, 1
          %v5796 = vadd.f32 %v5794, %v5795
          %v5797 = vadd.f32 %v5796, 0.0
          %v5798 = vrsqrt.pop %v5797
          %v5799 = vmul.f32 %v5797, %v5798
          %vm5800 = vcmp.eq.f32.partialorder %v5797, inf
          %v5801 = vsel %vm5800, %v5797, %v5799
          %vm5802 = vcmp.eq.f32.partialorder %v5797, 0.0
          %v5803 = vand.u32 %v5797, 2147483648
          %v5804 = vsel %vm5802, %v5803, %v5801
          %5805 = vst [vmem:[%s185] sm:$0x1] %v5804
        $region36: #{tpu_custom_call.1} parent=27 // pred_fallthru
          _
        %s5806 = sand.u32 %s88, 1
        %s5807 = scalar_lea.sflag [#allocation5], %s5806
        %s5808 = sand.u32 %s88, 1
        %s5809 = smul.addr %s5808, 144
        %s5810 = scalar_lea.vmem [#allocation4], %s5809
        %s5811 = sand.u32 %s114, 1
        %s5812 = scalar_lea.sflag [#allocation7], %s5811
        %s5813 = sand.u32 %s114, 1
        %s5814 = scalar_lea.vmem [#allocation6], %s5813
        // Predicated region
        $region37: #{tpu_custom_call.1} parent=27 // pred_check
          %p5815 = pneg %p98
        $region38: #{tpu_custom_call.1} parent=27 // pred_check_branch
          %5817 = sbr.rel (%p5815) target = $region40
        $region39: #{tpu_custom_call.1} parent=27 // pred_region
          %s5819 = ssub.s32 2304, 2304
          %5820 = vsyncadd %s5807, %s5819
          %s5821 = smul.addr %s25, 36
          %s5822 = smul.addr %s5821, 64
          %s5823 = scalar_lea.hbm %s2, %s5822
          %s5824 = sshll.u32 %s5810, 4
          %s5825 = int_to_ptr.vmem [resolvable:$true] %s5824
          %5830 = dma.vmem_to_hbm [thread:$0]  %s5825, 2304, %s5823, %s5807, 64, 64, 4
        $region40: #{tpu_custom_call.1} parent=27 // pred_fallthru
          _
        // Predicated region
        $region41: #{tpu_custom_call.1} parent=27 // pred_check
          %p5831 = pneg %p124
        $region42: #{tpu_custom_call.1} parent=27 // pred_check_branch
          %5833 = sbr.rel (%p5831) target = $region44
        $region43: #{tpu_custom_call.1} parent=27 // pred_region
          %s5835 = ssub.s32 16, 16
          %5836 = vsyncadd %s5812, %s5835
          %s5837 = smul.addr %s25, 16
          %s5838 = scalar_lea.hbm %s3, %s5837
          %s5840 = sshll.u32 %s5814, 4
          %s5841 = int_to_ptr.vmem [resolvable:$true] %s5840
          %5843 = dma.vmem_to_hbm [thread:$0]  %s5841, 16, %s5838, %s5812
        $region44: #{tpu_custom_call.1} parent=27 // pred_fallthru
          _
      $region28: #{tpu_custom_call.1} parent=5 // pred_fallthru
        _
      %p5844 = scmp.le.s32.totalorder 2, %s16
      // Predicated region
      $region45: #{tpu_custom_call.1} parent=5 // pred_check
        %p5845 = pneg %p5844
      $region46: #{tpu_custom_call.1} parent=5 // pred_check_branch
        %5847 = sbr.rel (%p5845) target = $region48
      $region47: #{tpu_custom_call.1} parent=5 // pred_region
        %s5848 = ssub.s32 %s16, 2
        // Predicated region
        $region49: #{tpu_custom_call.1} parent=47 // pred_check
          %p5849 = pneg %p104
        $region50: #{tpu_custom_call.1} parent=47 // pred_check_branch
          %5851 = sbr.rel (%p5849) target = $region52
        $region51: #{tpu_custom_call.1} parent=47 // pred_region
          %s5852 = sand.u32 %s89, 1
          %s5853 = scalar_lea.sflag [#allocation5], %s5852
          %s5854 = sand.u32 %s89, 1
          %s5855 = smul.addr %s5854, 144
          %s5856 = scalar_lea.vmem [#allocation4], %s5855
          %5857 = dma.done %s5853, 2304
        $region52: #{tpu_custom_call.1} parent=47 // pred_fallthru
          _
        // Predicated region
        $region53: #{tpu_custom_call.1} parent=47 // pred_check
          %p5858 = pneg %p130
        $region54: #{tpu_custom_call.1} parent=47 // pred_check_branch
          %5860 = sbr.rel (%p5858) target = $region56
        $region55: #{tpu_custom_call.1} parent=47 // pred_region
          %s5861 = sand.u32 %s115, 1
          %s5862 = scalar_lea.sflag [#allocation7], %s5861
          %s5863 = sand.u32 %s115, 1
          %s5864 = scalar_lea.vmem [#allocation6], %s5863
          %5865 = dma.done %s5862, 16
        $region56: #{tpu_custom_call.1} parent=47 // pred_fallthru
          _
      $region48: #{tpu_custom_call.1} parent=5 // pred_fallthru
        _
    $region6: #{tpu_custom_call.1} parent=1 // loop_footer
      %s20 = sadd.s32 1, %s16
    $region7: #{tpu_custom_call.1} parent=1 // loop_footer_branch
      %15 = sbr.rel target = $region3
    $region8: #{tpu_custom_call.1} parent=1 // loop_exit
      _
    %5866 = vsyncpa [#allocation5], 1
    %s5867 = scalar_lea.sflag [#allocation5], 1
    %5868 = vsyncpa %s5867, 1
    %5869 = vsyncpa [#allocation7], 1
    %s5870 = scalar_lea.sflag [#allocation7], 1
    %5871 = vsyncpa %s5870, 1

</llo_original>
